<compile_context>
chip_gen: v6e
topology: v6e:2x2x1
jax: 0.10.0
libtpu: 0.0.40
codegen_flags: <defaults>
</compile_context>

<pallas_src>
import functools

import jax
import jax.numpy as jnp
from jax.experimental import pallas as pl
from jax.experimental.pallas import tpu as pltpu


def _rcu_kernel(xm_ref, xt_ref, w1_ref, b1_ref, w2_ref, b2_ref, o_ref,
                pad1_ref, pad2_ref, *, true_h, tile_h, row_chunk):
    """One (batch, H-tile) grid step.

    xm_ref  : (TH, W, C) f32    padded rows [r0-2, r0+TH-2) of the input
    xt_ref  : (4,  W, C) f32    padded rows [r0+TH-2, r0+TH+2)  (bottom halo)
    w*_ref  : (3, 3, C, C)      conv weights as (kh, kw, Cin, Cout), compute dtype
    b*_ref  : (1, C) f32        conv biases
    o_ref   : (TH, W, C) f32    output rows [r0, r0+TH)
    pad1_ref: (TH+4, W+2, C)    scratch: relu(x) with zero W-halo columns
    pad2_ref: (TH+2, W+2, C)    scratch: relu(conv1) with zero W-halo columns
    """
    TH, RC = tile_h, row_chunk
    W = o_ref.shape[1]
    C = o_ref.shape[2]
    r0 = pl.program_id(1) * TH            # first global output row of this tile

    def conv3x3_rows(pad_ref, p0, n_rows, w_ref, b_ref):
        """3x3 conv producing n_rows output rows from pad rows [p0, p0+n_rows+2).

        9 accumulating K=C matmuls (no im2col concat); f32 accumulation on the MXU.
        """
        acc = None
        for dy in range(3):
            for dx in range(3):
                win = pad_ref[pl.ds(p0 + dy, n_rows), dx:dx + W, :]   # (n_rows, W, C)
                t = jax.lax.dot_general(
                    win, w_ref[dy, dx],
                    dimension_numbers=(((2,), (0,)), ((), ())),
                    preferred_element_type=jnp.float32)
                acc = t if acc is None else acc + t
        return acc + b_ref[...].reshape(1, 1, C)                      # (n_rows, W, C) f32

    # ---- pad1 = relu(x) with zero W-halo columns (interior fully overwritten). ----
    zc1 = jnp.zeros((TH + 4, 1, C), dtype=pad1_ref.dtype)
    pad1_ref[:, 0:1, :] = zc1
    pad1_ref[:, W + 1:W + 2, :] = zc1
    pad1_ref[0:TH, 1:W + 1, :] = jnp.maximum(xm_ref[...], 0.0).astype(pad1_ref.dtype)
    pad1_ref[TH:TH + 4, 1:W + 1, :] = jnp.maximum(xt_ref[...], 0.0).astype(pad1_ref.dtype)

    zc2 = jnp.zeros((TH + 2, 1, C), dtype=pad2_ref.dtype)
    pad2_ref[:, 0:1, :] = zc2
    pad2_ref[:, W + 1:W + 2, :] = zc2

    # ---- conv1 + ReLU -> pad2, chunked over RC output rows. ----
    def conv1_chunk(ci, carry):
        q0 = pl.multiple_of(ci * RC, RC)
        a = conv3x3_rows(pad1_ref, q0, RC, w1_ref, b1_ref)
        pad2_ref[pl.ds(q0, RC), 1:W + 1, :] = jnp.maximum(a, 0.0).astype(pad2_ref.dtype)
        return carry

    jax.lax.fori_loop(0, TH // RC, conv1_chunk, 0)

    # 2-row conv1 tail (pad2 rows TH, TH+1) needed by the bottom of conv2's window.
    a_tail = conv3x3_rows(pad1_ref, TH, 2, w1_ref, b1_ref)
    pad2_ref[TH:TH + 2, 1:W + 1, :] = jnp.maximum(a_tail, 0.0).astype(pad2_ref.dtype)

    # ---- conv2's vertical zero padding: only the rows straddling the image boundary
    # matter; interior tiles skip this entirely. ----
    @pl.when(r0 == 0)
    def _():
        pad2_ref[0:1, :, :] = jnp.zeros((1, W + 2, C), dtype=pad2_ref.dtype)

    q_bot = true_h - r0 + 1           # pad2 row holding global row `true_h` (just below image)
    @pl.when(q_bot < TH + 2)
    def _():
        pad2_ref[pl.ds(q_bot, 1), :, :] = jnp.zeros((1, W + 2, C), dtype=pad2_ref.dtype)

    # ---- conv2 + residual (pre-ReLU f32 x), chunked; rows past the image are garbage
    # and are sliced off by out[:, :H] in the wrapper. ----
    n2 = TH // RC

    def conv2_chunk(ci, carry):
        t0 = pl.multiple_of(ci * RC, RC)
        c2 = conv3x3_rows(pad2_ref, t0, RC, w2_ref, b2_ref)

        @pl.when(ci < n2 - 1)
        def _():
            o_ref[pl.ds(t0, RC)] = (c2 + xm_ref[pl.ds(t0 + 2, RC)]).astype(o_ref.dtype)

        @pl.when(ci >= n2 - 1)        # last chunk: residual rows split across xm / xt halo
        def _():
            o_ref[pl.ds(t0, RC - 2)] = (
                c2[:RC - 2] + xm_ref[pl.ds(t0 + 2, RC - 2)]).astype(o_ref.dtype)
            o_ref[pl.ds(t0 + RC - 2, 2)] = (c2[RC - 2:] + xt_ref[0:2]).astype(o_ref.dtype)

        return carry

    jax.lax.fori_loop(0, n2, conv2_chunk, 0)


def residual_conv_unit(x_nchw, w1, b1, w2, b2, *, tile_h=32, row_chunk=8,
                       compute_dtype=jnp.bfloat16, vmem_limit_mb=48):
    """x_nchw: (N, C, H, W) f32; w*: (Cout, Cin, 3, 3) torch layout; b*: (C,).

    tile_h / row_chunk / vmem_limit_mb are per-generation knobs:
      v7x : tile_h 8-16,  vmem <= ~56 MiB (64 MiB physical per TC)
      v6e : tile_h 48-64, vmem ~96-112 MiB
      v5e : tile_h 48-64, vmem ~96-112 MiB
    """
    x = jnp.transpose(x_nchw, (0, 2, 3, 1)).astype(jnp.float32)   # NHWC
    N, H, W, C = x.shape

    RC = max(4, (int(row_chunk) // 4) * 4)                        # multiple of 4
    TH = min(int(tile_h), -(-H // RC) * RC)
    TH = max(RC, (TH // RC) * RC)                                 # multiple of RC
    nH = -(-H // TH)
    # v7x has 2 TensorCores: make sure there are >= 2 grid programs when we can split.
    if N * nH < 2 and TH > RC:
        TH = max(RC, ((TH // 2) // RC) * RC)
        nH = -(-H // TH)
    Hp = nH * TH

    # Row-only halo pad: 2 zero rows on top, 2 + tile-alignment rows at the bottom.
    xp = jnp.pad(x, ((0, 0), (2, 2 + Hp - H), (0, 0), (0, 0)))

    # Weights: (Cout, Cin, 3, 3) -> (kh, kw, Cin, Cout) in the MXU compute dtype.
    def prep_w(w):
        return jnp.transpose(w, (2, 3, 1, 0)).astype(compute_dtype)

    w1k, w2k = prep_w(w1), prep_w(w2)
    b1k = b1.reshape(1, C).astype(jnp.float32)
    b2k = b2.reshape(1, C).astype(jnp.float32)

    kernel = functools.partial(_rcu_kernel, true_h=H, tile_h=TH, row_chunk=RC)

    out = pl.pallas_call(
        kernel,
        out_shape=jax.ShapeDtypeStruct((N, Hp, W, C), jnp.float32),
        grid_spec=pltpu.PrefetchScalarGridSpec(
            num_scalar_prefetch=0,
            grid=(N, nH),
            in_specs=[
                # main rows of the tile: padded rows [i*TH, i*TH+TH)
                pl.BlockSpec((None, TH, W, C), lambda n, i: (n, i, 0, 0)),
                # bottom halo: padded rows [(i+1)*TH, (i+1)*TH+4)
                pl.BlockSpec((None, 4, W, C),
                             lambda n, i: (n, (i + 1) * (TH // 4), 0, 0)),
                pl.BlockSpec((3, 3, C, C), lambda n, i: (0, 0, 0, 0)),
                pl.BlockSpec((1, C), lambda n, i: (0, 0)),
                pl.BlockSpec((3, 3, C, C), lambda n, i: (0, 0, 0, 0)),
                pl.BlockSpec((1, C), lambda n, i: (0, 0)),
            ],
            out_specs=pl.BlockSpec((None, TH, W, C), lambda n, i: (n, i, 0, 0)),
            scratch_shapes=[
                pltpu.VMEM((TH + 4, W + 2, C), compute_dtype),
                pltpu.VMEM((TH + 2, W + 2, C), compute_dtype),
            ],
        ),
        compiler_params=pltpu.CompilerParams(
            dimension_semantics=("parallel", "parallel"),
            vmem_limit_bytes=int(vmem_limit_mb) * 1024 * 1024),
    )(xp, xp, w1k, b1k, w2k, b2k)

    return jnp.transpose(out[:, :H], (0, 3, 1, 2))  # back to NCHW


def _reference(x_nchw, w1, b1, w2, b2):
    """Plain-JAX reference (same semantics as the PyTorch forward, bn=False)."""
    def conv(x, w, b):
        y = jax.lax.conv_general_dilated(
            x, w, window_strides=(1, 1), padding=((1, 1), (1, 1)),
            dimension_numbers=("NCHW", "OIHW", "NCHW"))
        return y + b.reshape(1, -1, 1, 1)
    out = jnp.maximum(x_nchw, 0.0)
    out = conv(out, w1, b1)
    out = jnp.maximum(out, 0.0)
    out = conv(out, w2, b2)
    return out + x_nchw


if __name__ == "__main__":
    key = jax.random.PRNGKey(0)
    k_x, k_w1, k_b1, k_w2, k_b2 = jax.random.split(key, 5)

    N, C, H, W = 2, 4, 16, 16  # features = 4
    x = jax.random.normal(k_x, (N, C, H, W), dtype=jnp.float32)
    w1 = jax.random.normal(k_w1, (C, C, 3, 3), dtype=jnp.float32) * 0.1
    b1 = jax.random.normal(k_b1, (C,), dtype=jnp.float32) * 0.1
    w2 = jax.random.normal(k_w2, (C, C, 3, 3), dtype=jnp.float32) * 0.1
    b2 = jax.random.normal(k_b2, (C,), dtype=jnp.float32) * 0.1

    ref = _reference(x, w1, b1, w2, b2)

    # Exercise: multi-tile + multi-chunk, single-tile (both boundary rows in one tile),
    # and a ragged tail tile (H not a multiple of TH).
    for th, rc in ((8, 4), (16, 8), (12, 4)):
        out = residual_conv_unit(x, w1, b1, w2, b2, tile_h=th, row_chunk=rc)
        out = jax.block_until_ready(out)
        assert out.shape == (N, C, H, W)
        # bf16 MXU inputs with f32 accumulation -> ~1e-2-level relative error expected.
        assert jnp.allclose(out, ref, rtol=5e-2, atol=5e-2), f"mismatch th={th} rc={rc}"

    print("KERNEL_OK")
</pallas_src>

<mosaic_0001>
module attributes {stable_mosaic.version = 11 : i64} {
  func.func @_rcu_kernel(%arg0: i32, %arg1: i32, %arg2: memref<1x8x16x4xf32, #tpu.memory_space<vmem>>, %arg3: memref<1x4x16x4xf32, #tpu.memory_space<vmem>>, %arg4: memref<3x3x4x4xbf16, #tpu.memory_space<vmem>>, %arg5: memref<1x4xf32, #tpu.memory_space<vmem>>, %arg6: memref<3x3x4x4xbf16, #tpu.memory_space<vmem>>, %arg7: memref<1x4xf32, #tpu.memory_space<vmem>>, %arg8: memref<1x8x16x4xf32, #tpu.memory_space<vmem>>, %arg9: memref<12x18x4xbf16, #tpu.memory_space<vmem>>, %arg10: memref<10x18x4xbf16, #tpu.memory_space<vmem>>) attributes {dimension_semantics = [#tpu.dimension_semantics<parallel>, #tpu.dimension_semantics<parallel>], iteration_bounds = array<i64: 2, 2>, scalar_prefetch = 0 : i64, scratch_operands = 2 : i64, tpu.core_type = #tpu.core_type<tc>, window_params = [{transform_indices = @transform_0, window_bounds = array<i64: 1, 8, 16, 4>}, {transform_indices = @transform_1, window_bounds = array<i64: 1, 4, 16, 4>}, {pipeline_mode = #tpu.pipeline_mode<synchronous>, transform_indices = @transform_2, window_bounds = array<i64: 3, 3, 4, 4>}, {pipeline_mode = #tpu.pipeline_mode<synchronous>, transform_indices = @transform_3, window_bounds = array<i64: 1, 4>}, {pipeline_mode = #tpu.pipeline_mode<synchronous>, transform_indices = @transform_4, window_bounds = array<i64: 3, 3, 4, 4>}, {pipeline_mode = #tpu.pipeline_mode<synchronous>, transform_indices = @transform_5, window_bounds = array<i64: 1, 4>}, {transform_indices = @transform_6, window_bounds = array<i64: 1, 8, 16, 4>}]} {
    %c8_i32 = arith.constant 8 : i32
    %0 = arith.muli %arg1, %c8_i32 : i32
    %cst = arith.constant 0.000000e+00 : bf16
    %1 = vector.broadcast %cst : bf16 to vector<12x1x4xbf16>
    %c0 = arith.constant 0 : index
    %c0_0 = arith.constant 0 : index
    %c0_1 = arith.constant 0 : index
    %2 = vector.load %arg9[%c0, %c0_0, %c0_1] : memref<12x18x4xbf16, #tpu.memory_space<vmem>>, vector<12x1x4xbf16>
    tpu.vector_store %arg9[%c0, %c0_0, %c0_1], %1 {strides = array<i32>} : memref<12x18x4xbf16, #tpu.memory_space<vmem>>, vector<12x1x4xbf16>,
    %c0_2 = arith.constant 0 : index
    %c17 = arith.constant 17 : index
    %c0_3 = arith.constant 0 : index
    %3 = vector.load %arg9[%c0_2, %c17, %c0_3] : memref<12x18x4xbf16, #tpu.memory_space<vmem>>, vector<12x1x4xbf16>
    tpu.vector_store %arg9[%c0_2, %c17, %c0_3], %1 {strides = array<i32>} : memref<12x18x4xbf16, #tpu.memory_space<vmem>>, vector<12x1x4xbf16>,
    %c0_4 = arith.constant 0 : index
    %c0_5 = arith.constant 0 : index
    %c0_6 = arith.constant 0 : index
    %c0_7 = arith.constant 0 : index
    %4 = vector.load %arg2[%c0_4, %c0_5, %c0_6, %c0_7] : memref<1x8x16x4xf32, #tpu.memory_space<vmem>>, vector<1x8x16x4xf32>
    %5 = vector.shape_cast %4 : vector<1x8x16x4xf32> to vector<8x16x4xf32>
    %cst_8 = arith.constant 0.000000e+00 : f32
    %6 = vector.broadcast %cst_8 : f32 to vector<8x16x4xf32>
    %7 = arith.maximumf %5, %6 : vector<8x16x4xf32>
    %8 = arith.truncf %7 : vector<8x16x4xf32> to vector<8x16x4xbf16>
    %c0_9 = arith.constant 0 : index
    %c1 = arith.constant 1 : index
    %c0_10 = arith.constant 0 : index
    %9 = vector.load %arg9[%c0_9, %c1, %c0_10] : memref<12x18x4xbf16, #tpu.memory_space<vmem>>, vector<8x16x4xbf16>
    tpu.vector_store %arg9[%c0_9, %c1, %c0_10], %8 {strides = array<i32>} : memref<12x18x4xbf16, #tpu.memory_space<vmem>>, vector<8x16x4xbf16>,
    %c0_11 = arith.constant 0 : index
    %c0_12 = arith.constant 0 : index
    %c0_13 = arith.constant 0 : index
    %c0_14 = arith.constant 0 : index
    %10 = vector.load %arg3[%c0_11, %c0_12, %c0_13, %c0_14] : memref<1x4x16x4xf32, #tpu.memory_space<vmem>>, vector<1x4x16x4xf32>
    %11 = vector.shape_cast %10 : vector<1x4x16x4xf32> to vector<4x16x4xf32>
    %cst_15 = arith.constant 0.000000e+00 : f32
    %12 = vector.broadcast %cst_15 : f32 to vector<4x16x4xf32>
    %13 = arith.maximumf %11, %12 : vector<4x16x4xf32>
    %14 = arith.truncf %13 : vector<4x16x4xf32> to vector<4x16x4xbf16>
    %c8 = arith.constant 8 : index
    %c1_16 = arith.constant 1 : index
    %c0_17 = arith.constant 0 : index
    %15 = vector.load %arg9[%c8, %c1_16, %c0_17] : memref<12x18x4xbf16, #tpu.memory_space<vmem>>, vector<4x16x4xbf16>
    tpu.vector_store %arg9[%c8, %c1_16, %c0_17], %14 {strides = array<i32>} : memref<12x18x4xbf16, #tpu.memory_space<vmem>>, vector<4x16x4xbf16>,
    %cst_18 = arith.constant 0.000000e+00 : bf16
    %16 = vector.broadcast %cst_18 : bf16 to vector<10x1x4xbf16>
    %c0_19 = arith.constant 0 : index
    %c0_20 = arith.constant 0 : index
    %c0_21 = arith.constant 0 : index
    %17 = vector.load %arg10[%c0_19, %c0_20, %c0_21] : memref<10x18x4xbf16, #tpu.memory_space<vmem>>, vector<10x1x4xbf16>
    tpu.vector_store %arg10[%c0_19, %c0_20, %c0_21], %16 {strides = array<i32>} : memref<10x18x4xbf16, #tpu.memory_space<vmem>>, vector<10x1x4xbf16>,
    %c0_22 = arith.constant 0 : index
    %c17_23 = arith.constant 17 : index
    %c0_24 = arith.constant 0 : index
    %18 = vector.load %arg10[%c0_22, %c17_23, %c0_24] : memref<10x18x4xbf16, #tpu.memory_space<vmem>>, vector<10x1x4xbf16>
    tpu.vector_store %arg10[%c0_22, %c17_23, %c0_24], %16 {strides = array<i32>} : memref<10x18x4xbf16, #tpu.memory_space<vmem>>, vector<10x1x4xbf16>,
    %c0_i32 = arith.constant 0 : i32
    %c2_i32 = arith.constant 2 : i32
    %19 = arith.addi %c0_i32, %c2_i32 : i32
    %c1_i32 = arith.constant 1 : i32
    scf.for %arg11 = %c0_i32 to %19 step %c1_i32  : i32 {
      %c4_i32 = arith.constant 4 : i32
      %81 = arith.muli %arg11, %c4_i32 : i32
      %82 = tpu.assume_multiple %81, 4 : i32
      %c0_i32_109 = arith.constant 0 : i32
      %83 = arith.addi %82, %c0_i32_109 : i32
      %84 = arith.index_cast %83 : i32 to index
      %c0_110 = arith.constant 0 : index
      %c0_111 = arith.constant 0 : index
      %85 = vector.load %arg9[%84, %c0_110, %c0_111] : memref<12x18x4xbf16, #tpu.memory_space<vmem>>, vector<4x16x4xbf16>
      %c0_112 = arith.constant 0 : index
      %c0_113 = arith.constant 0 : index
      %c0_114 = arith.constant 0 : index
      %c0_115 = arith.constant 0 : index
      %86 = vector.load %arg4[%c0_112, %c0_113, %c0_114, %c0_115] : memref<3x3x4x4xbf16, #tpu.memory_space<vmem>>, vector<1x1x4x4xbf16>
      %87 = vector.shape_cast %86 : vector<1x1x4x4xbf16> to vector<4x4xbf16>
      %cst_116 = arith.constant dense<0.000000e+00> : vector<4x16x4xf32>
      %88 = tpu.matmul %85, %87, %cst_116 {dimension_numbers = #tpu.dot_dimension_numbers<[2], [0], [0, 1], [1], [0, 0, 0, 1, 1, 1], [], []>} : vector<4x16x4xbf16>, vector<4x4xbf16>, vector<4x16x4xf32> -> vector<4x16x4xf32>
      %c0_i32_117 = arith.constant 0 : i32
      %89 = arith.addi %82, %c0_i32_117 : i32
      %90 = arith.index_cast %89 : i32 to index
      %c1_118 = arith.constant 1 : index
      %c0_119 = arith.constant 0 : index
      %91 = vector.load %arg9[%90, %c1_118, %c0_119] : memref<12x18x4xbf16, #tpu.memory_space<vmem>>, vector<4x16x4xbf16>
      %c0_120 = arith.constant 0 : index
      %c1_121 = arith.constant 1 : index
      %c0_122 = arith.constant 0 : index
      %c0_123 = arith.constant 0 : index
      %92 = vector.load %arg4[%c0_120, %c1_121, %c0_122, %c0_123] : memref<3x3x4x4xbf16, #tpu.memory_space<vmem>>, vector<1x1x4x4xbf16>
      %93 = vector.shape_cast %92 : vector<1x1x4x4xbf16> to vector<4x4xbf16>
      %cst_124 = arith.constant dense<0.000000e+00> : vector<4x16x4xf32>
      %94 = tpu.matmul %91, %93, %cst_124 {dimension_numbers = #tpu.dot_dimension_numbers<[2], [0], [0, 1], [1], [0, 0, 0, 1, 1, 1], [], []>} : vector<4x16x4xbf16>, vector<4x4xbf16>, vector<4x16x4xf32> -> vector<4x16x4xf32>
      %95 = arith.addf %88, %94 : vector<4x16x4xf32>
      %c0_i32_125 = arith.constant 0 : i32
      %96 = arith.addi %82, %c0_i32_125 : i32
      %97 = arith.index_cast %96 : i32 to index
      %c2_126 = arith.constant 2 : index
      %c0_127 = arith.constant 0 : index
      %98 = vector.load %arg9[%97, %c2_126, %c0_127] : memref<12x18x4xbf16, #tpu.memory_space<vmem>>, vector<4x16x4xbf16>
      %c0_128 = arith.constant 0 : index
      %c2_129 = arith.constant 2 : index
      %c0_130 = arith.constant 0 : index
      %c0_131 = arith.constant 0 : index
      %99 = vector.load %arg4[%c0_128, %c2_129, %c0_130, %c0_131] : memref<3x3x4x4xbf16, #tpu.memory_space<vmem>>, vector<1x1x4x4xbf16>
      %100 = vector.shape_cast %99 : vector<1x1x4x4xbf16> to vector<4x4xbf16>
      %cst_132 = arith.constant dense<0.000000e+00> : vector<4x16x4xf32>
      %101 = tpu.matmul %98, %100, %cst_132 {dimension_numbers = #tpu.dot_dimension_numbers<[2], [0], [0, 1], [1], [0, 0, 0, 1, 1, 1], [], []>} : vector<4x16x4xbf16>, vector<4x4xbf16>, vector<4x16x4xf32> -> vector<4x16x4xf32>
      %102 = arith.addf %95, %101 : vector<4x16x4xf32>
      %c1_i32_133 = arith.constant 1 : i32
      %103 = arith.addi %82, %c1_i32_133 : i32
      %104 = arith.index_cast %103 : i32 to index
      %c0_134 = arith.constant 0 : index
      %c0_135 = arith.constant 0 : index
      %105 = vector.load %arg9[%104, %c0_134, %c0_135] : memref<12x18x4xbf16, #tpu.memory_space<vmem>>, vector<4x16x4xbf16>
      %c1_136 = arith.constant 1 : index
      %c0_137 = arith.constant 0 : index
      %c0_138 = arith.constant 0 : index
      %c0_139 = arith.constant 0 : index
      %106 = vector.load %arg4[%c1_136, %c0_137, %c0_138, %c0_139] : memref<3x3x4x4xbf16, #tpu.memory_space<vmem>>, vector<1x1x4x4xbf16>
      %107 = vector.shape_cast %106 : vector<1x1x4x4xbf16> to vector<4x4xbf16>
      %cst_140 = arith.constant dense<0.000000e+00> : vector<4x16x4xf32>
      %108 = tpu.matmul %105, %107, %cst_140 {dimension_numbers = #tpu.dot_dimension_numbers<[2], [0], [0, 1], [1], [0, 0, 0, 1, 1, 1], [], []>} : vector<4x16x4xbf16>, vector<4x4xbf16>, vector<4x16x4xf32> -> vector<4x16x4xf32>
      %109 = arith.addf %102, %108 : vector<4x16x4xf32>
      %c1_i32_141 = arith.constant 1 : i32
      %110 = arith.addi %82, %c1_i32_141 : i32
      %111 = arith.index_cast %110 : i32 to index
      %c1_142 = arith.constant 1 : index
      %c0_143 = arith.constant 0 : index
      %112 = vector.load %arg9[%111, %c1_142, %c0_143] : memref<12x18x4xbf16, #tpu.memory_space<vmem>>, vector<4x16x4xbf16>
      %c1_144 = arith.constant 1 : index
      %c1_145 = arith.constant 1 : index
      %c0_146 = arith.constant 0 : index
      %c0_147 = arith.constant 0 : index
      %113 = vector.load %arg4[%c1_144, %c1_145, %c0_146, %c0_147] : memref<3x3x4x4xbf16, #tpu.memory_space<vmem>>, vector<1x1x4x4xbf16>
      %114 = vector.shape_cast %113 : vector<1x1x4x4xbf16> to vector<4x4xbf16>
      %cst_148 = arith.constant dense<0.000000e+00> : vector<4x16x4xf32>
      %115 = tpu.matmul %112, %114, %cst_148 {dimension_numbers = #tpu.dot_dimension_numbers<[2], [0], [0, 1], [1], [0, 0, 0, 1, 1, 1], [], []>} : vector<4x16x4xbf16>, vector<4x4xbf16>, vector<4x16x4xf32> -> vector<4x16x4xf32>
      %116 = arith.addf %109, %115 : vector<4x16x4xf32>
      %c1_i32_149 = arith.constant 1 : i32
      %117 = arith.addi %82, %c1_i32_149 : i32
      %118 = arith.index_cast %117 : i32 to index
      %c2_150 = arith.constant 2 : index
      %c0_151 = arith.constant 0 : index
      %119 = vector.load %arg9[%118, %c2_150, %c0_151] : memref<12x18x4xbf16, #tpu.memory_space<vmem>>, vector<4x16x4xbf16>
      %c1_152 = arith.constant 1 : index
      %c2_153 = arith.constant 2 : index
      %c0_154 = arith.constant 0 : index
      %c0_155 = arith.constant 0 : index
      %120 = vector.load %arg4[%c1_152, %c2_153, %c0_154, %c0_155] : memref<3x3x4x4xbf16, #tpu.memory_space<vmem>>, vector<1x1x4x4xbf16>
      %121 = vector.shape_cast %120 : vector<1x1x4x4xbf16> to vector<4x4xbf16>
      %cst_156 = arith.constant dense<0.000000e+00> : vector<4x16x4xf32>
      %122 = tpu.matmul %119, %121, %cst_156 {dimension_numbers = #tpu.dot_dimension_numbers<[2], [0], [0, 1], [1], [0, 0, 0, 1, 1, 1], [], []>} : vector<4x16x4xbf16>, vector<4x4xbf16>, vector<4x16x4xf32> -> vector<4x16x4xf32>
      %123 = arith.addf %116, %122 : vector<4x16x4xf32>
      %c2_i32_157 = arith.constant 2 : i32
      %124 = arith.addi %82, %c2_i32_157 : i32
      %125 = arith.index_cast %124 : i32 to index
      %c0_158 = arith.constant 0 : index
      %c0_159 = arith.constant 0 : index
      %126 = vector.load %arg9[%125, %c0_158, %c0_159] : memref<12x18x4xbf16, #tpu.memory_space<vmem>>, vector<4x16x4xbf16>
      %c2_160 = arith.constant 2 : index
      %c0_161 = arith.constant 0 : index
      %c0_162 = arith.constant 0 : index
      %c0_163 = arith.constant 0 : index
      %127 = vector.load %arg4[%c2_160, %c0_161, %c0_162, %c0_163] : memref<3x3x4x4xbf16, #tpu.memory_space<vmem>>, vector<1x1x4x4xbf16>
      %128 = vector.shape_cast %127 : vector<1x1x4x4xbf16> to vector<4x4xbf16>
      %cst_164 = arith.constant dense<0.000000e+00> : vector<4x16x4xf32>
      %129 = tpu.matmul %126, %128, %cst_164 {dimension_numbers = #tpu.dot_dimension_numbers<[2], [0], [0, 1], [1], [0, 0, 0, 1, 1, 1], [], []>} : vector<4x16x4xbf16>, vector<4x4xbf16>, vector<4x16x4xf32> -> vector<4x16x4xf32>
      %130 = arith.addf %123, %129 : vector<4x16x4xf32>
      %c2_i32_165 = arith.constant 2 : i32
      %131 = arith.addi %82, %c2_i32_165 : i32
      %132 = arith.index_cast %131 : i32 to index
      %c1_166 = arith.constant 1 : index
      %c0_167 = arith.constant 0 : index
      %133 = vector.load %arg9[%132, %c1_166, %c0_167] : memref<12x18x4xbf16, #tpu.memory_space<vmem>>, vector<4x16x4xbf16>
      %c2_168 = arith.constant 2 : index
      %c1_169 = arith.constant 1 : index
      %c0_170 = arith.constant 0 : index
      %c0_171 = arith.constant 0 : index
      %134 = vector.load %arg4[%c2_168, %c1_169, %c0_170, %c0_171] : memref<3x3x4x4xbf16, #tpu.memory_space<vmem>>, vector<1x1x4x4xbf16>
      %135 = vector.shape_cast %134 : vector<1x1x4x4xbf16> to vector<4x4xbf16>
      %cst_172 = arith.constant dense<0.000000e+00> : vector<4x16x4xf32>
      %136 = tpu.matmul %133, %135, %cst_172 {dimension_numbers = #tpu.dot_dimension_numbers<[2], [0], [0, 1], [1], [0, 0, 0, 1, 1, 1], [], []>} : vector<4x16x4xbf16>, vector<4x4xbf16>, vector<4x16x4xf32> -> vector<4x16x4xf32>
      %137 = arith.addf %130, %136 : vector<4x16x4xf32>
      %c2_i32_173 = arith.constant 2 : i32
      %138 = arith.addi %82, %c2_i32_173 : i32
      %139 = arith.index_cast %138 : i32 to index
      %c2_174 = arith.constant 2 : index
      %c0_175 = arith.constant 0 : index
      %140 = vector.load %arg9[%139, %c2_174, %c0_175] : memref<12x18x4xbf16, #tpu.memory_space<vmem>>, vector<4x16x4xbf16>
      %c2_176 = arith.constant 2 : index
      %c2_177 = arith.constant 2 : index
      %c0_178 = arith.constant 0 : index
      %c0_179 = arith.constant 0 : index
      %141 = vector.load %arg4[%c2_176, %c2_177, %c0_178, %c0_179] : memref<3x3x4x4xbf16, #tpu.memory_space<vmem>>, vector<1x1x4x4xbf16>
      %142 = vector.shape_cast %141 : vector<1x1x4x4xbf16> to vector<4x4xbf16>
      %cst_180 = arith.constant dense<0.000000e+00> : vector<4x16x4xf32>
      %143 = tpu.matmul %140, %142, %cst_180 {dimension_numbers = #tpu.dot_dimension_numbers<[2], [0], [0, 1], [1], [0, 0, 0, 1, 1, 1], [], []>} : vector<4x16x4xbf16>, vector<4x4xbf16>, vector<4x16x4xf32> -> vector<4x16x4xf32>
      %144 = arith.addf %137, %143 : vector<4x16x4xf32>
      %c0_181 = arith.constant 0 : index
      %c0_182 = arith.constant 0 : index
      %145 = vector.load %arg5[%c0_181, %c0_182] : memref<1x4xf32, #tpu.memory_space<vmem>>, vector<1x4xf32>
      %146 = vector.shape_cast %145 : vector<1x4xf32> to vector<1x1x4xf32>
      %147 = vector.broadcast %146 : vector<1x1x4xf32> to vector<4x16x4xf32>
      %148 = arith.addf %144, %147 : vector<4x16x4xf32>
      %cst_183 = arith.constant 0.000000e+00 : f32
      %149 = vector.broadcast %cst_183 : f32 to vector<4x16x4xf32>
      %150 = arith.maximumf %148, %149 : vector<4x16x4xf32>
      %151 = arith.truncf %150 : vector<4x16x4xf32> to vector<4x16x4xbf16>
      %152 = arith.index_cast %82 : i32 to index
      %c1_184 = arith.constant 1 : index
      %c0_185 = arith.constant 0 : index
      %153 = vector.load %arg10[%152, %c1_184, %c0_185] : memref<10x18x4xbf16, #tpu.memory_space<vmem>>, vector<4x16x4xbf16>
      tpu.vector_store %arg10[%152, %c1_184, %c0_185], %151 {strides = array<i32>} : memref<10x18x4xbf16, #tpu.memory_space<vmem>>, vector<4x16x4xbf16>,
    }
    %c2_i32_25 = arith.constant 2 : i32
    %c8_26 = arith.constant 8 : index
    %c0_27 = arith.constant 0 : index
    %c0_28 = arith.constant 0 : index
    %20 = vector.load %arg9[%c8_26, %c0_27, %c0_28] : memref<12x18x4xbf16, #tpu.memory_space<vmem>>, vector<2x16x4xbf16>
    %c0_29 = arith.constant 0 : index
    %c0_30 = arith.constant 0 : index
    %c0_31 = arith.constant 0 : index
    %c0_32 = arith.constant 0 : index
    %21 = vector.load %arg4[%c0_29, %c0_30, %c0_31, %c0_32] : memref<3x3x4x4xbf16, #tpu.memory_space<vmem>>, vector<1x1x4x4xbf16>
    %22 = vector.shape_cast %21 : vector<1x1x4x4xbf16> to vector<4x4xbf16>
    %cst_33 = arith.constant dense<0.000000e+00> : vector<2x16x4xf32>
    %23 = tpu.matmul %20, %22, %cst_33 {dimension_numbers = #tpu.dot_dimension_numbers<[2], [0], [0, 1], [1], [0, 0, 0, 1, 1, 1], [], []>} : vector<2x16x4xbf16>, vector<4x4xbf16>, vector<2x16x4xf32> -> vector<2x16x4xf32>
    %c8_34 = arith.constant 8 : index
    %c1_35 = arith.constant 1 : index
    %c0_36 = arith.constant 0 : index
    %24 = vector.load %arg9[%c8_34, %c1_35, %c0_36] : memref<12x18x4xbf16, #tpu.memory_space<vmem>>, vector<2x16x4xbf16>
    %c0_37 = arith.constant 0 : index
    %c1_38 = arith.constant 1 : index
    %c0_39 = arith.constant 0 : index
    %c0_40 = arith.constant 0 : index
    %25 = vector.load %arg4[%c0_37, %c1_38, %c0_39, %c0_40] : memref<3x3x4x4xbf16, #tpu.memory_space<vmem>>, vector<1x1x4x4xbf16>
    %26 = vector.shape_cast %25 : vector<1x1x4x4xbf16> to vector<4x4xbf16>
    %cst_41 = arith.constant dense<0.000000e+00> : vector<2x16x4xf32>
    %27 = tpu.matmul %24, %26, %cst_41 {dimension_numbers = #tpu.dot_dimension_numbers<[2], [0], [0, 1], [1], [0, 0, 0, 1, 1, 1], [], []>} : vector<2x16x4xbf16>, vector<4x4xbf16>, vector<2x16x4xf32> -> vector<2x16x4xf32>
    %28 = arith.addf %23, %27 : vector<2x16x4xf32>
    %c8_42 = arith.constant 8 : index
    %c2 = arith.constant 2 : index
    %c0_43 = arith.constant 0 : index
    %29 = vector.load %arg9[%c8_42, %c2, %c0_43] : memref<12x18x4xbf16, #tpu.memory_space<vmem>>, vector<2x16x4xbf16>
    %c0_44 = arith.constant 0 : index
    %c2_45 = arith.constant 2 : index
    %c0_46 = arith.constant 0 : index
    %c0_47 = arith.constant 0 : index
    %30 = vector.load %arg4[%c0_44, %c2_45, %c0_46, %c0_47] : memref<3x3x4x4xbf16, #tpu.memory_space<vmem>>, vector<1x1x4x4xbf16>
    %31 = vector.shape_cast %30 : vector<1x1x4x4xbf16> to vector<4x4xbf16>
    %cst_48 = arith.constant dense<0.000000e+00> : vector<2x16x4xf32>
    %32 = tpu.matmul %29, %31, %cst_48 {dimension_numbers = #tpu.dot_dimension_numbers<[2], [0], [0, 1], [1], [0, 0, 0, 1, 1, 1], [], []>} : vector<2x16x4xbf16>, vector<4x4xbf16>, vector<2x16x4xf32> -> vector<2x16x4xf32>
    %33 = arith.addf %28, %32 : vector<2x16x4xf32>
    %c9 = arith.constant 9 : index
    %c0_49 = arith.constant 0 : index
    %c0_50 = arith.constant 0 : index
    %34 = vector.load %arg9[%c9, %c0_49, %c0_50] : memref<12x18x4xbf16, #tpu.memory_space<vmem>>, vector<2x16x4xbf16>
    %c1_51 = arith.constant 1 : index
    %c0_52 = arith.constant 0 : index
    %c0_53 = arith.constant 0 : index
    %c0_54 = arith.constant 0 : index
    %35 = vector.load %arg4[%c1_51, %c0_52, %c0_53, %c0_54] : memref<3x3x4x4xbf16, #tpu.memory_space<vmem>>, vector<1x1x4x4xbf16>
    %36 = vector.shape_cast %35 : vector<1x1x4x4xbf16> to vector<4x4xbf16>
    %cst_55 = arith.constant dense<0.000000e+00> : vector<2x16x4xf32>
    %37 = tpu.matmul %34, %36, %cst_55 {dimension_numbers = #tpu.dot_dimension_numbers<[2], [0], [0, 1], [1], [0, 0, 0, 1, 1, 1], [], []>} : vector<2x16x4xbf16>, vector<4x4xbf16>, vector<2x16x4xf32> -> vector<2x16x4xf32>
    %38 = arith.addf %33, %37 : vector<2x16x4xf32>
    %c9_56 = arith.constant 9 : index
    %c1_57 = arith.constant 1 : index
    %c0_58 = arith.constant 0 : index
    %39 = vector.load %arg9[%c9_56, %c1_57, %c0_58] : memref<12x18x4xbf16, #tpu.memory_space<vmem>>, vector<2x16x4xbf16>
    %c1_59 = arith.constant 1 : index
    %c1_60 = arith.constant 1 : index
    %c0_61 = arith.constant 0 : index
    %c0_62 = arith.constant 0 : index
    %40 = vector.load %arg4[%c1_59, %c1_60, %c0_61, %c0_62] : memref<3x3x4x4xbf16, #tpu.memory_space<vmem>>, vector<1x1x4x4xbf16>
    %41 = vector.shape_cast %40 : vector<1x1x4x4xbf16> to vector<4x4xbf16>
    %cst_63 = arith.constant dense<0.000000e+00> : vector<2x16x4xf32>
    %42 = tpu.matmul %39, %41, %cst_63 {dimension_numbers = #tpu.dot_dimension_numbers<[2], [0], [0, 1], [1], [0, 0, 0, 1, 1, 1], [], []>} : vector<2x16x4xbf16>, vector<4x4xbf16>, vector<2x16x4xf32> -> vector<2x16x4xf32>
    %43 = arith.addf %38, %42 : vector<2x16x4xf32>
    %c9_64 = arith.constant 9 : index
    %c2_65 = arith.constant 2 : index
    %c0_66 = arith.constant 0 : index
    %44 = vector.load %arg9[%c9_64, %c2_65, %c0_66] : memref<12x18x4xbf16, #tpu.memory_space<vmem>>, vector<2x16x4xbf16>
    %c1_67 = arith.constant 1 : index
    %c2_68 = arith.constant 2 : index
    %c0_69 = arith.constant 0 : index
    %c0_70 = arith.constant 0 : index
    %45 = vector.load %arg4[%c1_67, %c2_68, %c0_69, %c0_70] : memref<3x3x4x4xbf16, #tpu.memory_space<vmem>>, vector<1x1x4x4xbf16>
    %46 = vector.shape_cast %45 : vector<1x1x4x4xbf16> to vector<4x4xbf16>
    %cst_71 = arith.constant dense<0.000000e+00> : vector<2x16x4xf32>
    %47 = tpu.matmul %44, %46, %cst_71 {dimension_numbers = #tpu.dot_dimension_numbers<[2], [0], [0, 1], [1], [0, 0, 0, 1, 1, 1], [], []>} : vector<2x16x4xbf16>, vector<4x4xbf16>, vector<2x16x4xf32> -> vector<2x16x4xf32>
    %48 = arith.addf %43, %47 : vector<2x16x4xf32>
    %c10 = arith.constant 10 : index
    %c0_72 = arith.constant 0 : index
    %c0_73 = arith.constant 0 : index
    %49 = vector.load %arg9[%c10, %c0_72, %c0_73] : memref<12x18x4xbf16, #tpu.memory_space<vmem>>, vector<2x16x4xbf16>
    %c2_74 = arith.constant 2 : index
    %c0_75 = arith.constant 0 : index
    %c0_76 = arith.constant 0 : index
    %c0_77 = arith.constant 0 : index
    %50 = vector.load %arg4[%c2_74, %c0_75, %c0_76, %c0_77] : memref<3x3x4x4xbf16, #tpu.memory_space<vmem>>, vector<1x1x4x4xbf16>
    %51 = vector.shape_cast %50 : vector<1x1x4x4xbf16> to vector<4x4xbf16>
    %cst_78 = arith.constant dense<0.000000e+00> : vector<2x16x4xf32>
    %52 = tpu.matmul %49, %51, %cst_78 {dimension_numbers = #tpu.dot_dimension_numbers<[2], [0], [0, 1], [1], [0, 0, 0, 1, 1, 1], [], []>} : vector<2x16x4xbf16>, vector<4x4xbf16>, vector<2x16x4xf32> -> vector<2x16x4xf32>
    %53 = arith.addf %48, %52 : vector<2x16x4xf32>
    %c10_79 = arith.constant 10 : index
    %c1_80 = arith.constant 1 : index
    %c0_81 = arith.constant 0 : index
    %54 = vector.load %arg9[%c10_79, %c1_80, %c0_81] : memref<12x18x4xbf16, #tpu.memory_space<vmem>>, vector<2x16x4xbf16>
    %c2_82 = arith.constant 2 : index
    %c1_83 = arith.constant 1 : index
    %c0_84 = arith.constant 0 : index
    %c0_85 = arith.constant 0 : index
    %55 = vector.load %arg4[%c2_82, %c1_83, %c0_84, %c0_85] : memref<3x3x4x4xbf16, #tpu.memory_space<vmem>>, vector<1x1x4x4xbf16>
    %56 = vector.shape_cast %55 : vector<1x1x4x4xbf16> to vector<4x4xbf16>
    %cst_86 = arith.constant dense<0.000000e+00> : vector<2x16x4xf32>
    %57 = tpu.matmul %54, %56, %cst_86 {dimension_numbers = #tpu.dot_dimension_numbers<[2], [0], [0, 1], [1], [0, 0, 0, 1, 1, 1], [], []>} : vector<2x16x4xbf16>, vector<4x4xbf16>, vector<2x16x4xf32> -> vector<2x16x4xf32>
    %58 = arith.addf %53, %57 : vector<2x16x4xf32>
    %c10_87 = arith.constant 10 : index
    %c2_88 = arith.constant 2 : index
    %c0_89 = arith.constant 0 : index
    %59 = vector.load %arg9[%c10_87, %c2_88, %c0_89] : memref<12x18x4xbf16, #tpu.memory_space<vmem>>, vector<2x16x4xbf16>
    %c2_90 = arith.constant 2 : index
    %c2_91 = arith.constant 2 : index
    %c0_92 = arith.constant 0 : index
    %c0_93 = arith.constant 0 : index
    %60 = vector.load %arg4[%c2_90, %c2_91, %c0_92, %c0_93] : memref<3x3x4x4xbf16, #tpu.memory_space<vmem>>, vector<1x1x4x4xbf16>
    %61 = vector.shape_cast %60 : vector<1x1x4x4xbf16> to vector<4x4xbf16>
    %cst_94 = arith.constant dense<0.000000e+00> : vector<2x16x4xf32>
    %62 = tpu.matmul %59, %61, %cst_94 {dimension_numbers = #tpu.dot_dimension_numbers<[2], [0], [0, 1], [1], [0, 0, 0, 1, 1, 1], [], []>} : vector<2x16x4xbf16>, vector<4x4xbf16>, vector<2x16x4xf32> -> vector<2x16x4xf32>
    %63 = arith.addf %58, %62 : vector<2x16x4xf32>
    %c0_95 = arith.constant 0 : index
    %c0_96 = arith.constant 0 : index
    %64 = vector.load %arg5[%c0_95, %c0_96] : memref<1x4xf32, #tpu.memory_space<vmem>>, vector<1x4xf32>
    %65 = vector.shape_cast %64 : vector<1x4xf32> to vector<1x1x4xf32>
    %66 = vector.broadcast %65 : vector<1x1x4xf32> to vector<2x16x4xf32>
    %67 = arith.addf %63, %66 : vector<2x16x4xf32>
    %cst_97 = arith.constant 0.000000e+00 : f32
    %68 = vector.broadcast %cst_97 : f32 to vector<2x16x4xf32>
    %69 = arith.maximumf %67, %68 : vector<2x16x4xf32>
    %70 = arith.truncf %69 : vector<2x16x4xf32> to vector<2x16x4xbf16>
    %c8_98 = arith.constant 8 : index
    %c1_99 = arith.constant 1 : index
    %c0_100 = arith.constant 0 : index
    %71 = vector.load %arg10[%c8_98, %c1_99, %c0_100] : memref<10x18x4xbf16, #tpu.memory_space<vmem>>, vector<2x16x4xbf16>
    tpu.vector_store %arg10[%c8_98, %c1_99, %c0_100], %70 {strides = array<i32>} : memref<10x18x4xbf16, #tpu.memory_space<vmem>>, vector<2x16x4xbf16>,
    %c0_i32_101 = arith.constant 0 : i32
    %72 = arith.cmpi eq, %0, %c0_i32_101 : i32
    %73 = arith.extui %72 : i1 to i32
    %c0_i32_102 = arith.constant 0 : i32
    %74 = arith.cmpi ne, %73, %c0_i32_102 : i32
    scf.if %74 {
      %cst_109 = arith.constant 0.000000e+00 : bf16
      %81 = vector.broadcast %cst_109 : bf16 to vector<1x18x4xbf16>
      %c0_110 = arith.constant 0 : index
      %c0_111 = arith.constant 0 : index
      %c0_112 = arith.constant 0 : index
      %82 = vector.load %arg10[%c0_110, %c0_111, %c0_112] : memref<10x18x4xbf16, #tpu.memory_space<vmem>>, vector<1x18x4xbf16>
      tpu.vector_store %arg10[%c0_110, %c0_111, %c0_112], %81 {strides = array<i32>} : memref<10x18x4xbf16, #tpu.memory_space<vmem>>, vector<1x18x4xbf16>,
    } else {
    }
    %c16_i32 = arith.constant 16 : i32
    %75 = arith.subi %c16_i32, %0 : i32
    %c1_i32_103 = arith.constant 1 : i32
    %76 = arith.addi %75, %c1_i32_103 : i32
    %c10_i32 = arith.constant 10 : i32
    %77 = arith.cmpi slt, %76, %c10_i32 : i32
    %78 = arith.extui %77 : i1 to i32
    %c0_i32_104 = arith.constant 0 : i32
    %79 = arith.cmpi ne, %78, %c0_i32_104 : i32
    scf.if %79 {
      %cst_109 = arith.constant 0.000000e+00 : bf16
      %81 = vector.broadcast %cst_109 : bf16 to vector<1x18x4xbf16>
      %82 = arith.index_cast %76 : i32 to index
      %c0_110 = arith.constant 0 : index
      %c0_111 = arith.constant 0 : index
      %83 = vector.load %arg10[%82, %c0_110, %c0_111] : memref<10x18x4xbf16, #tpu.memory_space<vmem>>, vector<1x18x4xbf16>
      tpu.vector_store %arg10[%82, %c0_110, %c0_111], %81 {strides = array<i32>} : memref<10x18x4xbf16, #tpu.memory_space<vmem>>, vector<1x18x4xbf16>,
    } else {
    }
    %c0_i32_105 = arith.constant 0 : i32
    %c2_i32_106 = arith.constant 2 : i32
    %80 = arith.addi %c0_i32_105, %c2_i32_106 : i32
    %c1_i32_107 = arith.constant 1 : i32
    scf.for %arg11 = %c0_i32_105 to %80 step %c1_i32_107  : i32 {
      %c4_i32 = arith.constant 4 : i32
      %81 = arith.muli %arg11, %c4_i32 : i32
      %82 = tpu.assume_multiple %81, 4 : i32
      %c0_i32_109 = arith.constant 0 : i32
      %83 = arith.addi %82, %c0_i32_109 : i32
      %84 = arith.index_cast %83 : i32 to index
      %c0_110 = arith.constant 0 : index
      %c0_111 = arith.constant 0 : index
      %85 = vector.load %arg10[%84, %c0_110, %c0_111] : memref<10x18x4xbf16, #tpu.memory_space<vmem>>, vector<4x16x4xbf16>
      %c0_112 = arith.constant 0 : index
      %c0_113 = arith.constant 0 : index
      %c0_114 = arith.constant 0 : index
      %c0_115 = arith.constant 0 : index
      %86 = vector.load %arg6[%c0_112, %c0_113, %c0_114, %c0_115] : memref<3x3x4x4xbf16, #tpu.memory_space<vmem>>, vector<1x1x4x4xbf16>
      %87 = vector.shape_cast %86 : vector<1x1x4x4xbf16> to vector<4x4xbf16>
      %cst_116 = arith.constant dense<0.000000e+00> : vector<4x16x4xf32>
      %88 = tpu.matmul %85, %87, %cst_116 {dimension_numbers = #tpu.dot_dimension_numbers<[2], [0], [0, 1], [1], [0, 0, 0, 1, 1, 1], [], []>} : vector<4x16x4xbf16>, vector<4x4xbf16>, vector<4x16x4xf32> -> vector<4x16x4xf32>
      %c0_i32_117 = arith.constant 0 : i32
      %89 = arith.addi %82, %c0_i32_117 : i32
      %90 = arith.index_cast %89 : i32 to index
      %c1_118 = arith.constant 1 : index
      %c0_119 = arith.constant 0 : index
      %91 = vector.load %arg10[%90, %c1_118, %c0_119] : memref<10x18x4xbf16, #tpu.memory_space<vmem>>, vector<4x16x4xbf16>
      %c0_120 = arith.constant 0 : index
      %c1_121 = arith.constant 1 : index
      %c0_122 = arith.constant 0 : index
      %c0_123 = arith.constant 0 : index
      %92 = vector.load %arg6[%c0_120, %c1_121, %c0_122, %c0_123] : memref<3x3x4x4xbf16, #tpu.memory_space<vmem>>, vector<1x1x4x4xbf16>
      %93 = vector.shape_cast %92 : vector<1x1x4x4xbf16> to vector<4x4xbf16>
      %cst_124 = arith.constant dense<0.000000e+00> : vector<4x16x4xf32>
      %94 = tpu.matmul %91, %93, %cst_124 {dimension_numbers = #tpu.dot_dimension_numbers<[2], [0], [0, 1], [1], [0, 0, 0, 1, 1, 1], [], []>} : vector<4x16x4xbf16>, vector<4x4xbf16>, vector<4x16x4xf32> -> vector<4x16x4xf32>
      %95 = arith.addf %88, %94 : vector<4x16x4xf32>
      %c0_i32_125 = arith.constant 0 : i32
      %96 = arith.addi %82, %c0_i32_125 : i32
      %97 = arith.index_cast %96 : i32 to index
      %c2_126 = arith.constant 2 : index
      %c0_127 = arith.constant 0 : index
      %98 = vector.load %arg10[%97, %c2_126, %c0_127] : memref<10x18x4xbf16, #tpu.memory_space<vmem>>, vector<4x16x4xbf16>
      %c0_128 = arith.constant 0 : index
      %c2_129 = arith.constant 2 : index
      %c0_130 = arith.constant 0 : index
      %c0_131 = arith.constant 0 : index
      %99 = vector.load %arg6[%c0_128, %c2_129, %c0_130, %c0_131] : memref<3x3x4x4xbf16, #tpu.memory_space<vmem>>, vector<1x1x4x4xbf16>
      %100 = vector.shape_cast %99 : vector<1x1x4x4xbf16> to vector<4x4xbf16>
      %cst_132 = arith.constant dense<0.000000e+00> : vector<4x16x4xf32>
      %101 = tpu.matmul %98, %100, %cst_132 {dimension_numbers = #tpu.dot_dimension_numbers<[2], [0], [0, 1], [1], [0, 0, 0, 1, 1, 1], [], []>} : vector<4x16x4xbf16>, vector<4x4xbf16>, vector<4x16x4xf32> -> vector<4x16x4xf32>
      %102 = arith.addf %95, %101 : vector<4x16x4xf32>
      %c1_i32_133 = arith.constant 1 : i32
      %103 = arith.addi %82, %c1_i32_133 : i32
      %104 = arith.index_cast %103 : i32 to index
      %c0_134 = arith.constant 0 : index
      %c0_135 = arith.constant 0 : index
      %105 = vector.load %arg10[%104, %c0_134, %c0_135] : memref<10x18x4xbf16, #tpu.memory_space<vmem>>, vector<4x16x4xbf16>
      %c1_136 = arith.constant 1 : index
      %c0_137 = arith.constant 0 : index
      %c0_138 = arith.constant 0 : index
      %c0_139 = arith.constant 0 : index
      %106 = vector.load %arg6[%c1_136, %c0_137, %c0_138, %c0_139] : memref<3x3x4x4xbf16, #tpu.memory_space<vmem>>, vector<1x1x4x4xbf16>
      %107 = vector.shape_cast %106 : vector<1x1x4x4xbf16> to vector<4x4xbf16>
      %cst_140 = arith.constant dense<0.000000e+00> : vector<4x16x4xf32>
      %108 = tpu.matmul %105, %107, %cst_140 {dimension_numbers = #tpu.dot_dimension_numbers<[2], [0], [0, 1], [1], [0, 0, 0, 1, 1, 1], [], []>} : vector<4x16x4xbf16>, vector<4x4xbf16>, vector<4x16x4xf32> -> vector<4x16x4xf32>
      %109 = arith.addf %102, %108 : vector<4x16x4xf32>
      %c1_i32_141 = arith.constant 1 : i32
      %110 = arith.addi %82, %c1_i32_141 : i32
      %111 = arith.index_cast %110 : i32 to index
      %c1_142 = arith.constant 1 : index
      %c0_143 = arith.constant 0 : index
      %112 = vector.load %arg10[%111, %c1_142, %c0_143] : memref<10x18x4xbf16, #tpu.memory_space<vmem>>, vector<4x16x4xbf16>
      %c1_144 = arith.constant 1 : index
      %c1_145 = arith.constant 1 : index
      %c0_146 = arith.constant 0 : index
      %c0_147 = arith.constant 0 : index
      %113 = vector.load %arg6[%c1_144, %c1_145, %c0_146, %c0_147] : memref<3x3x4x4xbf16, #tpu.memory_space<vmem>>, vector<1x1x4x4xbf16>
      %114 = vector.shape_cast %113 : vector<1x1x4x4xbf16> to vector<4x4xbf16>
      %cst_148 = arith.constant dense<0.000000e+00> : vector<4x16x4xf32>
      %115 = tpu.matmul %112, %114, %cst_148 {dimension_numbers = #tpu.dot_dimension_numbers<[2], [0], [0, 1], [1], [0, 0, 0, 1, 1, 1], [], []>} : vector<4x16x4xbf16>, vector<4x4xbf16>, vector<4x16x4xf32> -> vector<4x16x4xf32>
      %116 = arith.addf %109, %115 : vector<4x16x4xf32>
      %c1_i32_149 = arith.constant 1 : i32
      %117 = arith.addi %82, %c1_i32_149 : i32
      %118 = arith.index_cast %117 : i32 to index
      %c2_150 = arith.constant 2 : index
      %c0_151 = arith.constant 0 : index
      %119 = vector.load %arg10[%118, %c2_150, %c0_151] : memref<10x18x4xbf16, #tpu.memory_space<vmem>>, vector<4x16x4xbf16>
      %c1_152 = arith.constant 1 : index
      %c2_153 = arith.constant 2 : index
      %c0_154 = arith.constant 0 : index
      %c0_155 = arith.constant 0 : index
      %120 = vector.load %arg6[%c1_152, %c2_153, %c0_154, %c0_155] : memref<3x3x4x4xbf16, #tpu.memory_space<vmem>>, vector<1x1x4x4xbf16>
      %121 = vector.shape_cast %120 : vector<1x1x4x4xbf16> to vector<4x4xbf16>
      %cst_156 = arith.constant dense<0.000000e+00> : vector<4x16x4xf32>
      %122 = tpu.matmul %119, %121, %cst_156 {dimension_numbers = #tpu.dot_dimension_numbers<[2], [0], [0, 1], [1], [0, 0, 0, 1, 1, 1], [], []>} : vector<4x16x4xbf16>, vector<4x4xbf16>, vector<4x16x4xf32> -> vector<4x16x4xf32>
      %123 = arith.addf %116, %122 : vector<4x16x4xf32>
      %c2_i32_157 = arith.constant 2 : i32
      %124 = arith.addi %82, %c2_i32_157 : i32
      %125 = arith.index_cast %124 : i32 to index
      %c0_158 = arith.constant 0 : index
      %c0_159 = arith.constant 0 : index
      %126 = vector.load %arg10[%125, %c0_158, %c0_159] : memref<10x18x4xbf16, #tpu.memory_space<vmem>>, vector<4x16x4xbf16>
      %c2_160 = arith.constant 2 : index
      %c0_161 = arith.constant 0 : index
      %c0_162 = arith.constant 0 : index
      %c0_163 = arith.constant 0 : index
      %127 = vector.load %arg6[%c2_160, %c0_161, %c0_162, %c0_163] : memref<3x3x4x4xbf16, #tpu.memory_space<vmem>>, vector<1x1x4x4xbf16>
      %128 = vector.shape_cast %127 : vector<1x1x4x4xbf16> to vector<4x4xbf16>
      %cst_164 = arith.constant dense<0.000000e+00> : vector<4x16x4xf32>
      %129 = tpu.matmul %126, %128, %cst_164 {dimension_numbers = #tpu.dot_dimension_numbers<[2], [0], [0, 1], [1], [0, 0, 0, 1, 1, 1], [], []>} : vector<4x16x4xbf16>, vector<4x4xbf16>, vector<4x16x4xf32> -> vector<4x16x4xf32>
      %130 = arith.addf %123, %129 : vector<4x16x4xf32>
      %c2_i32_165 = arith.constant 2 : i32
      %131 = arith.addi %82, %c2_i32_165 : i32
      %132 = arith.index_cast %131 : i32 to index
      %c1_166 = arith.constant 1 : index
      %c0_167 = arith.constant 0 : index
      %133 = vector.load %arg10[%132, %c1_166, %c0_167] : memref<10x18x4xbf16, #tpu.memory_space<vmem>>, vector<4x16x4xbf16>
      %c2_168 = arith.constant 2 : index
      %c1_169 = arith.constant 1 : index
      %c0_170 = arith.constant 0 : index
      %c0_171 = arith.constant 0 : index
      %134 = vector.load %arg6[%c2_168, %c1_169, %c0_170, %c0_171] : memref<3x3x4x4xbf16, #tpu.memory_space<vmem>>, vector<1x1x4x4xbf16>
      %135 = vector.shape_cast %134 : vector<1x1x4x4xbf16> to vector<4x4xbf16>
      %cst_172 = arith.constant dense<0.000000e+00> : vector<4x16x4xf32>
      %136 = tpu.matmul %133, %135, %cst_172 {dimension_numbers = #tpu.dot_dimension_numbers<[2], [0], [0, 1], [1], [0, 0, 0, 1, 1, 1], [], []>} : vector<4x16x4xbf16>, vector<4x4xbf16>, vector<4x16x4xf32> -> vector<4x16x4xf32>
      %137 = arith.addf %130, %136 : vector<4x16x4xf32>
      %c2_i32_173 = arith.constant 2 : i32
      %138 = arith.addi %82, %c2_i32_173 : i32
      %139 = arith.index_cast %138 : i32 to index
      %c2_174 = arith.constant 2 : index
      %c0_175 = arith.constant 0 : index
      %140 = vector.load %arg10[%139, %c2_174, %c0_175] : memref<10x18x4xbf16, #tpu.memory_space<vmem>>, vector<4x16x4xbf16>
      %c2_176 = arith.constant 2 : index
      %c2_177 = arith.constant 2 : index
      %c0_178 = arith.constant 0 : index
      %c0_179 = arith.constant 0 : index
      %141 = vector.load %arg6[%c2_176, %c2_177, %c0_178, %c0_179] : memref<3x3x4x4xbf16, #tpu.memory_space<vmem>>, vector<1x1x4x4xbf16>
      %142 = vector.shape_cast %141 : vector<1x1x4x4xbf16> to vector<4x4xbf16>
      %cst_180 = arith.constant dense<0.000000e+00> : vector<4x16x4xf32>
      %143 = tpu.matmul %140, %142, %cst_180 {dimension_numbers = #tpu.dot_dimension_numbers<[2], [0], [0, 1], [1], [0, 0, 0, 1, 1, 1], [], []>} : vector<4x16x4xbf16>, vector<4x4xbf16>, vector<4x16x4xf32> -> vector<4x16x4xf32>
      %144 = arith.addf %137, %143 : vector<4x16x4xf32>
      %c0_181 = arith.constant 0 : index
      %c0_182 = arith.constant 0 : index
      %145 = vector.load %arg7[%c0_181, %c0_182] : memref<1x4xf32, #tpu.memory_space<vmem>>, vector<1x4xf32>
      %146 = vector.shape_cast %145 : vector<1x4xf32> to vector<1x1x4xf32>
      %147 = vector.broadcast %146 : vector<1x1x4xf32> to vector<4x16x4xf32>
      %148 = arith.addf %144, %147 : vector<4x16x4xf32>
      %c1_i32_183 = arith.constant 1 : i32
      %149 = arith.cmpi slt, %arg11, %c1_i32_183 : i32
      %150 = arith.extui %149 : i1 to i32
      %c0_i32_184 = arith.constant 0 : i32
      %151 = arith.cmpi ne, %150, %c0_i32_184 : i32
      scf.if %151 {
        %c2_i32_187 = arith.constant 2 : i32
        %155 = arith.addi %82, %c2_i32_187 : i32
        %c0_188 = arith.constant 0 : index
        %156 = arith.index_cast %155 : i32 to index
        %c0_189 = arith.constant 0 : index
        %c0_190 = arith.constant 0 : index
        %157 = vector.load %arg2[%c0_188, %156, %c0_189, %c0_190] : memref<1x8x16x4xf32, #tpu.memory_space<vmem>>, vector<1x4x16x4xf32>
        %158 = vector.shape_cast %157 : vector<1x4x16x4xf32> to vector<4x16x4xf32>
        %159 = arith.addf %148, %158 : vector<4x16x4xf32>
        %c0_191 = arith.constant 0 : index
        %160 = arith.index_cast %82 : i32 to index
        %c0_192 = arith.constant 0 : index
        %c0_193 = arith.constant 0 : index
        %161 = vector.load %arg8[%c0_191, %160, %c0_192, %c0_193] : memref<1x8x16x4xf32, #tpu.memory_space<vmem>>, vector<1x4x16x4xf32>
        %162 = vector.shape_cast %161 : vector<1x4x16x4xf32> to vector<4x16x4xf32>
        %163 = vector.shape_cast %159 : vector<4x16x4xf32> to vector<1x4x16x4xf32>
        tpu.vector_store %arg8[%c0_191, %160, %c0_192, %c0_193], %163 {strides = array<i32>} : memref<1x8x16x4xf32, #tpu.memory_space<vmem>>, vector<1x4x16x4xf32>,
      } else {
      }
      %c1_i32_185 = arith.constant 1 : i32
      %152 = arith.cmpi sge, %arg11, %c1_i32_185 : i32
      %153 = arith.extui %152 : i1 to i32
      %c0_i32_186 = arith.constant 0 : i32
      %154 = arith.cmpi ne, %153, %c0_i32_186 : i32
      scf.if %154 {
        %155 = vector.extract_strided_slice %148 {offsets = [0, 0, 0], sizes = [2, 16, 4], strides = [1, 1, 1]} : vector<4x16x4xf32> to vector<2x16x4xf32>
        %c2_i32_187 = arith.constant 2 : i32
        %156 = arith.addi %82, %c2_i32_187 : i32
        %c0_188 = arith.constant 0 : index
        %157 = arith.index_cast %156 : i32 to index
        %c0_189 = arith.constant 0 : index
        %c0_190 = arith.constant 0 : index
        %158 = vector.load %arg2[%c0_188, %157, %c0_189, %c0_190] : memref<1x8x16x4xf32, #tpu.memory_space<vmem>>, vector<1x2x16x4xf32>
        %159 = vector.shape_cast %158 : vector<1x2x16x4xf32> to vector<2x16x4xf32>
        %160 = arith.addf %155, %159 : vector<2x16x4xf32>
        %c0_191 = arith.constant 0 : index
        %161 = arith.index_cast %82 : i32 to index
        %c0_192 = arith.constant 0 : index
        %c0_193 = arith.constant 0 : index
        %162 = vector.load %arg8[%c0_191, %161, %c0_192, %c0_193] : memref<1x8x16x4xf32, #tpu.memory_space<vmem>>, vector<1x2x16x4xf32>
        %163 = vector.shape_cast %162 : vector<1x2x16x4xf32> to vector<2x16x4xf32>
        %164 = vector.shape_cast %160 : vector<2x16x4xf32> to vector<1x2x16x4xf32>
        tpu.vector_store %arg8[%c0_191, %161, %c0_192, %c0_193], %164 {strides = array<i32>} : memref<1x8x16x4xf32, #tpu.memory_space<vmem>>, vector<1x2x16x4xf32>,
        %165 = vector.extract_strided_slice %148 {offsets = [2, 0, 0], sizes = [2, 16, 4], strides = [1, 1, 1]} : vector<4x16x4xf32> to vector<2x16x4xf32>
        %c0_194 = arith.constant 0 : index
        %c0_195 = arith.constant 0 : index
        %c0_196 = arith.constant 0 : index
        %c0_197 = arith.constant 0 : index
        %166 = vector.load %arg3[%c0_194, %c0_195, %c0_196, %c0_197] : memref<1x4x16x4xf32, #tpu.memory_space<vmem>>, vector<1x2x16x4xf32>
        %167 = vector.shape_cast %166 : vector<1x2x16x4xf32> to vector<2x16x4xf32>
        %168 = arith.addf %165, %167 : vector<2x16x4xf32>
        %c4_i32_198 = arith.constant 4 : i32
        %169 = arith.addi %82, %c4_i32_198 : i32
        %c2_i32_199 = arith.constant 2 : i32
        %170 = arith.subi %169, %c2_i32_199 : i32
        %c0_200 = arith.constant 0 : index
        %171 = arith.index_cast %170 : i32 to index
        %c0_201 = arith.constant 0 : index
        %c0_202 = arith.constant 0 : index
        %172 = vector.load %arg8[%c0_200, %171, %c0_201, %c0_202] : memref<1x8x16x4xf32, #tpu.memory_space<vmem>>, vector<1x2x16x4xf32>
        %173 = vector.shape_cast %172 : vector<1x2x16x4xf32> to vector<2x16x4xf32>
        %174 = vector.shape_cast %168 : vector<2x16x4xf32> to vector<1x2x16x4xf32>
        tpu.vector_store %arg8[%c0_200, %171, %c0_201, %c0_202], %174 {strides = array<i32>} : memref<1x8x16x4xf32, #tpu.memory_space<vmem>>, vector<1x2x16x4xf32>,
      } else {
      }
    }
    %c2_i32_108 = arith.constant 2 : i32
    return
  }
  func.func @transform_0(%arg0: i32, %arg1: i32) -> (i32, i32, i32, i32) {
    %c0_i32 = arith.constant 0 : i32
    %c0_i32_0 = arith.constant 0 : i32
    %c0_i32_1 = arith.constant 0 : i32
    return %arg0, %arg1, %c0_i32, %c0_i32_0 : i32, i32, i32, i32
  }
  func.func @transform_1(%arg0: i32, %arg1: i32) -> (i32, i32, i32, i32) {
    %c1_i32 = arith.constant 1 : i32
    %0 = arith.addi %arg1, %c1_i32 : i32
    %c2_i32 = arith.constant 2 : i32
    %1 = arith.muli %0, %c2_i32 : i32
    %c0_i32 = arith.constant 0 : i32
    %c0_i32_0 = arith.constant 0 : i32
    %c0_i32_1 = arith.constant 0 : i32
    return %arg0, %1, %c0_i32, %c0_i32_0 : i32, i32, i32, i32
  }
  func.func @transform_2(%arg0: i32, %arg1: i32) -> (i32, i32, i32, i32) {
    %c0_i32 = arith.constant 0 : i32
    %c0_i32_0 = arith.constant 0 : i32
    %c0_i32_1 = arith.constant 0 : i32
    %c0_i32_2 = arith.constant 0 : i32
    %c0_i32_3 = arith.constant 0 : i32
    return %c0_i32, %c0_i32_0, %c0_i32_1, %c0_i32_2 : i32, i32, i32, i32
  }
  func.func @transform_3(%arg0: i32, %arg1: i32) -> (i32, i32) {
    %c0_i32 = arith.constant 0 : i32
    %c0_i32_0 = arith.constant 0 : i32
    %c0_i32_1 = arith.constant 0 : i32
    return %c0_i32, %c0_i32_0 : i32, i32
  }
  func.func @transform_4(%arg0: i32, %arg1: i32) -> (i32, i32, i32, i32) {
    %c0_i32 = arith.constant 0 : i32
    %c0_i32_0 = arith.constant 0 : i32
    %c0_i32_1 = arith.constant 0 : i32
    %c0_i32_2 = arith.constant 0 : i32
    %c0_i32_3 = arith.constant 0 : i32
    return %c0_i32, %c0_i32_0, %c0_i32_1, %c0_i32_2 : i32, i32, i32, i32
  }
  func.func @transform_5(%arg0: i32, %arg1: i32) -> (i32, i32) {
    %c0_i32 = arith.constant 0 : i32
    %c0_i32_0 = arith.constant 0 : i32
    %c0_i32_1 = arith.constant 0 : i32
    return %c0_i32, %c0_i32_0 : i32, i32
  }
  func.func @transform_6(%arg0: i32, %arg1: i32) -> (i32, i32, i32, i32) {
    %c0_i32 = arith.constant 0 : i32
    %c0_i32_0 = arith.constant 0 : i32
    %c0_i32_1 = arith.constant 0 : i32
    return %arg0, %arg1, %c0_i32, %c0_i32_0 : i32, i32, i32, i32
  }
}

</mosaic_0001>

<llo_original>
// kernel: tpu_custom_call.1
$region0: #{tpu_custom_call.1}
  #allocation0 [shape = 'u32[]', space=smem, size = 0x4, offset = 0x4, fixed_abs, tag = 'smem constant byte address 0x4 - core index']
  #allocation1 [shape = 'u32[144,128]{1,0:T(1,128)}', space=vmem, size = 0x12000, scoped, tag = 'internal scratch']
  #allocation2 [shape = 'bf16[12,18,4]{2,1,0:T(8,128)(2,1)}', space=vmem, size = 0x12000, scoped, tag = 'scratch operand']
  #allocation3 [shape = 'bf16[10,18,4]{2,1,0:T(8,128)(2,1)}', space=vmem, size = 0xf000, scoped, tag = 'scratch operand']
  %s0 = inlined_call_operand.vmem [shape: f32[2,20,16,4], index: 0, kind: input, shape index: {}]
  %s1 = inlined_call_operand.vmem [shape: f32[2,20,16,4], index: 1, kind: input, shape index: {}]
  %s2 = inlined_call_operand.vmem [shape: bf16[3,3,4,4], index: 2, kind: input, shape index: {}]
  %s3 = inlined_call_operand.vmem [shape: f32[1,4], index: 3, kind: input, shape index: {}]
  %s4 = inlined_call_operand.vmem [shape: bf16[3,3,4,4], index: 4, kind: input, shape index: {}]
  %s5 = inlined_call_operand.vmem [shape: f32[1,4], index: 5, kind: input, shape index: {}]
  %s6 = inlined_call_operand.vmem [shape: f32[2,16,16,4], index: 6, kind: output, shape index: {}]
  %s7 = sld [smem:[#allocation0]]
  $region87: #{tpu_custom_call.1} parent=0
    _
  %s9 = ssub.s32 1, %s7
  %s10 = scalar_select 0, %s9, %s7
  loop: start=0, step=1, limit=6
  $region2: #{tpu_custom_call.1} parent=0 // loop_pre_header
    _
  $region3: #{tpu_custom_call.1} parent=0 // loop_header
    %s12 = sphi 0, %s16
    %p13 = scmp.ge.s32.totalorder %s12, 6
    %s19 = sphi 0, %s31
    %s20 = sphi 0, %s27
    %s21 = sphi 0, %s19
    %s22 = sphi 0, %s20
    %s23 = sphi 0, %s21
    %s24 = sphi 0, %s22
    %s36 = sphi 0, %s38
    %s39 = sphi 0, %s36
    %s40 = sphi 0, %s39
    %s56 = sphi 0, %s40
    %s68 = sphi 0, %s70
    %s71 = sphi 0, %s68
    %s72 = sphi 0, %s71
    %s88 = sphi 0, %s72
    %s92 = sphi 0, %s92
    %s94 = sphi 0, %s92
    %s95 = sphi 0, %s94
    %s109 = sphi 0, %s95
    %s113 = sphi 0, %s113
    %s115 = sphi 0, %s113
    %s116 = sphi 0, %s115
    %s130 = sphi 0, %s116
    %s134 = sphi 0, %s134
    %s136 = sphi 0, %s134
    %s137 = sphi 0, %s136
    %s151 = sphi 0, %s137
    %s155 = sphi 0, %s155
    %s157 = sphi 0, %s155
    %s158 = sphi 0, %s157
    %s172 = sphi 0, %s158
    %s180 = sphi 0, %s182
    %s183 = sphi 0, %s180
    %s184 = sphi 0, %s183
    %s200 = sphi 0, %s184
  $region4: #{tpu_custom_call.1} parent=0 // loop_header_branch
    %15 = sbr.rel (%p13) target = $region8
  $region5: #{tpu_custom_call.1} parent=0 // loop_body
    %s17 = ssub.s32 %s12, 1
    %s18 = ssub.s32 %s12, 2
    %s25 = sadd.s32 1, %s20
    %p26 = scmp.ge.s32.totalorder %s25, 2
    %s27 = scalar_select %p26, 0, %s25
    %s28 = sadd.s32 1, %s19
    %s29 = scalar_select %p26, %s28, %s19
    %p30 = scmp.ge.s32.totalorder %s29, 2
    %s31 = scalar_select %p30, 0, %s29
    %s32 = ssub.s32 %s19, %s31
    %s33 = ssub.s32 %s20, %s27
    %s34 = sor.u32 %s32, %s33
    %p35 = scmp.eq.s32.totalorder %s34, 0
    %s37 = sadd.s32 %s36, 1
    %s38 = scalar_select %p35, %s36, %s37
    %p41 = pneg %p35
    %p42 = scmp.eq.s32.totalorder %s12, 3
    %p43 = por %p41, %p42
    %p44 = scmp.ne.s32.totalorder %s36, %s39
    %p45 = scmp.eq.s32.totalorder %s12, 0
    %p46 = por %p44, %p45
    %p47 = scmp.ne.s32.totalorder %s36, %s39
    %p48 = scmp.eq.s32.totalorder %s17, 3
    %p49 = por %p47, %p48
    %p50 = scmp.ne.s32.totalorder %s39, %s40
    %p51 = scmp.eq.s32.totalorder %s17, 0
    %p52 = por %p50, %p51
    %p53 = scmp.ne.s32.totalorder %s39, %s40
    %p54 = scmp.eq.s32.totalorder %s18, 3
    %p55 = por %p53, %p54
    %p57 = scmp.ne.s32.totalorder %s40, %s56
    %p58 = scmp.eq.s32.totalorder %s18, 0
    %p59 = por %p57, %p58
    %s60 = sadd.s32 %s20, 1
    %s61 = smul.u32 %s60, 2
    %s62 = sadd.s32 %s27, 1
    %s63 = smul.u32 %s62, 2
    %s64 = ssub.s32 %s19, %s31
    %s65 = ssub.s32 %s61, %s63
    %s66 = sor.u32 %s64, %s65
    %p67 = scmp.eq.s32.totalorder %s66, 0
    %s69 = sadd.s32 %s68, 1
    %s70 = scalar_select %p67, %s68, %s69
    %p73 = pneg %p67
    %p74 = scmp.eq.s32.totalorder %s12, 3
    %p75 = por %p73, %p74
    %p76 = scmp.ne.s32.totalorder %s68, %s71
    %p77 = scmp.eq.s32.totalorder %s12, 0
    %p78 = por %p76, %p77
    %p79 = scmp.ne.s32.totalorder %s68, %s71
    %p80 = scmp.eq.s32.totalorder %s17, 3
    %p81 = por %p79, %p80
    %p82 = scmp.ne.s32.totalorder %s71, %s72
    %p83 = scmp.eq.s32.totalorder %s17, 0
    %p84 = por %p82, %p83
    %p85 = scmp.ne.s32.totalorder %s71, %s72
    %p86 = scmp.eq.s32.totalorder %s18, 3
    %p87 = por %p85, %p86
    %p89 = scmp.ne.s32.totalorder %s72, %s88
    %p90 = scmp.eq.s32.totalorder %s18, 0
    %p91 = por %p89, %p90
    %s93 = sadd.s32 %s92, 1
    %p96 = scmp.eq.s32.totalorder %s12, 3
    %p97 = scmp.ne.s32.totalorder %s92, %s94
    %p98 = scmp.eq.s32.totalorder %s12, 0
    %p99 = por %p97, %p98
    %p100 = scmp.ne.s32.totalorder %s92, %s94
    %p101 = scmp.eq.s32.totalorder %s17, 3
    %p102 = por %p100, %p101
    %p103 = scmp.ne.s32.totalorder %s94, %s95
    %p104 = scmp.eq.s32.totalorder %s17, 0
    %p105 = por %p103, %p104
    %p106 = scmp.ne.s32.totalorder %s94, %s95
    %p107 = scmp.eq.s32.totalorder %s18, 3
    %p108 = por %p106, %p107
    %p110 = scmp.ne.s32.totalorder %s95, %s109
    %p111 = scmp.eq.s32.totalorder %s18, 0
    %p112 = por %p110, %p111
    %s114 = sadd.s32 %s113, 1
    %p117 = scmp.eq.s32.totalorder %s12, 3
    %p118 = scmp.ne.s32.totalorder %s113, %s115
    %p119 = scmp.eq.s32.totalorder %s12, 0
    %p120 = por %p118, %p119
    %p121 = scmp.ne.s32.totalorder %s113, %s115
    %p122 = scmp.eq.s32.totalorder %s17, 3
    %p123 = por %p121, %p122
    %p124 = scmp.ne.s32.totalorder %s115, %s116
    %p125 = scmp.eq.s32.totalorder %s17, 0
    %p126 = por %p124, %p125
    %p127 = scmp.ne.s32.totalorder %s115, %s116
    %p128 = scmp.eq.s32.totalorder %s18, 3
    %p129 = por %p127, %p128
    %p131 = scmp.ne.s32.totalorder %s116, %s130
    %p132 = scmp.eq.s32.totalorder %s18, 0
    %p133 = por %p131, %p132
    %s135 = sadd.s32 %s134, 1
    %p138 = scmp.eq.s32.totalorder %s12, 3
    %p139 = scmp.ne.s32.totalorder %s134, %s136
    %p140 = scmp.eq.s32.totalorder %s12, 0
    %p141 = por %p139, %p140
    %p142 = scmp.ne.s32.totalorder %s134, %s136
    %p143 = scmp.eq.s32.totalorder %s17, 3
    %p144 = por %p142, %p143
    %p145 = scmp.ne.s32.totalorder %s136, %s137
    %p146 = scmp.eq.s32.totalorder %s17, 0
    %p147 = por %p145, %p146
    %p148 = scmp.ne.s32.totalorder %s136, %s137
    %p149 = scmp.eq.s32.totalorder %s18, 3
    %p150 = por %p148, %p149
    %p152 = scmp.ne.s32.totalorder %s137, %s151
    %p153 = scmp.eq.s32.totalorder %s18, 0
    %p154 = por %p152, %p153
    %s156 = sadd.s32 %s155, 1
    %p159 = scmp.eq.s32.totalorder %s12, 3
    %p160 = scmp.ne.s32.totalorder %s155, %s157
    %p161 = scmp.eq.s32.totalorder %s12, 0
    %p162 = por %p160, %p161
    %p163 = scmp.ne.s32.totalorder %s155, %s157
    %p164 = scmp.eq.s32.totalorder %s17, 3
    %p165 = por %p163, %p164
    %p166 = scmp.ne.s32.totalorder %s157, %s158
    %p167 = scmp.eq.s32.totalorder %s17, 0
    %p168 = por %p166, %p167
    %p169 = scmp.ne.s32.totalorder %s157, %s158
    %p170 = scmp.eq.s32.totalorder %s18, 3
    %p171 = por %p169, %p170
    %p173 = scmp.ne.s32.totalorder %s158, %s172
    %p174 = scmp.eq.s32.totalorder %s18, 0
    %p175 = por %p173, %p174
    %s176 = ssub.s32 %s19, %s31
    %s177 = ssub.s32 %s20, %s27
    %s178 = sor.u32 %s176, %s177
    %p179 = scmp.eq.s32.totalorder %s178, 0
    %s181 = sadd.s32 %s180, 1
    %s182 = scalar_select %p179, %s180, %s181
    %p185 = pneg %p179
    %p186 = scmp.eq.s32.totalorder %s12, 3
    %p187 = por %p185, %p186
    %p188 = scmp.ne.s32.totalorder %s180, %s183
    %p189 = scmp.eq.s32.totalorder %s12, 0
    %p190 = por %p188, %p189
    %p191 = scmp.ne.s32.totalorder %s180, %s183
    %p192 = scmp.eq.s32.totalorder %s17, 3
    %p193 = por %p191, %p192
    %p194 = scmp.ne.s32.totalorder %s183, %s184
    %p195 = scmp.eq.s32.totalorder %s17, 0
    %p196 = por %p194, %p195
    %p197 = scmp.ne.s32.totalorder %s183, %s184
    %p198 = scmp.eq.s32.totalorder %s18, 3
    %p199 = por %p197, %p198
    %p201 = scmp.ne.s32.totalorder %s184, %s200
    %p202 = scmp.eq.s32.totalorder %s18, 0
    %p203 = por %p201, %p202
    %p204 = scmp.le.s32.totalorder 1, %s12
    %p205 = scmp.lt.s32.totalorder %s12, 5
    %p206 = pnand %p204, %p205
    %p207 = pneg %p206
    // Predicated region
    $region9: #{tpu_custom_call.1} parent=5 // pred_check
      _
    $region10: #{tpu_custom_call.1} parent=5 // pred_check_branch
      %209 = sbr.rel (%p206) target = $region12
    $region11: #{tpu_custom_call.1} parent=5 // pred_region
      %s210 = ssub.s32 %s12, 1
      // Predicated region
      $region13: #{tpu_custom_call.1} parent=11 // pred_check
        %p211 = pneg %p105
      $region14: #{tpu_custom_call.1} parent=11 // pred_check_branch
        %213 = sbr.rel (%p211) target = $region16
      $region15: #{tpu_custom_call.1} parent=11 // pred_region
        _
      $region16: #{tpu_custom_call.1} parent=11 // pred_fallthru
        _
      // Predicated region
      $region17: #{tpu_custom_call.1} parent=11 // pred_check
        %p214 = pneg %p126
      $region18: #{tpu_custom_call.1} parent=11 // pred_check_branch
        %216 = sbr.rel (%p214) target = $region20
      $region19: #{tpu_custom_call.1} parent=11 // pred_region
        _
      $region20: #{tpu_custom_call.1} parent=11 // pred_fallthru
        _
      // Predicated region
      $region21: #{tpu_custom_call.1} parent=11 // pred_check
        %p217 = pneg %p147
      $region22: #{tpu_custom_call.1} parent=11 // pred_check_branch
        %219 = sbr.rel (%p217) target = $region24
      $region23: #{tpu_custom_call.1} parent=11 // pred_region
        _
      $region24: #{tpu_custom_call.1} parent=11 // pred_fallthru
        _
      // Predicated region
      $region25: #{tpu_custom_call.1} parent=11 // pred_check
        %p220 = pneg %p168
      $region26: #{tpu_custom_call.1} parent=11 // pred_check_branch
        %222 = sbr.rel (%p220) target = $region28
      $region27: #{tpu_custom_call.1} parent=11 // pred_region
        _
      $region28: #{tpu_custom_call.1} parent=11 // pred_fallthru
        _
    $region12: #{tpu_custom_call.1} parent=5 // pred_fallthru
      _
    %p223 = scmp.lt.s32.totalorder %s12, 4
    // Predicated region
    $region29: #{tpu_custom_call.1} parent=5 // pred_check
      %p224 = pneg %p223
    $region30: #{tpu_custom_call.1} parent=5 // pred_check_branch
      %226 = sbr.rel (%p224) target = $region32
    $region31: #{tpu_custom_call.1} parent=5 // pred_region
      // Predicated region
      $region33: #{tpu_custom_call.1} parent=31 // pred_check
        %p227 = pneg %p46
      $region34: #{tpu_custom_call.1} parent=31 // pred_check_branch
        %229 = sbr.rel (%p227) target = $region36
      $region35: #{tpu_custom_call.1} parent=31 // pred_region
        %s230 = smul.u32 8, %s20
        %s231 = ssub.s32 20, %s230
        %p232 = scmp.lt.s32.totalorder %s231, 8
        %s233 = scalar_select %p232, %s231, 8
        %s234 = smul.u32 128, %s233
        %s235 = smul.u32 %s234, 2
        %p236 = scmp.lt.s32.totalorder %s19, 1
        %s237 = scalar_select %p236, %s19, 1
        %p238 = scmp.lt.s32.totalorder %s230, 19
        %s239 = scalar_select %p238, %s230, 19
        %s240 = smul.addr %s239, 2
        %s241 = smul.addr %s237, 40
        %s242 = sadd.s32 %s240, %s241
        %s243 = smul.addr %s242, 8
        %s244 = scalar_lea.vmem %s0, %s243
        %s245 = smul.u32 8, %s20
        %s246 = ssub.s32 20, %s245
        %p247 = scmp.lt.s32.totalorder %s246, 8
        %s248 = scalar_select %p247, %s246, 8
        %s249 = smul.u32 128, %s248
        %s250 = smul.u32 %s249, 2
      $region36: #{tpu_custom_call.1} parent=31 // pred_fallthru
        _
      // Predicated region
      $region37: #{tpu_custom_call.1} parent=31 // pred_check
        %p251 = pneg %p78
      $region38: #{tpu_custom_call.1} parent=31 // pred_check_branch
        %253 = sbr.rel (%p251) target = $region40
      $region39: #{tpu_custom_call.1} parent=31 // pred_region
        %s254 = sadd.s32 %s20, 1
        %s255 = smul.u32 %s254, 2
        %s256 = smul.u32 4, %s255
        %p257 = scmp.lt.s32.totalorder %s19, 1
        %s258 = scalar_select %p257, %s19, 1
        %p259 = scmp.lt.s32.totalorder %s256, 19
        %s260 = scalar_select %p259, %s256, 19
        %s261 = smul.addr %s260, 2
        %s262 = smul.addr %s258, 40
        %s263 = sadd.s32 %s261, %s262
        %s264 = smul.addr %s263, 8
        %s265 = scalar_lea.vmem %s1, %s264
        %s266 = sadd.s32 %s20, 1
        %s267 = smul.u32 %s266, 2
        %s268 = smul.u32 4, %s267
      $region40: #{tpu_custom_call.1} parent=31 // pred_fallthru
        _
    $region32: #{tpu_custom_call.1} parent=5 // pred_fallthru
      _
    %p269 = scmp.le.s32.totalorder 1, %s12
    %p270 = scmp.lt.s32.totalorder %s12, 5
    %p271 = pnand %p269, %p270
    %p272 = pneg %p271
    // Predicated region
    $region41: #{tpu_custom_call.1} parent=5 // pred_check
      _
    $region42: #{tpu_custom_call.1} parent=5 // pred_check_branch
      %274 = sbr.rel (%p271) target = $region44
    $region43: #{tpu_custom_call.1} parent=5 // pred_region
      %s275 = ssub.s32 %s12, 1
      %s276 = smul.u32 8, %s22
      %s277 = ssub.s32 20, %s276
      %p278 = scmp.lt.s32.totalorder %s277, 8
      %s279 = scalar_select %p278, %s277, 8
      %s280 = smul.u32 128, %s279
      %s281 = smul.u32 %s280, 2
      %p282 = scmp.lt.s32.totalorder %s21, 1
      %s283 = scalar_select %p282, %s21, 1
      %p284 = scmp.lt.s32.totalorder %s276, 19
      %s285 = scalar_select %p284, %s276, 19
      %s286 = smul.addr %s285, 2
      %s287 = smul.addr %s283, 40
      %s288 = sadd.s32 %s286, %s287
      %s289 = smul.addr %s288, 8
      %s290 = scalar_lea.vmem %s0, %s289
      %p291 = pneg %p52
      %p292 = pneg %p49
      %s293 = sadd.s32 %s22, 1
      %s294 = smul.u32 %s293, 2
      %s295 = smul.u32 4, %s294
      %p296 = scmp.lt.s32.totalorder %s21, 1
      %s297 = scalar_select %p296, %s21, 1
      %p298 = scmp.lt.s32.totalorder %s295, 19
      %s299 = scalar_select %p298, %s295, 19
      %s300 = smul.addr %s299, 2
      %s301 = smul.addr %s297, 40
      %s302 = sadd.s32 %s300, %s301
      %s303 = smul.addr %s302, 8
      %s304 = scalar_lea.vmem %s1, %s303
      %p305 = pneg %p84
      %p306 = pneg %p81
      %p307 = pneg %p105
      %p308 = pneg %p102
      %p309 = pneg %p126
      %p310 = pneg %p123
      %p311 = pneg %p147
      %p312 = pneg %p144
      %p313 = pneg %p168
      %p314 = pneg %p165
      %p315 = pneg %p196
      %p316 = pneg %p193
      %s317 = smul.u32 8, %s22
      %p318 = scmp.lt.s32.totalorder %s21, 1
      %s319 = scalar_select %p318, %s21, 1
      %p320 = scmp.lt.s32.totalorder %s317, 15
      %s321 = scalar_select %p320, %s317, 15
      %s322 = smul.addr %s321, 2
      %s323 = smul.addr %s319, 32
      %s324 = sadd.s32 %s322, %s323
      %s325 = smul.addr %s324, 8
      %s326 = scalar_lea.vmem %s6, %s325
      %s327 = smul.u32 8, %s22
      %s328 = ssub.s32 20, %s327
      %p329 = scmp.lt.s32.totalorder %s328, 8
      %s330 = scalar_select %p329, %s328, 8
      %s331 = smul.u32 128, %s330
      %s332 = smul.u32 %s331, 2
      %p333 = scmp.lt.s32.totalorder %s21, 1
      %s334 = scalar_select %p333, %s21, 1
      %p335 = scmp.lt.s32.totalorder %s327, 19
      %s336 = scalar_select %p335, %s327, 19
      %s337 = smul.addr %s336, 2
      %s338 = smul.addr %s334, 40
      %s339 = sadd.s32 %s337, %s338
      %s340 = smul.addr %s339, 8
      %s341 = scalar_lea.vmem %s0, %s340
      %s342 = smul.u32 8, %s22
      %s343 = ssub.s32 20, %s342
      %p344 = scmp.lt.s32.totalorder %s343, 8
      %s345 = scalar_select %p344, %s343, 8
      %s346 = smul.u32 128, %s345
      %s347 = smul.u32 %s346, 2
      %s348 = sadd.s32 %s22, 1
      %s349 = smul.u32 %s348, 2
      %s350 = smul.u32 4, %s349
      %p351 = scmp.lt.s32.totalorder %s21, 1
      %s352 = scalar_select %p351, %s21, 1
      %p353 = scmp.lt.s32.totalorder %s350, 19
      %s354 = scalar_select %p353, %s350, 19
      %s355 = smul.addr %s354, 2
      %s356 = smul.addr %s352, 40
      %s357 = sadd.s32 %s355, %s356
      %s358 = smul.addr %s357, 8
      %s359 = scalar_lea.vmem %s1, %s358
      %s360 = sadd.s32 %s22, 1
      %s361 = smul.u32 %s360, 2
      %s362 = smul.u32 4, %s361
      %s363 = smul.u32 8, %s22
      %p364 = scmp.lt.s32.totalorder %s21, 1
      %s365 = scalar_select %p364, %s21, 1
      %p366 = scmp.lt.s32.totalorder %s363, 15
      %s367 = scalar_select %p366, %s363, 15
      %s368 = smul.addr %s367, 2
      %s369 = smul.addr %s365, 32
      %s370 = sadd.s32 %s368, %s369
      %s371 = smul.addr %s370, 8
      %s372 = scalar_lea.vmem %s6, %s371
      %s373 = smul.u32 8, %s22
      %s375 = smul.u32 %s22, 8
      %vm376 = vcmask 24576
      %vm377 = vsmask.f32 256
      %vm378 = vmand %vm376, %vm377
      %v379 = vld [vmem:[#allocation2] sm:$0x1]
      %v380 = vsel %vm378, 0, %v379
      %381 = vst [vmem:[#allocation2] sm:$0x1] %v380
      %v382 = vld [vmem:[#allocation2 + $0xc] sm:$0x1]
      %v383 = vsel %vm378, 0, %v382
      %384 = vst [vmem:[#allocation2 + $0xc] sm:$0x1] %v383
      %v385 = vld [vmem:[#allocation2 + $0x18] sm:$0x1]
      %v386 = vsel %vm378, 0, %v385
      %387 = vst [vmem:[#allocation2 + $0x18] sm:$0x1] %v386
      %v388 = vld [vmem:[#allocation2 + $0x24] sm:$0x1]
      %v389 = vsel %vm378, 0, %v388
      %390 = vst [vmem:[#allocation2 + $0x24] sm:$0x1] %v389
      %v391 = vld [vmem:[#allocation2 + $0x30] sm:$0x1]
      %v392 = vsel %vm378, 0, %v391
      %393 = vst [vmem:[#allocation2 + $0x30] sm:$0x1] %v392
      %v394 = vld [vmem:[#allocation2 + $0x3c] sm:$0x1]
      %v395 = vsel %vm378, 0, %v394
      %396 = vst [vmem:[#allocation2 + $0x3c] sm:$0x1] %v395
      %v397 = vld [vmem:[#allocation2 + $0x48] sm:$0x1]
      %v398 = vsel %vm378, 0, %v397
      %399 = vst [vmem:[#allocation2 + $0x48] sm:$0x1] %v398
      %v400 = vld [vmem:[#allocation2 + $0x54] sm:$0x1]
      %v401 = vsel %vm378, 0, %v400
      %402 = vst [vmem:[#allocation2 + $0x54] sm:$0x1] %v401
      %v403 = vld [vmem:[#allocation2 + $0x60] sm:$0x1]
      %v404 = vsel %vm378, 0, %v403
      %405 = vst [vmem:[#allocation2 + $0x60] sm:$0x1] %v404
      %v406 = vld [vmem:[#allocation2 + $0x6c] sm:$0x1]
      %v407 = vsel %vm378, 0, %v406
      %408 = vst [vmem:[#allocation2 + $0x6c] sm:$0x1] %v407
      %v409 = vld [vmem:[#allocation2 + $0x78] sm:$0x1]
      %v410 = vsel %vm378, 0, %v409
      %411 = vst [vmem:[#allocation2 + $0x78] sm:$0x1] %v410
      %v412 = vld [vmem:[#allocation2 + $0x84] sm:$0x1]
      %v413 = vsel %vm378, 0, %v412
      %414 = vst [vmem:[#allocation2 + $0x84] sm:$0x1] %v413
      %vm415 = vsmask.f32 7938
      %vm416 = vmand %vm376, %vm415
      %v417 = vld [vmem:[#allocation2 + $0x8] sm:$0x1]
      %v418 = vsel %vm416, 0, %v417
      %419 = vst [vmem:[#allocation2 + $0x8] sm:$0x1] %v418
      %v420 = vld [vmem:[#allocation2 + $0x14] sm:$0x1]
      %v421 = vsel %vm416, 0, %v420
      %422 = vst [vmem:[#allocation2 + $0x14] sm:$0x1] %v421
      %v423 = vld [vmem:[#allocation2 + $0x20] sm:$0x1]
      %v424 = vsel %vm416, 0, %v423
      %425 = vst [vmem:[#allocation2 + $0x20] sm:$0x1] %v424
      %v426 = vld [vmem:[#allocation2 + $0x2c] sm:$0x1]
      %v427 = vsel %vm416, 0, %v426
      %428 = vst [vmem:[#allocation2 + $0x2c] sm:$0x1] %v427
      %v429 = vld [vmem:[#allocation2 + $0x38] sm:$0x1]
      %v430 = vsel %vm416, 0, %v429
      %431 = vst [vmem:[#allocation2 + $0x38] sm:$0x1] %v430
      %v432 = vld [vmem:[#allocation2 + $0x44] sm:$0x1]
      %v433 = vsel %vm416, 0, %v432
      %434 = vst [vmem:[#allocation2 + $0x44] sm:$0x1] %v433
      %v435 = vld [vmem:[#allocation2 + $0x50] sm:$0x1]
      %v436 = vsel %vm416, 0, %v435
      %437 = vst [vmem:[#allocation2 + $0x50] sm:$0x1] %v436
      %v438 = vld [vmem:[#allocation2 + $0x5c] sm:$0x1]
      %v439 = vsel %vm416, 0, %v438
      %440 = vst [vmem:[#allocation2 + $0x5c] sm:$0x1] %v439
      %v441 = vld [vmem:[#allocation2 + $0x68] sm:$0x1]
      %v442 = vsel %vm416, 0, %v441
      %443 = vst [vmem:[#allocation2 + $0x68] sm:$0x1] %v442
      %v444 = vld [vmem:[#allocation2 + $0x74] sm:$0x1]
      %v445 = vsel %vm416, 0, %v444
      %446 = vst [vmem:[#allocation2 + $0x74] sm:$0x1] %v445
      %v447 = vld [vmem:[#allocation2 + $0x80] sm:$0x1]
      %v448 = vsel %vm416, 0, %v447
      %449 = vst [vmem:[#allocation2 + $0x80] sm:$0x1] %v448
      %v450 = vld [vmem:[#allocation2 + $0x8c] sm:$0x1]
      %v451 = vsel %vm416, 0, %v450
      %452 = vst [vmem:[#allocation2 + $0x8c] sm:$0x1] %v451
      %v453 = vld [vmem:[%s341] sm:$0xff]
      %v454 = vld [vmem:[%s341 + $0x8] sm:$0xff]
      %v455 = vld [vmem:[%s341 + $0x10] sm:$0xff]
      %v456 = vld [vmem:[%s341 + $0x18] sm:$0xff]
      %v457 = vld [vmem:[%s341 + $0x20] sm:$0xff]
      %v458 = vld [vmem:[%s341 + $0x28] sm:$0xff]
      %v459 = vld [vmem:[%s341 + $0x30] sm:$0xff]
      %v460 = vld [vmem:[%s341 + $0x38] sm:$0xff]
      %v461 = vld [vmem:[%s341 + $0x40] sm:$0xff]
      %v462 = vld [vmem:[%s341 + $0x48] sm:$0xff]
      %v463 = vld [vmem:[%s341 + $0x50] sm:$0xff]
      %v464 = vld [vmem:[%s341 + $0x58] sm:$0xff]
      %v465 = vld [vmem:[%s341 + $0x60] sm:$0xff]
      %v466 = vld [vmem:[%s341 + $0x68] sm:$0xff]
      %v467 = vld [vmem:[%s341 + $0x70] sm:$0xff]
      %v468 = vld [vmem:[%s341 + $0x78] sm:$0xff]
      %v469 = vmax.f32 %v453, 0.0
      %v470 = vmax.f32 %v454, 0.0
      %v471 = vmax.f32 %v455, 0.0
      %v472 = vmax.f32 %v456, 0.0
      %v473 = vmax.f32 %v457, 0.0
      %v474 = vmax.f32 %v458, 0.0
      %v475 = vmax.f32 %v459, 0.0
      %v476 = vmax.f32 %v460, 0.0
      %v477 = vmax.f32 %v461, 0.0
      %v478 = vmax.f32 %v462, 0.0
      %v479 = vmax.f32 %v463, 0.0
      %v480 = vmax.f32 %v464, 0.0
      %v481 = vmax.f32 %v465, 0.0
      %v482 = vmax.f32 %v466, 0.0
      %v483 = vmax.f32 %v467, 0.0
      %v484 = vmax.f32 %v468, 0.0
      %v485 = vpack.c.bf16 %v470, %v469
      %v486 = vpack.c.bf16 %v472, %v471
      %v487 = vpack.c.bf16 %v474, %v473
      %v488 = vpack.c.bf16 %v476, %v475
      %v489 = vpack.c.bf16 %v478, %v477
      %v490 = vpack.c.bf16 %v480, %v479
      %v491 = vpack.c.bf16 %v482, %v481
      %v492 = vpack.c.bf16 %v484, %v483
      %v501 = vunpack.c.l.b16 %v485
      %v502 = vunpack.c.h.b16 %v485
      %v503 = vunpack.c.l.b16 %v486
      %v504 = vunpack.c.h.b16 %v486
      %v505 = vunpack.c.l.b16 %v487
      %v506 = vunpack.c.h.b16 %v487
      %v507 = vunpack.c.l.b16 %v488
      %v508 = vunpack.c.h.b16 %v488
      %v509 = vunpack.c.l.b16 %v489
      %v510 = vunpack.c.h.b16 %v489
      %v511 = vunpack.c.l.b16 %v490
      %v512 = vunpack.c.h.b16 %v490
      %v513 = vunpack.c.l.b16 %v491
      %v514 = vunpack.c.h.b16 %v491
      %v515 = vunpack.c.l.b16 %v492
      %v516 = vunpack.c.h.b16 %v492
      %v517 = vpack.c.b16 %v501, %v501
      %v518 = vpack.c.b16 %v502, %v502
      %v519 = vpack.c.b16 %v503, %v503
      %v520 = vpack.c.b16 %v504, %v504
      %v521 = vpack.c.b16 %v505, %v505
      %v522 = vpack.c.b16 %v506, %v506
      %v523 = vpack.c.b16 %v507, %v507
      %v524 = vpack.c.b16 %v508, %v508
      %v525 = vpack.c.b16 %v509, %v509
      %v526 = vpack.c.b16 %v510, %v510
      %v527 = vpack.c.b16 %v511, %v511
      %v528 = vpack.c.b16 %v512, %v512
      %v529 = vpack.c.b16 %v513, %v513
      %v530 = vpack.c.b16 %v514, %v514
      %v531 = vpack.c.b16 %v515, %v515
      %v532 = vpack.c.b16 %v516, %v516
      %vm533 = vsmask.f32 4368
      %vm534 = vmor %vm377, %vm533
      %v536 = vshrl.u32 %v517, 16
      %v538 = vrot.slane %v536, 7
      %v539 = vshll.u32 %v517, 16
      %v541 = vor.u32 %v538, %v539
      %v542 = vrot.slane %v538, 4
      %v544 = vshrl.u32 %v518, 16
      %v546 = vrot.slane %v544, 7
      %v547 = vshll.u32 %v518, 16
      %v549 = vor.u32 %v546, %v547
      %v550 = vsel %vm534, %v542, %v549
      %v551 = vrot.slane %v546, 4
      %v553 = vshrl.u32 %v519, 16
      %v555 = vrot.slane %v553, 7
      %v556 = vshll.u32 %v519, 16
      %v558 = vor.u32 %v555, %v556
      %v559 = vrot.slane %v555, 4
      %v561 = vshrl.u32 %v520, 16
      %v563 = vrot.slane %v561, 7
      %v564 = vshll.u32 %v520, 16
      %v566 = vor.u32 %v563, %v564
      %v567 = vsel %vm534, %v559, %v566
      %v568 = vrot.slane %v563, 4
      %v570 = vshrl.u32 %v521, 16
      %v572 = vrot.slane %v570, 7
      %v573 = vshll.u32 %v521, 16
      %v575 = vor.u32 %v572, %v573
      %v576 = vrot.slane %v572, 4
      %v578 = vshrl.u32 %v522, 16
      %v580 = vrot.slane %v578, 7
      %v581 = vshll.u32 %v522, 16
      %v583 = vor.u32 %v580, %v581
      %v584 = vsel %vm534, %v576, %v583
      %v585 = vrot.slane %v580, 4
      %v587 = vshrl.u32 %v523, 16
      %v589 = vrot.slane %v587, 7
      %v590 = vshll.u32 %v523, 16
      %v592 = vor.u32 %v589, %v590
      %v593 = vrot.slane %v589, 4
      %v595 = vshrl.u32 %v524, 16
      %v597 = vrot.slane %v595, 7
      %v598 = vshll.u32 %v524, 16
      %v600 = vor.u32 %v597, %v598
      %v601 = vsel %vm534, %v593, %v600
      %v602 = vrot.slane %v597, 4
      %v604 = vshrl.u32 %v525, 16
      %v606 = vrot.slane %v604, 7
      %v607 = vshll.u32 %v525, 16
      %v609 = vor.u32 %v606, %v607
      %v610 = vrot.slane %v606, 4
      %v612 = vshrl.u32 %v526, 16
      %v614 = vrot.slane %v612, 7
      %v615 = vshll.u32 %v526, 16
      %v617 = vor.u32 %v614, %v615
      %v618 = vsel %vm534, %v610, %v617
      %v619 = vrot.slane %v614, 4
      %v621 = vshrl.u32 %v527, 16
      %v623 = vrot.slane %v621, 7
      %v624 = vshll.u32 %v527, 16
      %v626 = vor.u32 %v623, %v624
      %v627 = vrot.slane %v623, 4
      %v629 = vshrl.u32 %v528, 16
      %v631 = vrot.slane %v629, 7
      %v632 = vshll.u32 %v528, 16
      %v634 = vor.u32 %v631, %v632
      %v635 = vsel %vm534, %v627, %v634
      %v636 = vrot.slane %v631, 4
      %v638 = vshrl.u32 %v529, 16
      %v640 = vrot.slane %v638, 7
      %v641 = vshll.u32 %v529, 16
      %v643 = vor.u32 %v640, %v641
      %v644 = vrot.slane %v640, 4
      %v646 = vshrl.u32 %v530, 16
      %v648 = vrot.slane %v646, 7
      %v649 = vshll.u32 %v530, 16
      %v651 = vor.u32 %v648, %v649
      %v652 = vsel %vm534, %v644, %v651
      %v653 = vrot.slane %v648, 4
      %v655 = vshrl.u32 %v531, 16
      %v657 = vrot.slane %v655, 7
      %v658 = vshll.u32 %v531, 16
      %v660 = vor.u32 %v657, %v658
      %v661 = vrot.slane %v657, 4
      %v663 = vshrl.u32 %v532, 16
      %v665 = vrot.slane %v663, 7
      %v666 = vshll.u32 %v532, 16
      %v668 = vor.u32 %v665, %v666
      %v669 = vsel %vm534, %v661, %v668
      %v670 = vrot.slane %v665, 4
      %vm695 = vcmask 27648
      %vm696 = vmand %vm695, %vm415
      %v697 = vld [vmem:[#allocation2] sm:$0xf]
      %v698 = vsel %vm696, %v541, %v697
      %699 = vst [vmem:[#allocation2] sm:$0xf] %v698
      %vm700 = vcmask 27648
      %701 = vst.msk [vmem:[#allocation2 + $0x4] sm:$0xf] %vm700, %v550
      %v702 = vld [vmem:[#allocation2 + $0x8] sm:$0x1]
      %v703 = vsel %vm378, %v551, %v702
      %704 = vst [vmem:[#allocation2 + $0x8] sm:$0x1] %v703
      %v705 = vld [vmem:[#allocation2 + $0xc] sm:$0xf]
      %v706 = vsel %vm696, %v558, %v705
      %707 = vst [vmem:[#allocation2 + $0xc] sm:$0xf] %v706
      %708 = vst.msk [vmem:[#allocation2 + $0x10] sm:$0xf] %vm700, %v567
      %v709 = vld [vmem:[#allocation2 + $0x14] sm:$0x1]
      %v710 = vsel %vm378, %v568, %v709
      %711 = vst [vmem:[#allocation2 + $0x14] sm:$0x1] %v710
      %v712 = vld [vmem:[#allocation2 + $0x18] sm:$0xf]
      %v713 = vsel %vm696, %v575, %v712
      %714 = vst [vmem:[#allocation2 + $0x18] sm:$0xf] %v713
      %715 = vst.msk [vmem:[#allocation2 + $0x1c] sm:$0xf] %vm700, %v584
      %v716 = vld [vmem:[#allocation2 + $0x20] sm:$0x1]
      %v717 = vsel %vm378, %v585, %v716
      %718 = vst [vmem:[#allocation2 + $0x20] sm:$0x1] %v717
      %v719 = vld [vmem:[#allocation2 + $0x24] sm:$0xf]
      %v720 = vsel %vm696, %v592, %v719
      %721 = vst [vmem:[#allocation2 + $0x24] sm:$0xf] %v720
      %722 = vst.msk [vmem:[#allocation2 + $0x28] sm:$0xf] %vm700, %v601
      %v723 = vld [vmem:[#allocation2 + $0x2c] sm:$0x1]
      %v724 = vsel %vm378, %v602, %v723
      %725 = vst [vmem:[#allocation2 + $0x2c] sm:$0x1] %v724
      %v726 = vld [vmem:[#allocation2 + $0x30] sm:$0xf]
      %v727 = vsel %vm696, %v609, %v726
      %728 = vst [vmem:[#allocation2 + $0x30] sm:$0xf] %v727
      %729 = vst.msk [vmem:[#allocation2 + $0x34] sm:$0xf] %vm700, %v618
      %v730 = vld [vmem:[#allocation2 + $0x38] sm:$0x1]
      %v731 = vsel %vm378, %v619, %v730
      %732 = vst [vmem:[#allocation2 + $0x38] sm:$0x1] %v731
      %v733 = vld [vmem:[#allocation2 + $0x3c] sm:$0xf]
      %v734 = vsel %vm696, %v626, %v733
      %735 = vst [vmem:[#allocation2 + $0x3c] sm:$0xf] %v734
      %736 = vst.msk [vmem:[#allocation2 + $0x40] sm:$0xf] %vm700, %v635
      %v737 = vld [vmem:[#allocation2 + $0x44] sm:$0x1]
      %v738 = vsel %vm378, %v636, %v737
      %739 = vst [vmem:[#allocation2 + $0x44] sm:$0x1] %v738
      %v740 = vld [vmem:[#allocation2 + $0x48] sm:$0xf]
      %v741 = vsel %vm696, %v643, %v740
      %742 = vst [vmem:[#allocation2 + $0x48] sm:$0xf] %v741
      %743 = vst.msk [vmem:[#allocation2 + $0x4c] sm:$0xf] %vm700, %v652
      %v744 = vld [vmem:[#allocation2 + $0x50] sm:$0x1]
      %v745 = vsel %vm378, %v653, %v744
      %746 = vst [vmem:[#allocation2 + $0x50] sm:$0x1] %v745
      %v747 = vld [vmem:[#allocation2 + $0x54] sm:$0xf]
      %v748 = vsel %vm696, %v660, %v747
      %749 = vst [vmem:[#allocation2 + $0x54] sm:$0xf] %v748
      %750 = vst.msk [vmem:[#allocation2 + $0x58] sm:$0xf] %vm700, %v669
      %v751 = vld [vmem:[#allocation2 + $0x5c] sm:$0x1]
      %v752 = vsel %vm378, %v670, %v751
      %753 = vst [vmem:[#allocation2 + $0x5c] sm:$0x1] %v752
      %v754 = vld [vmem:[%s359] sm:$0xff]
      %v755 = vld [vmem:[%s359 + $0x8] sm:$0xff]
      %v756 = vld [vmem:[%s359 + $0x10] sm:$0xff]
      %v757 = vld [vmem:[%s359 + $0x18] sm:$0xff]
      %v758 = vld [vmem:[%s359 + $0x20] sm:$0xff]
      %v759 = vld [vmem:[%s359 + $0x28] sm:$0xff]
      %v760 = vld [vmem:[%s359 + $0x30] sm:$0xff]
      %v761 = vld [vmem:[%s359 + $0x38] sm:$0xff]
      %v762 = vmax.f32 %v754, 0.0
      %v763 = vmax.f32 %v755, 0.0
      %v764 = vmax.f32 %v756, 0.0
      %v765 = vmax.f32 %v757, 0.0
      %v766 = vmax.f32 %v758, 0.0
      %v767 = vmax.f32 %v759, 0.0
      %v768 = vmax.f32 %v760, 0.0
      %v769 = vmax.f32 %v761, 0.0
      %v770 = vpack.c.bf16 %v763, %v762
      %v771 = vpack.c.bf16 %v765, %v764
      %v772 = vpack.c.bf16 %v767, %v766
      %v773 = vpack.c.bf16 %v769, %v768
      %v778 = vunpack.c.l.b16 %v770
      %v779 = vunpack.c.h.b16 %v770
      %v780 = vunpack.c.l.b16 %v771
      %v781 = vunpack.c.h.b16 %v771
      %v782 = vunpack.c.l.b16 %v772
      %v783 = vunpack.c.h.b16 %v772
      %v784 = vunpack.c.l.b16 %v773
      %v785 = vunpack.c.h.b16 %v773
      %v786 = vpack.c.b16 %v778, %v778
      %v787 = vpack.c.b16 %v779, %v779
      %v788 = vpack.c.b16 %v780, %v780
      %v789 = vpack.c.b16 %v781, %v781
      %v790 = vpack.c.b16 %v782, %v782
      %v791 = vpack.c.b16 %v783, %v783
      %v792 = vpack.c.b16 %v784, %v784
      %v793 = vpack.c.b16 %v785, %v785
      %v795 = vshrl.u32 %v786, 16
      %v797 = vrot.slane %v795, 7
      %v798 = vshll.u32 %v786, 16
      %v800 = vor.u32 %v797, %v798
      %v801 = vrot.slane %v797, 4
      %v803 = vshrl.u32 %v787, 16
      %v805 = vrot.slane %v803, 7
      %v806 = vshll.u32 %v787, 16
      %v808 = vor.u32 %v805, %v806
      %v809 = vsel %vm534, %v801, %v808
      %v810 = vrot.slane %v805, 4
      %v812 = vshrl.u32 %v788, 16
      %v814 = vrot.slane %v812, 7
      %v815 = vshll.u32 %v788, 16
      %v817 = vor.u32 %v814, %v815
      %v818 = vrot.slane %v814, 4
      %v820 = vshrl.u32 %v789, 16
      %v822 = vrot.slane %v820, 7
      %v823 = vshll.u32 %v789, 16
      %v825 = vor.u32 %v822, %v823
      %v826 = vsel %vm534, %v818, %v825
      %v827 = vrot.slane %v822, 4
      %v829 = vshrl.u32 %v790, 16
      %v831 = vrot.slane %v829, 7
      %v832 = vshll.u32 %v790, 16
      %v834 = vor.u32 %v831, %v832
      %v835 = vrot.slane %v831, 4
      %v837 = vshrl.u32 %v791, 16
      %v839 = vrot.slane %v837, 7
      %v840 = vshll.u32 %v791, 16
      %v842 = vor.u32 %v839, %v840
      %v843 = vsel %vm534, %v835, %v842
      %v844 = vrot.slane %v839, 4
      %v846 = vshrl.u32 %v792, 16
      %v848 = vrot.slane %v846, 7
      %v849 = vshll.u32 %v792, 16
      %v851 = vor.u32 %v848, %v849
      %v852 = vrot.slane %v848, 4
      %v854 = vshrl.u32 %v793, 16
      %v856 = vrot.slane %v854, 7
      %v857 = vshll.u32 %v793, 16
      %v859 = vor.u32 %v856, %v857
      %v860 = vsel %vm534, %v852, %v859
      %v861 = vrot.slane %v856, 4
      %s874 = scalar_lea.vmem [#allocation2], 96
      %v875 = vld [vmem:[%s874] sm:$0xf]
      %v876 = vsel %vm696, %v800, %v875
      %877 = vst [vmem:[%s874] sm:$0xf] %v876
      %878 = vst.msk [vmem:[%s874 + $0x4] sm:$0xf] %vm700, %v809
      %v879 = vld [vmem:[%s874 + $0x8] sm:$0x1]
      %v880 = vsel %vm378, %v810, %v879
      %881 = vst [vmem:[%s874 + $0x8] sm:$0x1] %v880
      %v882 = vld [vmem:[%s874 + $0xc] sm:$0xf]
      %v883 = vsel %vm696, %v817, %v882
      %884 = vst [vmem:[%s874 + $0xc] sm:$0xf] %v883
      %885 = vst.msk [vmem:[%s874 + $0x10] sm:$0xf] %vm700, %v826
      %v886 = vld [vmem:[%s874 + $0x14] sm:$0x1]
      %v887 = vsel %vm378, %v827, %v886
      %888 = vst [vmem:[%s874 + $0x14] sm:$0x1] %v887
      %v889 = vld [vmem:[%s874 + $0x18] sm:$0xf]
      %v890 = vsel %vm696, %v834, %v889
      %891 = vst [vmem:[%s874 + $0x18] sm:$0xf] %v890
      %892 = vst.msk [vmem:[%s874 + $0x1c] sm:$0xf] %vm700, %v843
      %v893 = vld [vmem:[%s874 + $0x20] sm:$0x1]
      %v894 = vsel %vm378, %v844, %v893
      %895 = vst [vmem:[%s874 + $0x20] sm:$0x1] %v894
      %v896 = vld [vmem:[%s874 + $0x24] sm:$0xf]
      %v897 = vsel %vm696, %v851, %v896
      %898 = vst [vmem:[%s874 + $0x24] sm:$0xf] %v897
      %899 = vst.msk [vmem:[%s874 + $0x28] sm:$0xf] %vm700, %v860
      %v900 = vld [vmem:[%s874 + $0x2c] sm:$0x1]
      %v901 = vsel %vm378, %v861, %v900
      %902 = vst [vmem:[%s874 + $0x2c] sm:$0x1] %v901
      %v903 = vld [vmem:[#allocation3] sm:$0x1]
      %v904 = vsel %vm378, 0, %v903
      %905 = vst [vmem:[#allocation3] sm:$0x1] %v904
      %v906 = vld [vmem:[#allocation3 + $0xc] sm:$0x1]
      %v907 = vsel %vm378, 0, %v906
      %908 = vst [vmem:[#allocation3 + $0xc] sm:$0x1] %v907
      %v909 = vld [vmem:[#allocation3 + $0x18] sm:$0x1]
      %v910 = vsel %vm378, 0, %v909
      %911 = vst [vmem:[#allocation3 + $0x18] sm:$0x1] %v910
      %v912 = vld [vmem:[#allocation3 + $0x24] sm:$0x1]
      %v913 = vsel %vm378, 0, %v912
      %914 = vst [vmem:[#allocation3 + $0x24] sm:$0x1] %v913
      %v915 = vld [vmem:[#allocation3 + $0x30] sm:$0x1]
      %v916 = vsel %vm378, 0, %v915
      %917 = vst [vmem:[#allocation3 + $0x30] sm:$0x1] %v916
      %v918 = vld [vmem:[#allocation3 + $0x3c] sm:$0x1]
      %v919 = vsel %vm378, 0, %v918
      %920 = vst [vmem:[#allocation3 + $0x3c] sm:$0x1] %v919
      %v921 = vld [vmem:[#allocation3 + $0x48] sm:$0x1]
      %v922 = vsel %vm378, 0, %v921
      %923 = vst [vmem:[#allocation3 + $0x48] sm:$0x1] %v922
      %v924 = vld [vmem:[#allocation3 + $0x54] sm:$0x1]
      %v925 = vsel %vm378, 0, %v924
      %926 = vst [vmem:[#allocation3 + $0x54] sm:$0x1] %v925
      %v927 = vld [vmem:[#allocation3 + $0x60] sm:$0x1]
      %v928 = vsel %vm378, 0, %v927
      %929 = vst [vmem:[#allocation3 + $0x60] sm:$0x1] %v928
      %v930 = vld [vmem:[#allocation3 + $0x6c] sm:$0x1]
      %v931 = vsel %vm378, 0, %v930
      %932 = vst [vmem:[#allocation3 + $0x6c] sm:$0x1] %v931
      %v933 = vld [vmem:[#allocation3 + $0x8] sm:$0x1]
      %v934 = vsel %vm416, 0, %v933
      %935 = vst [vmem:[#allocation3 + $0x8] sm:$0x1] %v934
      %v936 = vld [vmem:[#allocation3 + $0x14] sm:$0x1]
      %v937 = vsel %vm416, 0, %v936
      %938 = vst [vmem:[#allocation3 + $0x14] sm:$0x1] %v937
      %v939 = vld [vmem:[#allocation3 + $0x20] sm:$0x1]
      %v940 = vsel %vm416, 0, %v939
      %941 = vst [vmem:[#allocation3 + $0x20] sm:$0x1] %v940
      %v942 = vld [vmem:[#allocation3 + $0x2c] sm:$0x1]
      %v943 = vsel %vm416, 0, %v942
      %944 = vst [vmem:[#allocation3 + $0x2c] sm:$0x1] %v943
      %v945 = vld [vmem:[#allocation3 + $0x38] sm:$0x1]
      %v946 = vsel %vm416, 0, %v945
      %947 = vst [vmem:[#allocation3 + $0x38] sm:$0x1] %v946
      %v948 = vld [vmem:[#allocation3 + $0x44] sm:$0x1]
      %v949 = vsel %vm416, 0, %v948
      %950 = vst [vmem:[#allocation3 + $0x44] sm:$0x1] %v949
      %v951 = vld [vmem:[#allocation3 + $0x50] sm:$0x1]
      %v952 = vsel %vm416, 0, %v951
      %953 = vst [vmem:[#allocation3 + $0x50] sm:$0x1] %v952
      %v954 = vld [vmem:[#allocation3 + $0x5c] sm:$0x1]
      %v955 = vsel %vm416, 0, %v954
      %956 = vst [vmem:[#allocation3 + $0x5c] sm:$0x1] %v955
      %v957 = vld [vmem:[#allocation3 + $0x68] sm:$0x1]
      %v958 = vsel %vm416, 0, %v957
      %959 = vst [vmem:[#allocation3 + $0x68] sm:$0x1] %v958
      %v960 = vld [vmem:[#allocation3 + $0x74] sm:$0x1]
      %v961 = vsel %vm416, 0, %v960
      %962 = vst [vmem:[#allocation3 + $0x74] sm:$0x1] %v961
      loop: start=0, step=1, limit=2
      $region45: #{tpu_custom_call.1} parent=43 // loop_pre_header
        _
      $region46: #{tpu_custom_call.1} parent=43 // loop_header
        %s964 = sphi 0, %s968
        %p965 = scmp.ge.s32.totalorder %s964, 2
      $region47: #{tpu_custom_call.1} parent=43 // loop_header_branch
        %967 = sbr.rel (%p965) target = $region51
      $region48: #{tpu_custom_call.1} parent=43 // loop_body
        %s969 = smul.u32 %s964, 4
        %s970 = smul.u32 %s969, 3
        %s971 = smul.addr %s970, 4
        %s972 = scalar_lea.vmem [#allocation2], %s971
        %v973 = vld [vmem:[%s972] sm:$0xf]
        %v974 = vld [vmem:[%s972 + $0x4] sm:$0xf]
        %v975 = vld [vmem:[%s972 + $0xc] sm:$0xf]
        %v976 = vld [vmem:[%s972 + $0x10] sm:$0xf]
        %v977 = vld [vmem:[%s972 + $0x18] sm:$0xf]
        %v978 = vld [vmem:[%s972 + $0x1c] sm:$0xf]
        %v979 = vld [vmem:[%s972 + $0x24] sm:$0xf]
        %v980 = vld [vmem:[%s972 + $0x28] sm:$0xf]
        %v981 = vld [vmem:[%s2] sm:$0x3]
        %v982 = vld [vmem:[%s972 + $0x8] sm:$0x1]
        %v983 = vld [vmem:[%s972 + $0x14] sm:$0x1]
        %v984 = vld [vmem:[%s972 + $0x20] sm:$0x1]
        %v985 = vld [vmem:[%s972 + $0x2c] sm:$0x1]
        %s986 = scalar_lea.vmem %s2, 2
        %v987 = vld [vmem:[%s986] sm:$0x3]
        %vm988 = vsmask.f32 3328
        %vm989 = vsmask.f32 7440
        %vm990 = vmor %vm988, %vm989
        %v992 = vshrl.u32 %v973, 16
        %v994 = vrot.slane %v992, 4
        %v995 = vshll.u32 %v973, 16
        %v997 = vrot.slane %v995, 5
        %v998 = vor.u32 %v994, %v997
        %v999 = vrot.slane %v998, 4
        %v1001 = vshll.u32 %v974, 16
        %v1003 = vrot.slane %v1001, 5
        %v1004 = vsel %vm990, %v999, %v1003
        %v1005 = vshrl.u32 %v974, 16
        %v1007 = vrot.slane %v1005, 4
        %v1008 = vor.u32 %v1007, %v1003
        %v1009 = vrot.slane %v1008, 4
        %v1011 = vshll.u32 %v982, 16
        %v1013 = vrot.slane %v1011, 5
        %v1014 = vsel %vm990, %v1009, %v1013
        %v1016 = vshrl.u32 %v975, 16
        %v1018 = vrot.slane %v1016, 4
        %v1019 = vshll.u32 %v975, 16
        %v1021 = vrot.slane %v1019, 5
        %v1022 = vor.u32 %v1018, %v1021
        %v1023 = vrot.slane %v1022, 4
        %v1025 = vshll.u32 %v976, 16
        %v1027 = vrot.slane %v1025, 5
        %v1028 = vsel %vm990, %v1023, %v1027
        %v1029 = vshrl.u32 %v976, 16
        %v1031 = vrot.slane %v1029, 4
        %v1032 = vor.u32 %v1031, %v1027
        %v1033 = vrot.slane %v1032, 4
        %v1035 = vshll.u32 %v983, 16
        %v1037 = vrot.slane %v1035, 5
        %v1038 = vsel %vm990, %v1033, %v1037
        %v1040 = vshrl.u32 %v977, 16
        %v1042 = vrot.slane %v1040, 4
        %v1043 = vshll.u32 %v977, 16
        %v1045 = vrot.slane %v1043, 5
        %v1046 = vor.u32 %v1042, %v1045
        %v1047 = vrot.slane %v1046, 4
        %v1049 = vshll.u32 %v978, 16
        %v1051 = vrot.slane %v1049, 5
        %v1052 = vsel %vm990, %v1047, %v1051
        %v1053 = vshrl.u32 %v978, 16
        %v1055 = vrot.slane %v1053, 4
        %v1056 = vor.u32 %v1055, %v1051
        %v1057 = vrot.slane %v1056, 4
        %v1059 = vshll.u32 %v984, 16
        %v1061 = vrot.slane %v1059, 5
        %v1062 = vsel %vm990, %v1057, %v1061
        %v1064 = vshrl.u32 %v979, 16
        %v1066 = vrot.slane %v1064, 4
        %v1067 = vshll.u32 %v979, 16
        %v1069 = vrot.slane %v1067, 5
        %v1070 = vor.u32 %v1066, %v1069
        %v1071 = vrot.slane %v1070, 4
        %v1073 = vshll.u32 %v980, 16
        %v1075 = vrot.slane %v1073, 5
        %v1076 = vsel %vm990, %v1071, %v1075
        %v1077 = vshrl.u32 %v980, 16
        %v1079 = vrot.slane %v1077, 4
        %v1080 = vor.u32 %v1079, %v1075
        %v1081 = vrot.slane %v1080, 4
        %v1083 = vshll.u32 %v985, 16
        %v1085 = vrot.slane %v1083, 5
        %v1086 = vsel %vm990, %v1081, %v1085
        %v1087 = vunpack.c.l.b16 %v1004
        %v1088 = vunpack.c.l.b16 %v1014
        %v1089 = vunpack.c.l.b16 %v1028
        %v1090 = vunpack.c.l.b16 %v1038
        %v1091 = vunpack.c.l.b16 %v1052
        %v1092 = vunpack.c.l.b16 %v1062
        %v1093 = vunpack.c.l.b16 %v1076
        %v1094 = vunpack.c.l.b16 %v1086
        %v1095 = vpack.c.b16 %v1088, %v1087
        %v1096 = vpack.c.b16 %v1090, %v1089
        %v1097 = vpack.c.b16 %v1092, %v1091
        %v1098 = vpack.c.b16 %v1094, %v1093
        %vm1099 = vcmask 31744
        %v1101 = vsel %vm1099, %v1095, 0
        %v1104 = vsel %vm1099, %v1096, 0
        %v1107 = vsel %vm1099, %v1097, 0
        %v1110 = vsel %vm1099, %v1098, 0
        %vm1112 = vcmask 1041408
        %v1114 = vsel %vm1112, %v987, 0
        %1116 = vmatprep.subr.bf16.mxu0 0
        %1117 = vmatpush1.bf16.msra.mxu0 0
        %1118 = vmatprep.subr.bf16.mxu0 0
        %1119 = vmatpush1.bf16.msra.mxu0 0
        %1120 = vmatprep.subr.bf16.mxu0 0
        %1121 = vmatpush1.bf16.msra.mxu0 0
        %1122 = vmatprep.subr.bf16.mxu0 0
        %1123 = vmatpush1.bf16.msra.mxu0 0
        %1124 = vmatprep.subr.bf16.mxu0 0
        %1125 = vmatpush1.bf16.msra.mxu0 0
        %1126 = vmatprep.subr.bf16.mxu0 0
        %1127 = vmatpush1.bf16.msra.mxu0 0
        %1128 = vmatprep.subr.bf16.mxu0 0
        %1129 = vmatpush1.bf16.msra.mxu0 0
        %1130 = vmatprep.subr.bf16.mxu0 0
        %1131 = vmatpush1.bf16.msra.mxu0 %v1114
        %1132 = vmatprep.subr.bf16.mxu0 0
        %1133 = vmatpush2.bf16.msra.mxu0 0
        %1134 = vmatprep.subr.bf16.mxu0 0
        %1135 = vmatpush2.bf16.msra.mxu0 0
        %1136 = vmatprep.subr.bf16.mxu0 0
        %1137 = vmatpush2.bf16.msra.mxu0 0
        %1138 = vmatprep.subr.bf16.mxu0 0
        %1139 = vmatpush2.bf16.msra.mxu0 0
        %1140 = vmatprep.subr.bf16.mxu0 0
        %1141 = vmatpush2.bf16.msra.mxu0 0
        %1142 = vmatprep.subr.bf16.mxu0 0
        %1143 = vmatpush2.bf16.msra.mxu0 0
        %1144 = vmatprep.subr.bf16.mxu0 0
        %1145 = vmatpush2.bf16.msra.mxu0 0
        %1146 = vmatprep.subr.bf16.mxu0 0
        %1147 = vmatpush2.bf16.msra.mxu0 0
        %1148 = vmatprep.mubr.bf16.mxu0 0
        %1149 = vmatmul.mubr.bf16.gmra.mxu0 %v1101
        %v1150 = vpop.f32.mrf.mxu0
        %v1151 = vadd.f32 0.0, %v1150
        %v1152 = vpop.f32.mrf.mxu0
        %v1153 = vpop.f32.mrf.mxu0
        %v1154 = vadd.f32 0.0, %v1153
        %v1155 = vpop.f32.mrf.mxu0
        %1156 = vmatprep.mubr.bf16.mxu0 0
        %1157 = vmatmul.mubr.bf16.gmra.mxu0 %v1104
        %v1158 = vpop.f32.mrf.mxu0
        %v1159 = vadd.f32 0.0, %v1158
        %v1160 = vpop.f32.mrf.mxu0
        %v1161 = vpop.f32.mrf.mxu0
        %v1162 = vadd.f32 0.0, %v1161
        %v1163 = vpop.f32.mrf.mxu0
        %1164 = vmatprep.mubr.bf16.mxu0 0
        %1165 = vmatmul.mubr.bf16.gmra.mxu0 %v1107
        %v1166 = vpop.f32.mrf.mxu0
        %v1167 = vadd.f32 0.0, %v1166
        %v1168 = vpop.f32.mrf.mxu0
        %v1169 = vpop.f32.mrf.mxu0
        %v1170 = vadd.f32 0.0, %v1169
        %v1171 = vpop.f32.mrf.mxu0
        %1172 = vmatprep.mubr.bf16.mxu0 0
        %1173 = vmatmul.mubr.bf16.gmra.mxu0 %v1110
        %v1174 = vpop.f32.mrf.mxu0
        %v1175 = vadd.f32 0.0, %v1174
        %v1176 = vpop.f32.mrf.mxu0
        %v1177 = vpop.f32.mrf.mxu0
        %v1178 = vadd.f32 0.0, %v1177
        %v1179 = vpop.f32.mrf.mxu0
        %1180 = vdwg.mxu0
        %v1189 = vunpack.c.l.b16 %v973
        %v1190 = vunpack.c.l.b16 %v974
        %v1191 = vunpack.c.l.b16 %v975
        %v1192 = vunpack.c.l.b16 %v976
        %v1193 = vunpack.c.l.b16 %v977
        %v1194 = vunpack.c.l.b16 %v978
        %v1195 = vunpack.c.l.b16 %v979
        %v1196 = vunpack.c.l.b16 %v980
        %v1197 = vpack.c.b16 %v1190, %v1189
        %v1198 = vpack.c.b16 %v1192, %v1191
        %v1199 = vpack.c.b16 %v1194, %v1193
        %v1200 = vpack.c.b16 %v1196, %v1195
        %v1202 = vsel %vm1099, %v1197, 0
        %v1205 = vsel %vm1099, %v1198, 0
        %v1208 = vsel %vm1099, %v1199, 0
        %v1211 = vsel %vm1099, %v1200, 0
        %v1214 = vsel %vm1112, %v981, 0
        %1216 = vmatprep.subr.bf16.mxu0 0
        %1217 = vmatpush1.bf16.msra.mxu0 0
        %1218 = vmatprep.subr.bf16.mxu0 0
        %1219 = vmatpush1.bf16.msra.mxu0 0
        %1220 = vmatprep.subr.bf16.mxu0 0
        %1221 = vmatpush1.bf16.msra.mxu0 0
        %1222 = vmatprep.subr.bf16.mxu0 0
        %1223 = vmatpush1.bf16.msra.mxu0 0
        %1224 = vmatprep.subr.bf16.mxu0 0
        %1225 = vmatpush1.bf16.msra.mxu0 0
        %1226 = vmatprep.subr.bf16.mxu0 0
        %1227 = vmatpush1.bf16.msra.mxu0 0
        %1228 = vmatprep.subr.bf16.mxu0 0
        %1229 = vmatpush1.bf16.msra.mxu0 0
        %1230 = vmatprep.subr.bf16.mxu0 0
        %1231 = vmatpush1.bf16.msra.mxu0 %v1214
        %1232 = vmatprep.subr.bf16.mxu0 0
        %1233 = vmatpush2.bf16.msra.mxu0 0
        %1234 = vmatprep.subr.bf16.mxu0 0
        %1235 = vmatpush2.bf16.msra.mxu0 0
        %1236 = vmatprep.subr.bf16.mxu0 0
        %1237 = vmatpush2.bf16.msra.mxu0 0
        %1238 = vmatprep.subr.bf16.mxu0 0
        %1239 = vmatpush2.bf16.msra.mxu0 0
        %1240 = vmatprep.subr.bf16.mxu0 0
        %1241 = vmatpush2.bf16.msra.mxu0 0
        %1242 = vmatprep.subr.bf16.mxu0 0
        %1243 = vmatpush2.bf16.msra.mxu0 0
        %1244 = vmatprep.subr.bf16.mxu0 0
        %1245 = vmatpush2.bf16.msra.mxu0 0
        %1246 = vmatprep.subr.bf16.mxu0 0
        %1247 = vmatpush2.bf16.msra.mxu0 0
        %1248 = vmatprep.mubr.bf16.mxu0 0
        %1249 = vmatmul.mubr.bf16.gmra.mxu0 %v1202
        %v1250 = vpop.f32.mrf.mxu0
        %v1251 = vadd.f32 %v1151, %v1250
        %v1252 = vpop.f32.mrf.mxu0
        %v1253 = vpop.f32.mrf.mxu0
        %v1254 = vadd.f32 %v1154, %v1253
        %v1255 = vpop.f32.mrf.mxu0
        %1256 = vmatprep.mubr.bf16.mxu0 0
        %1257 = vmatmul.mubr.bf16.gmra.mxu0 %v1205
        %v1258 = vpop.f32.mrf.mxu0
        %v1259 = vadd.f32 %v1159, %v1258
        %v1260 = vpop.f32.mrf.mxu0
        %v1261 = vpop.f32.mrf.mxu0
        %v1262 = vadd.f32 %v1162, %v1261
        %v1263 = vpop.f32.mrf.mxu0
        %1264 = vmatprep.mubr.bf16.mxu0 0
        %1265 = vmatmul.mubr.bf16.gmra.mxu0 %v1208
        %v1266 = vpop.f32.mrf.mxu0
        %v1267 = vadd.f32 %v1167, %v1266
        %v1268 = vpop.f32.mrf.mxu0
        %v1269 = vpop.f32.mrf.mxu0
        %v1270 = vadd.f32 %v1170, %v1269
        %v1271 = vpop.f32.mrf.mxu0
        %1272 = vmatprep.mubr.bf16.mxu0 0
        %1273 = vmatmul.mubr.bf16.gmra.mxu0 %v1211
        %v1274 = vpop.f32.mrf.mxu0
        %v1275 = vadd.f32 %v1175, %v1274
        %v1276 = vpop.f32.mrf.mxu0
        %v1277 = vpop.f32.mrf.mxu0
        %v1278 = vadd.f32 %v1178, %v1277
        %v1279 = vpop.f32.mrf.mxu0
        %1280 = vdwg.mxu0
        %v1281 = vld [vmem:[%s972] sm:$0xe]
        %v1282 = vld [vmem:[%s972 + $0xc] sm:$0xe]
        %v1283 = vld [vmem:[%s972 + $0x18] sm:$0xe]
        %v1284 = vld [vmem:[%s972 + $0x24] sm:$0xe]
        %s1285 = scalar_lea.vmem %s2, 4
        %v1286 = vld [vmem:[%s1285] sm:$0x3]
        %vm1295 = vcmask 1042432
        %vm1296 = vcmask 1046532
        %vm1297 = vmor %vm1295, %vm1296
        %v1298 = vrot.slane %v1281, 5
        %v1299 = vrot.slane %v1298, 4
        %v1300 = vrot.slane %v974, 5
        %v1301 = vsel %vm1297, %v1299, %v1300
        %v1302 = vrot.slane %v1300, 4
        %v1303 = vrot.slane %v982, 5
        %v1304 = vsel %vm1297, %v1302, %v1303
        %v1305 = vrot.slane %v1282, 5
        %v1306 = vrot.slane %v1305, 4
        %v1307 = vrot.slane %v976, 5
        %v1308 = vsel %vm1297, %v1306, %v1307
        %v1309 = vrot.slane %v1307, 4
        %v1310 = vrot.slane %v983, 5
        %v1311 = vsel %vm1297, %v1309, %v1310
        %v1312 = vrot.slane %v1283, 5
        %v1313 = vrot.slane %v1312, 4
        %v1314 = vrot.slane %v978, 5
        %v1315 = vsel %vm1297, %v1313, %v1314
        %v1316 = vrot.slane %v1314, 4
        %v1317 = vrot.slane %v984, 5
        %v1318 = vsel %vm1297, %v1316, %v1317
        %v1319 = vrot.slane %v1284, 5
        %v1320 = vrot.slane %v1319, 4
        %v1321 = vrot.slane %v980, 5
        %v1322 = vsel %vm1297, %v1320, %v1321
        %v1323 = vrot.slane %v1321, 4
        %v1324 = vrot.slane %v985, 5
        %v1325 = vsel %vm1297, %v1323, %v1324
        %v1326 = vunpack.c.l.b16 %v1301
        %v1327 = vunpack.c.l.b16 %v1304
        %v1328 = vunpack.c.l.b16 %v1308
        %v1329 = vunpack.c.l.b16 %v1311
        %v1330 = vunpack.c.l.b16 %v1315
        %v1331 = vunpack.c.l.b16 %v1318
        %v1332 = vunpack.c.l.b16 %v1322
        %v1333 = vunpack.c.l.b16 %v1325
        %v1334 = vpack.c.b16 %v1327, %v1326
        %v1335 = vpack.c.b16 %v1329, %v1328
        %v1336 = vpack.c.b16 %v1331, %v1330
        %v1337 = vpack.c.b16 %v1333, %v1332
        %v1339 = vsel %vm1099, %v1334, 0
        %v1342 = vsel %vm1099, %v1335, 0
        %v1345 = vsel %vm1099, %v1336, 0
        %v1348 = vsel %vm1099, %v1337, 0
        %v1351 = vsel %vm1112, %v1286, 0
        %1353 = vmatprep.subr.bf16.mxu0 0
        %1354 = vmatpush1.bf16.msra.mxu0 0
        %1355 = vmatprep.subr.bf16.mxu0 0
        %1356 = vmatpush1.bf16.msra.mxu0 0
        %1357 = vmatprep.subr.bf16.mxu0 0
        %1358 = vmatpush1.bf16.msra.mxu0 0
        %1359 = vmatprep.subr.bf16.mxu0 0
        %1360 = vmatpush1.bf16.msra.mxu0 0
        %1361 = vmatprep.subr.bf16.mxu0 0
        %1362 = vmatpush1.bf16.msra.mxu0 0
        %1363 = vmatprep.subr.bf16.mxu0 0
        %1364 = vmatpush1.bf16.msra.mxu0 0
        %1365 = vmatprep.subr.bf16.mxu0 0
        %1366 = vmatpush1.bf16.msra.mxu0 0
        %1367 = vmatprep.subr.bf16.mxu0 0
        %1368 = vmatpush1.bf16.msra.mxu0 %v1351
        %1369 = vmatprep.subr.bf16.mxu0 0
        %1370 = vmatpush2.bf16.msra.mxu0 0
        %1371 = vmatprep.subr.bf16.mxu0 0
        %1372 = vmatpush2.bf16.msra.mxu0 0
        %1373 = vmatprep.subr.bf16.mxu0 0
        %1374 = vmatpush2.bf16.msra.mxu0 0
        %1375 = vmatprep.subr.bf16.mxu0 0
        %1376 = vmatpush2.bf16.msra.mxu0 0
        %1377 = vmatprep.subr.bf16.mxu0 0
        %1378 = vmatpush2.bf16.msra.mxu0 0
        %1379 = vmatprep.subr.bf16.mxu0 0
        %1380 = vmatpush2.bf16.msra.mxu0 0
        %1381 = vmatprep.subr.bf16.mxu0 0
        %1382 = vmatpush2.bf16.msra.mxu0 0
        %1383 = vmatprep.subr.bf16.mxu0 0
        %1384 = vmatpush2.bf16.msra.mxu0 0
        %1385 = vmatprep.mubr.bf16.mxu0 0
        %1386 = vmatmul.mubr.bf16.gmra.mxu0 %v1339
        %v1387 = vpop.f32.mrf.mxu0
        %v1388 = vadd.f32 0.0, %v1387
        %v1389 = vpop.f32.mrf.mxu0
        %v1390 = vpop.f32.mrf.mxu0
        %v1391 = vadd.f32 0.0, %v1390
        %v1392 = vpop.f32.mrf.mxu0
        %1393 = vmatprep.mubr.bf16.mxu0 0
        %1394 = vmatmul.mubr.bf16.gmra.mxu0 %v1342
        %v1395 = vpop.f32.mrf.mxu0
        %v1396 = vadd.f32 0.0, %v1395
        %v1397 = vpop.f32.mrf.mxu0
        %v1398 = vpop.f32.mrf.mxu0
        %v1399 = vadd.f32 0.0, %v1398
        %v1400 = vpop.f32.mrf.mxu0
        %1401 = vmatprep.mubr.bf16.mxu0 0
        %1402 = vmatmul.mubr.bf16.gmra.mxu0 %v1345
        %v1403 = vpop.f32.mrf.mxu0
        %v1404 = vadd.f32 0.0, %v1403
        %v1405 = vpop.f32.mrf.mxu0
        %v1406 = vpop.f32.mrf.mxu0
        %v1407 = vadd.f32 0.0, %v1406
        %v1408 = vpop.f32.mrf.mxu0
        %1409 = vmatprep.mubr.bf16.mxu0 0
        %1410 = vmatmul.mubr.bf16.gmra.mxu0 %v1348
        %v1411 = vpop.f32.mrf.mxu0
        %v1412 = vadd.f32 0.0, %v1411
        %v1413 = vpop.f32.mrf.mxu0
        %v1414 = vpop.f32.mrf.mxu0
        %v1415 = vadd.f32 0.0, %v1414
        %v1416 = vpop.f32.mrf.mxu0
        %1417 = vdwg.mxu0
        %v1418 = vadd.f32 %v1251, %v1388
        %v1419 = vadd.f32 %v1254, %v1391
        %v1420 = vadd.f32 %v1259, %v1396
        %v1421 = vadd.f32 %v1262, %v1399
        %v1422 = vadd.f32 %v1267, %v1404
        %v1423 = vadd.f32 %v1270, %v1407
        %v1424 = vadd.f32 %v1275, %v1412
        %v1425 = vadd.f32 %v1278, %v1415
        %s1426 = sadd.s32 %s969, 1
        %s1427 = smul.u32 %s1426, 3
        %s1428 = smul.addr %s1427, 4
        %s1429 = scalar_lea.vmem [#allocation2], %s1428
        %v1430 = vld [vmem:[%s1429] sm:$0xf]
        %v1431 = vld [vmem:[%s1429 + $0x4] sm:$0xf]
        %v1432 = vld [vmem:[%s1429 + $0xc] sm:$0xf]
        %v1433 = vld [vmem:[%s1429 + $0x10] sm:$0xf]
        %v1434 = vld [vmem:[%s1429 + $0x18] sm:$0xf]
        %v1435 = vld [vmem:[%s1429 + $0x1c] sm:$0xf]
        %v1436 = vld [vmem:[%s1429 + $0x24] sm:$0xf]
        %v1437 = vld [vmem:[%s1429 + $0x28] sm:$0xf]
        %s1438 = scalar_lea.vmem %s2, 6
        %v1439 = vld [vmem:[%s1438] sm:$0x3]
        %v1448 = vunpack.c.l.b16 %v1430
        %v1449 = vunpack.c.l.b16 %v1431
        %v1450 = vunpack.c.l.b16 %v1432
        %v1451 = vunpack.c.l.b16 %v1433
        %v1452 = vunpack.c.l.b16 %v1434
        %v1453 = vunpack.c.l.b16 %v1435
        %v1454 = vunpack.c.l.b16 %v1436
        %v1455 = vunpack.c.l.b16 %v1437
        %v1456 = vpack.c.b16 %v1449, %v1448
        %v1457 = vpack.c.b16 %v1451, %v1450
        %v1458 = vpack.c.b16 %v1453, %v1452
        %v1459 = vpack.c.b16 %v1455, %v1454
        %v1461 = vsel %vm1099, %v1456, 0
        %v1464 = vsel %vm1099, %v1457, 0
        %v1467 = vsel %vm1099, %v1458, 0
        %v1470 = vsel %vm1099, %v1459, 0
        %v1473 = vsel %vm1112, %v1439, 0
        %1475 = vmatprep.subr.bf16.mxu0 0
        %1476 = vmatpush1.bf16.msra.mxu0 0
        %1477 = vmatprep.subr.bf16.mxu0 0
        %1478 = vmatpush1.bf16.msra.mxu0 0
        %1479 = vmatprep.subr.bf16.mxu0 0
        %1480 = vmatpush1.bf16.msra.mxu0 0
        %1481 = vmatprep.subr.bf16.mxu0 0
        %1482 = vmatpush1.bf16.msra.mxu0 0
        %1483 = vmatprep.subr.bf16.mxu0 0
        %1484 = vmatpush1.bf16.msra.mxu0 0
        %1485 = vmatprep.subr.bf16.mxu0 0
        %1486 = vmatpush1.bf16.msra.mxu0 0
        %1487 = vmatprep.subr.bf16.mxu0 0
        %1488 = vmatpush1.bf16.msra.mxu0 0
        %1489 = vmatprep.subr.bf16.mxu0 0
        %1490 = vmatpush1.bf16.msra.mxu0 %v1473
        %1491 = vmatprep.subr.bf16.mxu0 0
        %1492 = vmatpush2.bf16.msra.mxu0 0
        %1493 = vmatprep.subr.bf16.mxu0 0
        %1494 = vmatpush2.bf16.msra.mxu0 0
        %1495 = vmatprep.subr.bf16.mxu0 0
        %1496 = vmatpush2.bf16.msra.mxu0 0
        %1497 = vmatprep.subr.bf16.mxu0 0
        %1498 = vmatpush2.bf16.msra.mxu0 0
        %1499 = vmatprep.subr.bf16.mxu0 0
        %1500 = vmatpush2.bf16.msra.mxu0 0
        %1501 = vmatprep.subr.bf16.mxu0 0
        %1502 = vmatpush2.bf16.msra.mxu0 0
        %1503 = vmatprep.subr.bf16.mxu0 0
        %1504 = vmatpush2.bf16.msra.mxu0 0
        %1505 = vmatprep.subr.bf16.mxu0 0
        %1506 = vmatpush2.bf16.msra.mxu0 0
        %1507 = vmatprep.mubr.bf16.mxu0 0
        %1508 = vmatmul.mubr.bf16.gmra.mxu0 %v1461
        %v1509 = vpop.f32.mrf.mxu0
        %v1510 = vadd.f32 0.0, %v1509
        %v1511 = vpop.f32.mrf.mxu0
        %v1512 = vpop.f32.mrf.mxu0
        %v1513 = vadd.f32 0.0, %v1512
        %v1514 = vpop.f32.mrf.mxu0
        %1515 = vmatprep.mubr.bf16.mxu0 0
        %1516 = vmatmul.mubr.bf16.gmra.mxu0 %v1464
        %v1517 = vpop.f32.mrf.mxu0
        %v1518 = vadd.f32 0.0, %v1517
        %v1519 = vpop.f32.mrf.mxu0
        %v1520 = vpop.f32.mrf.mxu0
        %v1521 = vadd.f32 0.0, %v1520
        %v1522 = vpop.f32.mrf.mxu0
        %1523 = vmatprep.mubr.bf16.mxu0 0
        %1524 = vmatmul.mubr.bf16.gmra.mxu0 %v1467
        %v1525 = vpop.f32.mrf.mxu0
        %v1526 = vadd.f32 0.0, %v1525
        %v1527 = vpop.f32.mrf.mxu0
        %v1528 = vpop.f32.mrf.mxu0
        %v1529 = vadd.f32 0.0, %v1528
        %v1530 = vpop.f32.mrf.mxu0
        %1531 = vmatprep.mubr.bf16.mxu0 0
        %1532 = vmatmul.mubr.bf16.gmra.mxu0 %v1470
        %v1533 = vpop.f32.mrf.mxu0
        %v1534 = vadd.f32 0.0, %v1533
        %v1535 = vpop.f32.mrf.mxu0
        %v1536 = vpop.f32.mrf.mxu0
        %v1537 = vadd.f32 0.0, %v1536
        %v1538 = vpop.f32.mrf.mxu0
        %1539 = vdwg.mxu0
        %v1540 = vadd.f32 %v1418, %v1510
        %v1541 = vadd.f32 %v1419, %v1513
        %v1542 = vadd.f32 %v1420, %v1518
        %v1543 = vadd.f32 %v1421, %v1521
        %v1544 = vadd.f32 %v1422, %v1526
        %v1545 = vadd.f32 %v1423, %v1529
        %v1546 = vadd.f32 %v1424, %v1534
        %v1547 = vadd.f32 %v1425, %v1537
        %v1548 = vld [vmem:[%s1429] sm:$0xf]
        %v1549 = vld [vmem:[%s1429 + $0x4] sm:$0xf]
        %v1550 = vld [vmem:[%s1429 + $0x8] sm:$0x1]
        %v1551 = vld [vmem:[%s1429 + $0xc] sm:$0xf]
        %v1552 = vld [vmem:[%s1429 + $0x10] sm:$0xf]
        %v1553 = vld [vmem:[%s1429 + $0x14] sm:$0x1]
        %v1554 = vld [vmem:[%s1429 + $0x18] sm:$0xf]
        %v1555 = vld [vmem:[%s1429 + $0x1c] sm:$0xf]
        %v1556 = vld [vmem:[%s1429 + $0x20] sm:$0x1]
        %v1557 = vld [vmem:[%s1429 + $0x24] sm:$0xf]
        %v1558 = vld [vmem:[%s1429 + $0x28] sm:$0xf]
        %v1559 = vld [vmem:[%s1429 + $0x2c] sm:$0x1]
        %s1560 = scalar_lea.vmem %s2, 8
        %v1561 = vld [vmem:[%s1560] sm:$0x3]
        %v1563 = vshrl.u32 %v1548, 16
        %v1565 = vrot.slane %v1563, 4
        %v1566 = vshll.u32 %v1548, 16
        %v1568 = vrot.slane %v1566, 5
        %v1569 = vor.u32 %v1565, %v1568
        %v1570 = vrot.slane %v1569, 4
        %v1572 = vshll.u32 %v1549, 16
        %v1574 = vrot.slane %v1572, 5
        %v1575 = vsel %vm990, %v1570, %v1574
        %v1576 = vshrl.u32 %v1549, 16
        %v1578 = vrot.slane %v1576, 4
        %v1579 = vor.u32 %v1578, %v1574
        %v1580 = vrot.slane %v1579, 4
        %v1582 = vshll.u32 %v1550, 16
        %v1584 = vrot.slane %v1582, 5
        %v1585 = vsel %vm990, %v1580, %v1584
        %v1587 = vshrl.u32 %v1551, 16
        %v1589 = vrot.slane %v1587, 4
        %v1590 = vshll.u32 %v1551, 16
        %v1592 = vrot.slane %v1590, 5
        %v1593 = vor.u32 %v1589, %v1592
        %v1594 = vrot.slane %v1593, 4
        %v1596 = vshll.u32 %v1552, 16
        %v1598 = vrot.slane %v1596, 5
        %v1599 = vsel %vm990, %v1594, %v1598
        %v1600 = vshrl.u32 %v1552, 16
        %v1602 = vrot.slane %v1600, 4
        %v1603 = vor.u32 %v1602, %v1598
        %v1604 = vrot.slane %v1603, 4
        %v1606 = vshll.u32 %v1553, 16
        %v1608 = vrot.slane %v1606, 5
        %v1609 = vsel %vm990, %v1604, %v1608
        %v1611 = vshrl.u32 %v1554, 16
        %v1613 = vrot.slane %v1611, 4
        %v1614 = vshll.u32 %v1554, 16
        %v1616 = vrot.slane %v1614, 5
        %v1617 = vor.u32 %v1613, %v1616
        %v1618 = vrot.slane %v1617, 4
        %v1620 = vshll.u32 %v1555, 16
        %v1622 = vrot.slane %v1620, 5
        %v1623 = vsel %vm990, %v1618, %v1622
        %v1624 = vshrl.u32 %v1555, 16
        %v1626 = vrot.slane %v1624, 4
        %v1627 = vor.u32 %v1626, %v1622
        %v1628 = vrot.slane %v1627, 4
        %v1630 = vshll.u32 %v1556, 16
        %v1632 = vrot.slane %v1630, 5
        %v1633 = vsel %vm990, %v1628, %v1632
        %v1635 = vshrl.u32 %v1557, 16
        %v1637 = vrot.slane %v1635, 4
        %v1638 = vshll.u32 %v1557, 16
        %v1640 = vrot.slane %v1638, 5
        %v1641 = vor.u32 %v1637, %v1640
        %v1642 = vrot.slane %v1641, 4
        %v1644 = vshll.u32 %v1558, 16
        %v1646 = vrot.slane %v1644, 5
        %v1647 = vsel %vm990, %v1642, %v1646
        %v1648 = vshrl.u32 %v1558, 16
        %v1650 = vrot.slane %v1648, 4
        %v1651 = vor.u32 %v1650, %v1646
        %v1652 = vrot.slane %v1651, 4
        %v1654 = vshll.u32 %v1559, 16
        %v1656 = vrot.slane %v1654, 5
        %v1657 = vsel %vm990, %v1652, %v1656
        %v1658 = vunpack.c.l.b16 %v1575
        %v1659 = vunpack.c.l.b16 %v1585
        %v1660 = vunpack.c.l.b16 %v1599
        %v1661 = vunpack.c.l.b16 %v1609
        %v1662 = vunpack.c.l.b16 %v1623
        %v1663 = vunpack.c.l.b16 %v1633
        %v1664 = vunpack.c.l.b16 %v1647
        %v1665 = vunpack.c.l.b16 %v1657
        %v1666 = vpack.c.b16 %v1659, %v1658
        %v1667 = vpack.c.b16 %v1661, %v1660
        %v1668 = vpack.c.b16 %v1663, %v1662
        %v1669 = vpack.c.b16 %v1665, %v1664
        %v1671 = vsel %vm1099, %v1666, 0
        %v1674 = vsel %vm1099, %v1667, 0
        %v1677 = vsel %vm1099, %v1668, 0
        %v1680 = vsel %vm1099, %v1669, 0
        %v1683 = vsel %vm1112, %v1561, 0
        %1685 = vmatprep.subr.bf16.mxu0 0
        %1686 = vmatpush1.bf16.msra.mxu0 0
        %1687 = vmatprep.subr.bf16.mxu0 0
        %1688 = vmatpush1.bf16.msra.mxu0 0
        %1689 = vmatprep.subr.bf16.mxu0 0
        %1690 = vmatpush1.bf16.msra.mxu0 0
        %1691 = vmatprep.subr.bf16.mxu0 0
        %1692 = vmatpush1.bf16.msra.mxu0 0
        %1693 = vmatprep.subr.bf16.mxu0 0
        %1694 = vmatpush1.bf16.msra.mxu0 0
        %1695 = vmatprep.subr.bf16.mxu0 0
        %1696 = vmatpush1.bf16.msra.mxu0 0
        %1697 = vmatprep.subr.bf16.mxu0 0
        %1698 = vmatpush1.bf16.msra.mxu0 0
        %1699 = vmatprep.subr.bf16.mxu0 0
        %1700 = vmatpush1.bf16.msra.mxu0 %v1683
        %1701 = vmatprep.subr.bf16.mxu0 0
        %1702 = vmatpush2.bf16.msra.mxu0 0
        %1703 = vmatprep.subr.bf16.mxu0 0
        %1704 = vmatpush2.bf16.msra.mxu0 0
        %1705 = vmatprep.subr.bf16.mxu0 0
        %1706 = vmatpush2.bf16.msra.mxu0 0
        %1707 = vmatprep.subr.bf16.mxu0 0
        %1708 = vmatpush2.bf16.msra.mxu0 0
        %1709 = vmatprep.subr.bf16.mxu0 0
        %1710 = vmatpush2.bf16.msra.mxu0 0
        %1711 = vmatprep.subr.bf16.mxu0 0
        %1712 = vmatpush2.bf16.msra.mxu0 0
        %1713 = vmatprep.subr.bf16.mxu0 0
        %1714 = vmatpush2.bf16.msra.mxu0 0
        %1715 = vmatprep.subr.bf16.mxu0 0
        %1716 = vmatpush2.bf16.msra.mxu0 0
        %1717 = vmatprep.mubr.bf16.mxu0 0
        %1718 = vmatmul.mubr.bf16.gmra.mxu0 %v1671
        %v1719 = vpop.f32.mrf.mxu0
        %v1720 = vadd.f32 0.0, %v1719
        %v1721 = vpop.f32.mrf.mxu0
        %v1722 = vpop.f32.mrf.mxu0
        %v1723 = vadd.f32 0.0, %v1722
        %v1724 = vpop.f32.mrf.mxu0
        %1725 = vmatprep.mubr.bf16.mxu0 0
        %1726 = vmatmul.mubr.bf16.gmra.mxu0 %v1674
        %v1727 = vpop.f32.mrf.mxu0
        %v1728 = vadd.f32 0.0, %v1727
        %v1729 = vpop.f32.mrf.mxu0
        %v1730 = vpop.f32.mrf.mxu0
        %v1731 = vadd.f32 0.0, %v1730
        %v1732 = vpop.f32.mrf.mxu0
        %1733 = vmatprep.mubr.bf16.mxu0 0
        %1734 = vmatmul.mubr.bf16.gmra.mxu0 %v1677
        %v1735 = vpop.f32.mrf.mxu0
        %v1736 = vadd.f32 0.0, %v1735
        %v1737 = vpop.f32.mrf.mxu0
        %v1738 = vpop.f32.mrf.mxu0
        %v1739 = vadd.f32 0.0, %v1738
        %v1740 = vpop.f32.mrf.mxu0
        %1741 = vmatprep.mubr.bf16.mxu0 0
        %1742 = vmatmul.mubr.bf16.gmra.mxu0 %v1680
        %v1743 = vpop.f32.mrf.mxu0
        %v1744 = vadd.f32 0.0, %v1743
        %v1745 = vpop.f32.mrf.mxu0
        %v1746 = vpop.f32.mrf.mxu0
        %v1747 = vadd.f32 0.0, %v1746
        %v1748 = vpop.f32.mrf.mxu0
        %1749 = vdwg.mxu0
        %v1750 = vadd.f32 %v1540, %v1720
        %v1751 = vadd.f32 %v1541, %v1723
        %v1752 = vadd.f32 %v1542, %v1728
        %v1753 = vadd.f32 %v1543, %v1731
        %v1754 = vadd.f32 %v1544, %v1736
        %v1755 = vadd.f32 %v1545, %v1739
        %v1756 = vadd.f32 %v1546, %v1744
        %v1757 = vadd.f32 %v1547, %v1747
        %v1758 = vld [vmem:[%s1429] sm:$0xe]
        %v1759 = vld [vmem:[%s1429 + $0xc] sm:$0xe]
        %v1760 = vld [vmem:[%s1429 + $0x18] sm:$0xe]
        %v1761 = vld [vmem:[%s1429 + $0x24] sm:$0xe]
        %s1762 = scalar_lea.vmem %s2, 10
        %v1763 = vld [vmem:[%s1762] sm:$0x3]
        %v1776 = vrot.slane %v1758, 5
        %v1777 = vrot.slane %v1776, 4
        %v1778 = vrot.slane %v1549, 5
        %v1779 = vsel %vm1297, %v1777, %v1778
        %v1780 = vrot.slane %v1778, 4
        %v1781 = vrot.slane %v1550, 5
        %v1782 = vsel %vm1297, %v1780, %v1781
        %v1783 = vrot.slane %v1759, 5
        %v1784 = vrot.slane %v1783, 4
        %v1785 = vrot.slane %v1552, 5
        %v1786 = vsel %vm1297, %v1784, %v1785
        %v1787 = vrot.slane %v1785, 4
        %v1788 = vrot.slane %v1553, 5
        %v1789 = vsel %vm1297, %v1787, %v1788
        %v1790 = vrot.slane %v1760, 5
        %v1791 = vrot.slane %v1790, 4
        %v1792 = vrot.slane %v1555, 5
        %v1793 = vsel %vm1297, %v1791, %v1792
        %v1794 = vrot.slane %v1792, 4
        %v1795 = vrot.slane %v1556, 5
        %v1796 = vsel %vm1297, %v1794, %v1795
        %v1797 = vrot.slane %v1761, 5
        %v1798 = vrot.slane %v1797, 4
        %v1799 = vrot.slane %v1558, 5
        %v1800 = vsel %vm1297, %v1798, %v1799
        %v1801 = vrot.slane %v1799, 4
        %v1802 = vrot.slane %v1559, 5
        %v1803 = vsel %vm1297, %v1801, %v1802
        %v1804 = vunpack.c.l.b16 %v1779
        %v1805 = vunpack.c.l.b16 %v1782
        %v1806 = vunpack.c.l.b16 %v1786
        %v1807 = vunpack.c.l.b16 %v1789
        %v1808 = vunpack.c.l.b16 %v1793
        %v1809 = vunpack.c.l.b16 %v1796
        %v1810 = vunpack.c.l.b16 %v1800
        %v1811 = vunpack.c.l.b16 %v1803
        %v1812 = vpack.c.b16 %v1805, %v1804
        %v1813 = vpack.c.b16 %v1807, %v1806
        %v1814 = vpack.c.b16 %v1809, %v1808
        %v1815 = vpack.c.b16 %v1811, %v1810
        %v1817 = vsel %vm1099, %v1812, 0
        %v1820 = vsel %vm1099, %v1813, 0
        %v1823 = vsel %vm1099, %v1814, 0
        %v1826 = vsel %vm1099, %v1815, 0
        %v1829 = vsel %vm1112, %v1763, 0
        %1831 = vmatprep.subr.bf16.mxu0 0
        %1832 = vmatpush1.bf16.msra.mxu0 0
        %1833 = vmatprep.subr.bf16.mxu0 0
        %1834 = vmatpush1.bf16.msra.mxu0 0
        %1835 = vmatprep.subr.bf16.mxu0 0
        %1836 = vmatpush1.bf16.msra.mxu0 0
        %1837 = vmatprep.subr.bf16.mxu0 0
        %1838 = vmatpush1.bf16.msra.mxu0 0
        %1839 = vmatprep.subr.bf16.mxu0 0
        %1840 = vmatpush1.bf16.msra.mxu0 0
        %1841 = vmatprep.subr.bf16.mxu0 0
        %1842 = vmatpush1.bf16.msra.mxu0 0
        %1843 = vmatprep.subr.bf16.mxu0 0
        %1844 = vmatpush1.bf16.msra.mxu0 0
        %1845 = vmatprep.subr.bf16.mxu0 0
        %1846 = vmatpush1.bf16.msra.mxu0 %v1829
        %1847 = vmatprep.subr.bf16.mxu0 0
        %1848 = vmatpush2.bf16.msra.mxu0 0
        %1849 = vmatprep.subr.bf16.mxu0 0
        %1850 = vmatpush2.bf16.msra.mxu0 0
        %1851 = vmatprep.subr.bf16.mxu0 0
        %1852 = vmatpush2.bf16.msra.mxu0 0
        %1853 = vmatprep.subr.bf16.mxu0 0
        %1854 = vmatpush2.bf16.msra.mxu0 0
        %1855 = vmatprep.subr.bf16.mxu0 0
        %1856 = vmatpush2.bf16.msra.mxu0 0
        %1857 = vmatprep.subr.bf16.mxu0 0
        %1858 = vmatpush2.bf16.msra.mxu0 0
        %1859 = vmatprep.subr.bf16.mxu0 0
        %1860 = vmatpush2.bf16.msra.mxu0 0
        %1861 = vmatprep.subr.bf16.mxu0 0
        %1862 = vmatpush2.bf16.msra.mxu0 0
        %1863 = vmatprep.mubr.bf16.mxu0 0
        %1864 = vmatmul.mubr.bf16.gmra.mxu0 %v1817
        %v1865 = vpop.f32.mrf.mxu0
        %v1866 = vadd.f32 0.0, %v1865
        %v1867 = vpop.f32.mrf.mxu0
        %v1868 = vpop.f32.mrf.mxu0
        %v1869 = vadd.f32 0.0, %v1868
        %v1870 = vpop.f32.mrf.mxu0
        %1871 = vmatprep.mubr.bf16.mxu0 0
        %1872 = vmatmul.mubr.bf16.gmra.mxu0 %v1820
        %v1873 = vpop.f32.mrf.mxu0
        %v1874 = vadd.f32 0.0, %v1873
        %v1875 = vpop.f32.mrf.mxu0
        %v1876 = vpop.f32.mrf.mxu0
        %v1877 = vadd.f32 0.0, %v1876
        %v1878 = vpop.f32.mrf.mxu0
        %1879 = vmatprep.mubr.bf16.mxu0 0
        %1880 = vmatmul.mubr.bf16.gmra.mxu0 %v1823
        %v1881 = vpop.f32.mrf.mxu0
        %v1882 = vadd.f32 0.0, %v1881
        %v1883 = vpop.f32.mrf.mxu0
        %v1884 = vpop.f32.mrf.mxu0
        %v1885 = vadd.f32 0.0, %v1884
        %v1886 = vpop.f32.mrf.mxu0
        %1887 = vmatprep.mubr.bf16.mxu0 0
        %1888 = vmatmul.mubr.bf16.gmra.mxu0 %v1826
        %v1889 = vpop.f32.mrf.mxu0
        %v1890 = vadd.f32 0.0, %v1889
        %v1891 = vpop.f32.mrf.mxu0
        %v1892 = vpop.f32.mrf.mxu0
        %v1893 = vadd.f32 0.0, %v1892
        %v1894 = vpop.f32.mrf.mxu0
        %1895 = vdwg.mxu0
        %v1896 = vadd.f32 %v1750, %v1866
        %v1897 = vadd.f32 %v1751, %v1869
        %v1898 = vadd.f32 %v1752, %v1874
        %v1899 = vadd.f32 %v1753, %v1877
        %v1900 = vadd.f32 %v1754, %v1882
        %v1901 = vadd.f32 %v1755, %v1885
        %v1902 = vadd.f32 %v1756, %v1890
        %v1903 = vadd.f32 %v1757, %v1893
        %s1904 = sadd.s32 %s969, 2
        %s1905 = smul.u32 %s1904, 3
        %s1906 = smul.addr %s1905, 4
        %s1907 = scalar_lea.vmem [#allocation2], %s1906
        %v1908 = vld [vmem:[%s1907] sm:$0xf]
        %v1909 = vld [vmem:[%s1907 + $0x4] sm:$0xf]
        %v1910 = vld [vmem:[%s1907 + $0xc] sm:$0xf]
        %v1911 = vld [vmem:[%s1907 + $0x10] sm:$0xf]
        %v1912 = vld [vmem:[%s1907 + $0x18] sm:$0xf]
        %v1913 = vld [vmem:[%s1907 + $0x1c] sm:$0xf]
        %v1914 = vld [vmem:[%s1907 + $0x24] sm:$0xf]
        %v1915 = vld [vmem:[%s1907 + $0x28] sm:$0xf]
        %s1916 = scalar_lea.vmem %s2, 12
        %v1917 = vld [vmem:[%s1916] sm:$0x3]
        %v1926 = vunpack.c.l.b16 %v1908
        %v1927 = vunpack.c.l.b16 %v1909
        %v1928 = vunpack.c.l.b16 %v1910
        %v1929 = vunpack.c.l.b16 %v1911
        %v1930 = vunpack.c.l.b16 %v1912
        %v1931 = vunpack.c.l.b16 %v1913
        %v1932 = vunpack.c.l.b16 %v1914
        %v1933 = vunpack.c.l.b16 %v1915
        %v1934 = vpack.c.b16 %v1927, %v1926
        %v1935 = vpack.c.b16 %v1929, %v1928
        %v1936 = vpack.c.b16 %v1931, %v1930
        %v1937 = vpack.c.b16 %v1933, %v1932
        %v1939 = vsel %vm1099, %v1934, 0
        %v1942 = vsel %vm1099, %v1935, 0
        %v1945 = vsel %vm1099, %v1936, 0
        %v1948 = vsel %vm1099, %v1937, 0
        %v1951 = vsel %vm1112, %v1917, 0
        %1953 = vmatprep.subr.bf16.mxu0 0
        %1954 = vmatpush1.bf16.msra.mxu0 0
        %1955 = vmatprep.subr.bf16.mxu0 0
        %1956 = vmatpush1.bf16.msra.mxu0 0
        %1957 = vmatprep.subr.bf16.mxu0 0
        %1958 = vmatpush1.bf16.msra.mxu0 0
        %1959 = vmatprep.subr.bf16.mxu0 0
        %1960 = vmatpush1.bf16.msra.mxu0 0
        %1961 = vmatprep.subr.bf16.mxu0 0
        %1962 = vmatpush1.bf16.msra.mxu0 0
        %1963 = vmatprep.subr.bf16.mxu0 0
        %1964 = vmatpush1.bf16.msra.mxu0 0
        %1965 = vmatprep.subr.bf16.mxu0 0
        %1966 = vmatpush1.bf16.msra.mxu0 0
        %1967 = vmatprep.subr.bf16.mxu0 0
        %1968 = vmatpush1.bf16.msra.mxu0 %v1951
        %1969 = vmatprep.subr.bf16.mxu0 0
        %1970 = vmatpush2.bf16.msra.mxu0 0
        %1971 = vmatprep.subr.bf16.mxu0 0
        %1972 = vmatpush2.bf16.msra.mxu0 0
        %1973 = vmatprep.subr.bf16.mxu0 0
        %1974 = vmatpush2.bf16.msra.mxu0 0
        %1975 = vmatprep.subr.bf16.mxu0 0
        %1976 = vmatpush2.bf16.msra.mxu0 0
        %1977 = vmatprep.subr.bf16.mxu0 0
        %1978 = vmatpush2.bf16.msra.mxu0 0
        %1979 = vmatprep.subr.bf16.mxu0 0
        %1980 = vmatpush2.bf16.msra.mxu0 0
        %1981 = vmatprep.subr.bf16.mxu0 0
        %1982 = vmatpush2.bf16.msra.mxu0 0
        %1983 = vmatprep.subr.bf16.mxu0 0
        %1984 = vmatpush2.bf16.msra.mxu0 0
        %1985 = vmatprep.mubr.bf16.mxu0 0
        %1986 = vmatmul.mubr.bf16.gmra.mxu0 %v1939
        %v1987 = vpop.f32.mrf.mxu0
        %v1988 = vadd.f32 0.0, %v1987
        %v1989 = vpop.f32.mrf.mxu0
        %v1990 = vpop.f32.mrf.mxu0
        %v1991 = vadd.f32 0.0, %v1990
        %v1992 = vpop.f32.mrf.mxu0
        %1993 = vmatprep.mubr.bf16.mxu0 0
        %1994 = vmatmul.mubr.bf16.gmra.mxu0 %v1942
        %v1995 = vpop.f32.mrf.mxu0
        %v1996 = vadd.f32 0.0, %v1995
        %v1997 = vpop.f32.mrf.mxu0
        %v1998 = vpop.f32.mrf.mxu0
        %v1999 = vadd.f32 0.0, %v1998
        %v2000 = vpop.f32.mrf.mxu0
        %2001 = vmatprep.mubr.bf16.mxu0 0
        %2002 = vmatmul.mubr.bf16.gmra.mxu0 %v1945
        %v2003 = vpop.f32.mrf.mxu0
        %v2004 = vadd.f32 0.0, %v2003
        %v2005 = vpop.f32.mrf.mxu0
        %v2006 = vpop.f32.mrf.mxu0
        %v2007 = vadd.f32 0.0, %v2006
        %v2008 = vpop.f32.mrf.mxu0
        %2009 = vmatprep.mubr.bf16.mxu0 0
        %2010 = vmatmul.mubr.bf16.gmra.mxu0 %v1948
        %v2011 = vpop.f32.mrf.mxu0
        %v2012 = vadd.f32 0.0, %v2011
        %v2013 = vpop.f32.mrf.mxu0
        %v2014 = vpop.f32.mrf.mxu0
        %v2015 = vadd.f32 0.0, %v2014
        %v2016 = vpop.f32.mrf.mxu0
        %2017 = vdwg.mxu0
        %v2018 = vadd.f32 %v1896, %v1988
        %v2019 = vadd.f32 %v1897, %v1991
        %v2020 = vadd.f32 %v1898, %v1996
        %v2021 = vadd.f32 %v1899, %v1999
        %v2022 = vadd.f32 %v1900, %v2004
        %v2023 = vadd.f32 %v1901, %v2007
        %v2024 = vadd.f32 %v1902, %v2012
        %v2025 = vadd.f32 %v1903, %v2015
        %v2026 = vld [vmem:[%s1907] sm:$0xf]
        %v2027 = vld [vmem:[%s1907 + $0x4] sm:$0xf]
        %v2028 = vld [vmem:[%s1907 + $0x8] sm:$0x1]
        %v2029 = vld [vmem:[%s1907 + $0xc] sm:$0xf]
        %v2030 = vld [vmem:[%s1907 + $0x10] sm:$0xf]
        %v2031 = vld [vmem:[%s1907 + $0x14] sm:$0x1]
        %v2032 = vld [vmem:[%s1907 + $0x18] sm:$0xf]
        %v2033 = vld [vmem:[%s1907 + $0x1c] sm:$0xf]
        %v2034 = vld [vmem:[%s1907 + $0x20] sm:$0x1]
        %v2035 = vld [vmem:[%s1907 + $0x24] sm:$0xf]
        %v2036 = vld [vmem:[%s1907 + $0x28] sm:$0xf]
        %v2037 = vld [vmem:[%s1907 + $0x2c] sm:$0x1]
        %s2038 = scalar_lea.vmem %s2, 14
        %v2039 = vld [vmem:[%s2038] sm:$0x3]
        %v2041 = vshrl.u32 %v2026, 16
        %v2043 = vrot.slane %v2041, 4
        %v2044 = vshll.u32 %v2026, 16
        %v2046 = vrot.slane %v2044, 5
        %v2047 = vor.u32 %v2043, %v2046
        %v2048 = vrot.slane %v2047, 4
        %v2050 = vshll.u32 %v2027, 16
        %v2052 = vrot.slane %v2050, 5
        %v2053 = vsel %vm990, %v2048, %v2052
        %v2054 = vshrl.u32 %v2027, 16
        %v2056 = vrot.slane %v2054, 4
        %v2057 = vor.u32 %v2056, %v2052
        %v2058 = vrot.slane %v2057, 4
        %v2060 = vshll.u32 %v2028, 16
        %v2062 = vrot.slane %v2060, 5
        %v2063 = vsel %vm990, %v2058, %v2062
        %v2065 = vshrl.u32 %v2029, 16
        %v2067 = vrot.slane %v2065, 4
        %v2068 = vshll.u32 %v2029, 16
        %v2070 = vrot.slane %v2068, 5
        %v2071 = vor.u32 %v2067, %v2070
        %v2072 = vrot.slane %v2071, 4
        %v2074 = vshll.u32 %v2030, 16
        %v2076 = vrot.slane %v2074, 5
        %v2077 = vsel %vm990, %v2072, %v2076
        %v2078 = vshrl.u32 %v2030, 16
        %v2080 = vrot.slane %v2078, 4
        %v2081 = vor.u32 %v2080, %v2076
        %v2082 = vrot.slane %v2081, 4
        %v2084 = vshll.u32 %v2031, 16
        %v2086 = vrot.slane %v2084, 5
        %v2087 = vsel %vm990, %v2082, %v2086
        %v2089 = vshrl.u32 %v2032, 16
        %v2091 = vrot.slane %v2089, 4
        %v2092 = vshll.u32 %v2032, 16
        %v2094 = vrot.slane %v2092, 5
        %v2095 = vor.u32 %v2091, %v2094
        %v2096 = vrot.slane %v2095, 4
        %v2098 = vshll.u32 %v2033, 16
        %v2100 = vrot.slane %v2098, 5
        %v2101 = vsel %vm990, %v2096, %v2100
        %v2102 = vshrl.u32 %v2033, 16
        %v2104 = vrot.slane %v2102, 4
        %v2105 = vor.u32 %v2104, %v2100
        %v2106 = vrot.slane %v2105, 4
        %v2108 = vshll.u32 %v2034, 16
        %v2110 = vrot.slane %v2108, 5
        %v2111 = vsel %vm990, %v2106, %v2110
        %v2113 = vshrl.u32 %v2035, 16
        %v2115 = vrot.slane %v2113, 4
        %v2116 = vshll.u32 %v2035, 16
        %v2118 = vrot.slane %v2116, 5
        %v2119 = vor.u32 %v2115, %v2118
        %v2120 = vrot.slane %v2119, 4
        %v2122 = vshll.u32 %v2036, 16
        %v2124 = vrot.slane %v2122, 5
        %v2125 = vsel %vm990, %v2120, %v2124
        %v2126 = vshrl.u32 %v2036, 16
        %v2128 = vrot.slane %v2126, 4
        %v2129 = vor.u32 %v2128, %v2124
        %v2130 = vrot.slane %v2129, 4
        %v2132 = vshll.u32 %v2037, 16
        %v2134 = vrot.slane %v2132, 5
        %v2135 = vsel %vm990, %v2130, %v2134
        %v2136 = vunpack.c.l.b16 %v2053
        %v2137 = vunpack.c.l.b16 %v2063
        %v2138 = vunpack.c.l.b16 %v2077
        %v2139 = vunpack.c.l.b16 %v2087
        %v2140 = vunpack.c.l.b16 %v2101
        %v2141 = vunpack.c.l.b16 %v2111
        %v2142 = vunpack.c.l.b16 %v2125
        %v2143 = vunpack.c.l.b16 %v2135
        %v2144 = vpack.c.b16 %v2137, %v2136
        %v2145 = vpack.c.b16 %v2139, %v2138
        %v2146 = vpack.c.b16 %v2141, %v2140
        %v2147 = vpack.c.b16 %v2143, %v2142
        %v2149 = vsel %vm1099, %v2144, 0
        %v2152 = vsel %vm1099, %v2145, 0
        %v2155 = vsel %vm1099, %v2146, 0
        %v2158 = vsel %vm1099, %v2147, 0
        %v2161 = vsel %vm1112, %v2039, 0
        %2163 = vmatprep.subr.bf16.mxu0 0
        %2164 = vmatpush1.bf16.msra.mxu0 0
        %2165 = vmatprep.subr.bf16.mxu0 0
        %2166 = vmatpush1.bf16.msra.mxu0 0
        %2167 = vmatprep.subr.bf16.mxu0 0
        %2168 = vmatpush1.bf16.msra.mxu0 0
        %2169 = vmatprep.subr.bf16.mxu0 0
        %2170 = vmatpush1.bf16.msra.mxu0 0
        %2171 = vmatprep.subr.bf16.mxu0 0
        %2172 = vmatpush1.bf16.msra.mxu0 0
        %2173 = vmatprep.subr.bf16.mxu0 0
        %2174 = vmatpush1.bf16.msra.mxu0 0
        %2175 = vmatprep.subr.bf16.mxu0 0
        %2176 = vmatpush1.bf16.msra.mxu0 0
        %2177 = vmatprep.subr.bf16.mxu0 0
        %2178 = vmatpush1.bf16.msra.mxu0 %v2161
        %2179 = vmatprep.subr.bf16.mxu0 0
        %2180 = vmatpush2.bf16.msra.mxu0 0
        %2181 = vmatprep.subr.bf16.mxu0 0
        %2182 = vmatpush2.bf16.msra.mxu0 0
        %2183 = vmatprep.subr.bf16.mxu0 0
        %2184 = vmatpush2.bf16.msra.mxu0 0
        %2185 = vmatprep.subr.bf16.mxu0 0
        %2186 = vmatpush2.bf16.msra.mxu0 0
        %2187 = vmatprep.subr.bf16.mxu0 0
        %2188 = vmatpush2.bf16.msra.mxu0 0
        %2189 = vmatprep.subr.bf16.mxu0 0
        %2190 = vmatpush2.bf16.msra.mxu0 0
        %2191 = vmatprep.subr.bf16.mxu0 0
        %2192 = vmatpush2.bf16.msra.mxu0 0
        %2193 = vmatprep.subr.bf16.mxu0 0
        %2194 = vmatpush2.bf16.msra.mxu0 0
        %2195 = vmatprep.mubr.bf16.mxu0 0
        %2196 = vmatmul.mubr.bf16.gmra.mxu0 %v2149
        %v2197 = vpop.f32.mrf.mxu0
        %v2198 = vadd.f32 0.0, %v2197
        %v2199 = vpop.f32.mrf.mxu0
        %v2200 = vpop.f32.mrf.mxu0
        %v2201 = vadd.f32 0.0, %v2200
        %v2202 = vpop.f32.mrf.mxu0
        %2203 = vmatprep.mubr.bf16.mxu0 0
        %2204 = vmatmul.mubr.bf16.gmra.mxu0 %v2152
        %v2205 = vpop.f32.mrf.mxu0
        %v2206 = vadd.f32 0.0, %v2205
        %v2207 = vpop.f32.mrf.mxu0
        %v2208 = vpop.f32.mrf.mxu0
        %v2209 = vadd.f32 0.0, %v2208
        %v2210 = vpop.f32.mrf.mxu0
        %2211 = vmatprep.mubr.bf16.mxu0 0
        %2212 = vmatmul.mubr.bf16.gmra.mxu0 %v2155
        %v2213 = vpop.f32.mrf.mxu0
        %v2214 = vadd.f32 0.0, %v2213
        %v2215 = vpop.f32.mrf.mxu0
        %v2216 = vpop.f32.mrf.mxu0
        %v2217 = vadd.f32 0.0, %v2216
        %v2218 = vpop.f32.mrf.mxu0
        %2219 = vmatprep.mubr.bf16.mxu0 0
        %2220 = vmatmul.mubr.bf16.gmra.mxu0 %v2158
        %v2221 = vpop.f32.mrf.mxu0
        %v2222 = vadd.f32 0.0, %v2221
        %v2223 = vpop.f32.mrf.mxu0
        %v2224 = vpop.f32.mrf.mxu0
        %v2225 = vadd.f32 0.0, %v2224
        %v2226 = vpop.f32.mrf.mxu0
        %2227 = vdwg.mxu0
        %v2228 = vadd.f32 %v2018, %v2198
        %v2229 = vadd.f32 %v2019, %v2201
        %v2230 = vadd.f32 %v2020, %v2206
        %v2231 = vadd.f32 %v2021, %v2209
        %v2232 = vadd.f32 %v2022, %v2214
        %v2233 = vadd.f32 %v2023, %v2217
        %v2234 = vadd.f32 %v2024, %v2222
        %v2235 = vadd.f32 %v2025, %v2225
        %v2236 = vld [vmem:[%s1907] sm:$0xe]
        %v2237 = vld [vmem:[%s1907 + $0xc] sm:$0xe]
        %v2238 = vld [vmem:[%s1907 + $0x18] sm:$0xe]
        %v2239 = vld [vmem:[%s1907 + $0x24] sm:$0xe]
        %s2240 = scalar_lea.vmem %s2, 16
        %v2241 = vld [vmem:[%s2240] sm:$0x3]
        %v2254 = vrot.slane %v2236, 5
        %v2255 = vrot.slane %v2254, 4
        %v2256 = vrot.slane %v2027, 5
        %v2257 = vsel %vm1297, %v2255, %v2256
        %v2258 = vrot.slane %v2256, 4
        %v2259 = vrot.slane %v2028, 5
        %v2260 = vsel %vm1297, %v2258, %v2259
        %v2261 = vrot.slane %v2237, 5
        %v2262 = vrot.slane %v2261, 4
        %v2263 = vrot.slane %v2030, 5
        %v2264 = vsel %vm1297, %v2262, %v2263
        %v2265 = vrot.slane %v2263, 4
        %v2266 = vrot.slane %v2031, 5
        %v2267 = vsel %vm1297, %v2265, %v2266
        %v2268 = vrot.slane %v2238, 5
        %v2269 = vrot.slane %v2268, 4
        %v2270 = vrot.slane %v2033, 5
        %v2271 = vsel %vm1297, %v2269, %v2270
        %v2272 = vrot.slane %v2270, 4
        %v2273 = vrot.slane %v2034, 5
        %v2274 = vsel %vm1297, %v2272, %v2273
        %v2275 = vrot.slane %v2239, 5
        %v2276 = vrot.slane %v2275, 4
        %v2277 = vrot.slane %v2036, 5
        %v2278 = vsel %vm1297, %v2276, %v2277
        %v2279 = vrot.slane %v2277, 4
        %v2280 = vrot.slane %v2037, 5
        %v2281 = vsel %vm1297, %v2279, %v2280
        %v2282 = vunpack.c.l.b16 %v2257
        %v2283 = vunpack.c.l.b16 %v2260
        %v2284 = vunpack.c.l.b16 %v2264
        %v2285 = vunpack.c.l.b16 %v2267
        %v2286 = vunpack.c.l.b16 %v2271
        %v2287 = vunpack.c.l.b16 %v2274
        %v2288 = vunpack.c.l.b16 %v2278
        %v2289 = vunpack.c.l.b16 %v2281
        %v2290 = vpack.c.b16 %v2283, %v2282
        %v2291 = vpack.c.b16 %v2285, %v2284
        %v2292 = vpack.c.b16 %v2287, %v2286
        %v2293 = vpack.c.b16 %v2289, %v2288
        %v2295 = vsel %vm1099, %v2290, 0
        %v2298 = vsel %vm1099, %v2291, 0
        %v2301 = vsel %vm1099, %v2292, 0
        %v2304 = vsel %vm1099, %v2293, 0
        %v2307 = vsel %vm1112, %v2241, 0
        %2309 = vmatprep.subr.bf16.mxu0 0
        %2310 = vmatpush1.bf16.msra.mxu0 0
        %2311 = vmatprep.subr.bf16.mxu0 0
        %2312 = vmatpush1.bf16.msra.mxu0 0
        %2313 = vmatprep.subr.bf16.mxu0 0
        %2314 = vmatpush1.bf16.msra.mxu0 0
        %2315 = vmatprep.subr.bf16.mxu0 0
        %2316 = vmatpush1.bf16.msra.mxu0 0
        %2317 = vmatprep.subr.bf16.mxu0 0
        %2318 = vmatpush1.bf16.msra.mxu0 0
        %2319 = vmatprep.subr.bf16.mxu0 0
        %2320 = vmatpush1.bf16.msra.mxu0 0
        %2321 = vmatprep.subr.bf16.mxu0 0
        %2322 = vmatpush1.bf16.msra.mxu0 0
        %2323 = vmatprep.subr.bf16.mxu0 0
        %2324 = vmatpush1.bf16.msra.mxu0 %v2307
        %2325 = vmatprep.subr.bf16.mxu0 0
        %2326 = vmatpush2.bf16.msra.mxu0 0
        %2327 = vmatprep.subr.bf16.mxu0 0
        %2328 = vmatpush2.bf16.msra.mxu0 0
        %2329 = vmatprep.subr.bf16.mxu0 0
        %2330 = vmatpush2.bf16.msra.mxu0 0
        %2331 = vmatprep.subr.bf16.mxu0 0
        %2332 = vmatpush2.bf16.msra.mxu0 0
        %2333 = vmatprep.subr.bf16.mxu0 0
        %2334 = vmatpush2.bf16.msra.mxu0 0
        %2335 = vmatprep.subr.bf16.mxu0 0
        %2336 = vmatpush2.bf16.msra.mxu0 0
        %2337 = vmatprep.subr.bf16.mxu0 0
        %2338 = vmatpush2.bf16.msra.mxu0 0
        %2339 = vmatprep.subr.bf16.mxu0 0
        %2340 = vmatpush2.bf16.msra.mxu0 0
        %2341 = vmatprep.mubr.bf16.mxu0 0
        %2342 = vmatmul.mubr.bf16.gmra.mxu0 %v2295
        %v2343 = vpop.f32.mrf.mxu0
        %v2344 = vadd.f32 0.0, %v2343
        %v2345 = vpop.f32.mrf.mxu0
        %v2346 = vpop.f32.mrf.mxu0
        %v2347 = vadd.f32 0.0, %v2346
        %v2348 = vpop.f32.mrf.mxu0
        %2349 = vmatprep.mubr.bf16.mxu0 0
        %2350 = vmatmul.mubr.bf16.gmra.mxu0 %v2298
        %v2351 = vpop.f32.mrf.mxu0
        %v2352 = vadd.f32 0.0, %v2351
        %v2353 = vpop.f32.mrf.mxu0
        %v2354 = vpop.f32.mrf.mxu0
        %v2355 = vadd.f32 0.0, %v2354
        %v2356 = vpop.f32.mrf.mxu0
        %2357 = vmatprep.mubr.bf16.mxu0 0
        %2358 = vmatmul.mubr.bf16.gmra.mxu0 %v2301
        %v2359 = vpop.f32.mrf.mxu0
        %v2360 = vadd.f32 0.0, %v2359
        %v2361 = vpop.f32.mrf.mxu0
        %v2362 = vpop.f32.mrf.mxu0
        %v2363 = vadd.f32 0.0, %v2362
        %v2364 = vpop.f32.mrf.mxu0
        %2365 = vmatprep.mubr.bf16.mxu0 0
        %2366 = vmatmul.mubr.bf16.gmra.mxu0 %v2304
        %v2367 = vpop.f32.mrf.mxu0
        %v2368 = vadd.f32 0.0, %v2367
        %v2369 = vpop.f32.mrf.mxu0
        %v2370 = vpop.f32.mrf.mxu0
        %v2371 = vadd.f32 0.0, %v2370
        %v2372 = vpop.f32.mrf.mxu0
        %2373 = vdwg.mxu0
        %v2374 = vadd.f32 %v2228, %v2344
        %v2375 = vadd.f32 %v2229, %v2347
        %v2376 = vadd.f32 %v2230, %v2352
        %v2377 = vadd.f32 %v2231, %v2355
        %v2378 = vadd.f32 %v2232, %v2360
        %v2379 = vadd.f32 %v2233, %v2363
        %v2380 = vadd.f32 %v2234, %v2368
        %v2381 = vadd.f32 %v2235, %v2371
        %v2382 = vld [vmem:[%s3] sm:$0x1]
        %v2384 = vlaneseq
        %v2385 = vshrl.u32 %v2384, 7
        %v2386 = vsub.s32 0, %v2385
        %v2387 = vrot.slane %v2382, %v2386
        %v2389 = vadd.f32 %v2374, %v2387
        %v2390 = vadd.f32 %v2375, %v2387
        %v2391 = vadd.f32 %v2376, %v2387
        %v2392 = vadd.f32 %v2377, %v2387
        %v2393 = vadd.f32 %v2378, %v2387
        %v2394 = vadd.f32 %v2379, %v2387
        %v2395 = vadd.f32 %v2380, %v2387
        %v2396 = vadd.f32 %v2381, %v2387
        %v2397 = vmax.f32 %v2389, 0.0
        %v2398 = vmax.f32 %v2390, 0.0
        %v2399 = vmax.f32 %v2391, 0.0
        %v2400 = vmax.f32 %v2392, 0.0
        %v2401 = vmax.f32 %v2393, 0.0
        %v2402 = vmax.f32 %v2394, 0.0
        %v2403 = vmax.f32 %v2395, 0.0
        %v2404 = vmax.f32 %v2396, 0.0
        %v2405 = vpack.c.bf16 %v2398, %v2397
        %v2406 = vpack.c.bf16 %v2400, %v2399
        %v2407 = vpack.c.bf16 %v2402, %v2401
        %v2408 = vpack.c.bf16 %v2404, %v2403
        %v2413 = vunpack.c.l.b16 %v2405
        %v2414 = vunpack.c.h.b16 %v2405
        %v2415 = vunpack.c.l.b16 %v2406
        %v2416 = vunpack.c.h.b16 %v2406
        %v2417 = vunpack.c.l.b16 %v2407
        %v2418 = vunpack.c.h.b16 %v2407
        %v2419 = vunpack.c.l.b16 %v2408
        %v2420 = vunpack.c.h.b16 %v2408
        %v2421 = vpack.c.b16 %v2413, %v2413
        %v2422 = vpack.c.b16 %v2414, %v2414
        %v2423 = vpack.c.b16 %v2415, %v2415
        %v2424 = vpack.c.b16 %v2416, %v2416
        %v2425 = vpack.c.b16 %v2417, %v2417
        %v2426 = vpack.c.b16 %v2418, %v2418
        %v2427 = vpack.c.b16 %v2419, %v2419
        %v2428 = vpack.c.b16 %v2420, %v2420
        %v2430 = vshrl.u32 %v2421, 16
        %v2432 = vrot.slane %v2430, 7
        %v2433 = vshll.u32 %v2421, 16
        %v2435 = vor.u32 %v2432, %v2433
        %v2436 = vrot.slane %v2432, 4
        %v2438 = vshrl.u32 %v2422, 16
        %v2440 = vrot.slane %v2438, 7
        %v2441 = vshll.u32 %v2422, 16
        %v2443 = vor.u32 %v2440, %v2441
        %v2444 = vsel %vm534, %v2436, %v2443
        %v2445 = vrot.slane %v2440, 4
        %v2447 = vshrl.u32 %v2423, 16
        %v2449 = vrot.slane %v2447, 7
        %v2450 = vshll.u32 %v2423, 16
        %v2452 = vor.u32 %v2449, %v2450
        %v2453 = vrot.slane %v2449, 4
        %v2455 = vshrl.u32 %v2424, 16
        %v2457 = vrot.slane %v2455, 7
        %v2458 = vshll.u32 %v2424, 16
        %v2460 = vor.u32 %v2457, %v2458
        %v2461 = vsel %vm534, %v2453, %v2460
        %v2462 = vrot.slane %v2457, 4
        %v2464 = vshrl.u32 %v2425, 16
        %v2466 = vrot.slane %v2464, 7
        %v2467 = vshll.u32 %v2425, 16
        %v2469 = vor.u32 %v2466, %v2467
        %v2470 = vrot.slane %v2466, 4
        %v2472 = vshrl.u32 %v2426, 16
        %v2474 = vrot.slane %v2472, 7
        %v2475 = vshll.u32 %v2426, 16
        %v2477 = vor.u32 %v2474, %v2475
        %v2478 = vsel %vm534, %v2470, %v2477
        %v2479 = vrot.slane %v2474, 4
        %v2481 = vshrl.u32 %v2427, 16
        %v2483 = vrot.slane %v2481, 7
        %v2484 = vshll.u32 %v2427, 16
        %v2486 = vor.u32 %v2483, %v2484
        %v2487 = vrot.slane %v2483, 4
        %v2489 = vshrl.u32 %v2428, 16
        %v2491 = vrot.slane %v2489, 7
        %v2492 = vshll.u32 %v2428, 16
        %v2494 = vor.u32 %v2491, %v2492
        %v2495 = vsel %vm534, %v2487, %v2494
        %v2496 = vrot.slane %v2491, 4
        %s2509 = smul.addr %s970, 4
        %s2510 = scalar_lea.vmem [#allocation3], %s2509
        %v2511 = vld [vmem:[%s2510] sm:$0xf]
        %v2512 = vsel %vm696, %v2435, %v2511
        %2513 = vst [vmem:[%s2510] sm:$0xf] %v2512
        %2514 = vst.msk [vmem:[%s2510 + $0x4] sm:$0xf] %vm700, %v2444
        %v2515 = vld [vmem:[%s2510 + $0x8] sm:$0x1]
        %v2516 = vsel %vm378, %v2445, %v2515
        %2517 = vst [vmem:[%s2510 + $0x8] sm:$0x1] %v2516
        %v2518 = vld [vmem:[%s2510 + $0xc] sm:$0xf]
        %v2519 = vsel %vm696, %v2452, %v2518
        %2520 = vst [vmem:[%s2510 + $0xc] sm:$0xf] %v2519
        %2521 = vst.msk [vmem:[%s2510 + $0x10] sm:$0xf] %vm700, %v2461
        %v2522 = vld [vmem:[%s2510 + $0x14] sm:$0x1]
        %v2523 = vsel %vm378, %v2462, %v2522
        %2524 = vst [vmem:[%s2510 + $0x14] sm:$0x1] %v2523
        %v2525 = vld [vmem:[%s2510 + $0x18] sm:$0xf]
        %v2526 = vsel %vm696, %v2469, %v2525
        %2527 = vst [vmem:[%s2510 + $0x18] sm:$0xf] %v2526
        %2528 = vst.msk [vmem:[%s2510 + $0x1c] sm:$0xf] %vm700, %v2478
        %v2529 = vld [vmem:[%s2510 + $0x20] sm:$0x1]
        %v2530 = vsel %vm378, %v2479, %v2529
        %2531 = vst [vmem:[%s2510 + $0x20] sm:$0x1] %v2530
        %v2532 = vld [vmem:[%s2510 + $0x24] sm:$0xf]
        %v2533 = vsel %vm696, %v2486, %v2532
        %2534 = vst [vmem:[%s2510 + $0x24] sm:$0xf] %v2533
        %2535 = vst.msk [vmem:[%s2510 + $0x28] sm:$0xf] %vm700, %v2495
        %v2536 = vld [vmem:[%s2510 + $0x2c] sm:$0x1]
        %v2537 = vsel %vm378, %v2496, %v2536
        %2538 = vst [vmem:[%s2510 + $0x2c] sm:$0x1] %v2537
      $region49: #{tpu_custom_call.1} parent=43 // loop_footer
        %s968 = sadd.s32 1, %s964
      $region50: #{tpu_custom_call.1} parent=43 // loop_footer_branch
        %963 = sbr.rel target = $region46
      $region51: #{tpu_custom_call.1} parent=43 // loop_exit
        _
      %v2539 = vld [vmem:[%s874] sm:$0xf]
      %v2540 = vld [vmem:[%s874 + $0x4] sm:$0xf]
      %v2541 = vld [vmem:[%s874 + $0xc] sm:$0xf]
      %v2542 = vld [vmem:[%s874 + $0x10] sm:$0xf]
      %v2543 = vld [vmem:[%s2] sm:$0x3]
      %v2544 = vld [vmem:[%s874 + $0x8] sm:$0x1]
      %v2545 = vld [vmem:[%s874 + $0x14] sm:$0x1]
      %s2546 = scalar_lea.vmem %s2, 2
      %v2547 = vld [vmem:[%s2546] sm:$0x3]
      %vm2548 = vsmask.f32 3328
      %vm2549 = vsmask.f32 7440
      %vm2550 = vmor %vm2548, %vm2549
      %v2552 = vshrl.u32 %v2539, 16
      %v2554 = vrot.slane %v2552, 4
      %v2555 = vshll.u32 %v2539, 16
      %v2557 = vrot.slane %v2555, 5
      %v2558 = vor.u32 %v2554, %v2557
      %v2559 = vrot.slane %v2558, 4
      %v2561 = vshll.u32 %v2540, 16
      %v2563 = vrot.slane %v2561, 5
      %v2564 = vsel %vm2550, %v2559, %v2563
      %v2565 = vshrl.u32 %v2540, 16
      %v2567 = vrot.slane %v2565, 4
      %v2568 = vor.u32 %v2567, %v2563
      %v2569 = vrot.slane %v2568, 4
      %v2571 = vshll.u32 %v2544, 16
      %v2573 = vrot.slane %v2571, 5
      %v2574 = vsel %vm2550, %v2569, %v2573
      %v2576 = vshrl.u32 %v2541, 16
      %v2578 = vrot.slane %v2576, 4
      %v2579 = vshll.u32 %v2541, 16
      %v2581 = vrot.slane %v2579, 5
      %v2582 = vor.u32 %v2578, %v2581
      %v2583 = vrot.slane %v2582, 4
      %v2585 = vshll.u32 %v2542, 16
      %v2587 = vrot.slane %v2585, 5
      %v2588 = vsel %vm2550, %v2583, %v2587
      %v2589 = vshrl.u32 %v2542, 16
      %v2591 = vrot.slane %v2589, 4
      %v2592 = vor.u32 %v2591, %v2587
      %v2593 = vrot.slane %v2592, 4
      %v2595 = vshll.u32 %v2545, 16
      %v2597 = vrot.slane %v2595, 5
      %v2598 = vsel %vm2550, %v2593, %v2597
      %v2599 = vunpack.c.l.b16 %v2564
      %v2600 = vunpack.c.l.b16 %v2574
      %v2601 = vunpack.c.l.b16 %v2588
      %v2602 = vunpack.c.l.b16 %v2598
      %v2603 = vpack.c.b16 %v2600, %v2599
      %v2604 = vpack.c.b16 %v2602, %v2601
      %vm2605 = vcmask 31744
      %v2607 = vsel %vm2605, %v2603, 0
      %v2610 = vsel %vm2605, %v2604, 0
      %vm2612 = vcmask 1041408
      %v2614 = vsel %vm2612, %v2547, 0
      %2616 = vmatprep.subr.bf16.mxu0 0
      %2617 = vmatpush1.bf16.msra.mxu0 0
      %2618 = vmatprep.subr.bf16.mxu0 0
      %2619 = vmatpush1.bf16.msra.mxu0 0
      %2620 = vmatprep.subr.bf16.mxu0 0
      %2621 = vmatpush1.bf16.msra.mxu0 0
      %2622 = vmatprep.subr.bf16.mxu0 0
      %2623 = vmatpush1.bf16.msra.mxu0 0
      %2624 = vmatprep.subr.bf16.mxu0 0
      %2625 = vmatpush1.bf16.msra.mxu0 0
      %2626 = vmatprep.subr.bf16.mxu0 0
      %2627 = vmatpush1.bf16.msra.mxu0 0
      %2628 = vmatprep.subr.bf16.mxu0 0
      %2629 = vmatpush1.bf16.msra.mxu0 0
      %2630 = vmatprep.subr.bf16.mxu0 0
      %2631 = vmatpush1.bf16.msra.mxu0 %v2614
      %2632 = vmatprep.subr.bf16.mxu0 0
      %2633 = vmatpush2.bf16.msra.mxu0 0
      %2634 = vmatprep.subr.bf16.mxu0 0
      %2635 = vmatpush2.bf16.msra.mxu0 0
      %2636 = vmatprep.subr.bf16.mxu0 0
      %2637 = vmatpush2.bf16.msra.mxu0 0
      %2638 = vmatprep.subr.bf16.mxu0 0
      %2639 = vmatpush2.bf16.msra.mxu0 0
      %2640 = vmatprep.subr.bf16.mxu0 0
      %2641 = vmatpush2.bf16.msra.mxu0 0
      %2642 = vmatprep.subr.bf16.mxu0 0
      %2643 = vmatpush2.bf16.msra.mxu0 0
      %2644 = vmatprep.subr.bf16.mxu0 0
      %2645 = vmatpush2.bf16.msra.mxu0 0
      %2646 = vmatprep.subr.bf16.mxu0 0
      %2647 = vmatpush2.bf16.msra.mxu0 0
      %2648 = vmatprep.mubr.bf16.mxu0 0
      %2649 = vmatmul.mubr.bf16.gmra.mxu0 %v2607
      %v2650 = vpop.f32.mrf.mxu0
      %v2651 = vadd.f32 0.0, %v2650
      %v2652 = vpop.f32.mrf.mxu0
      %v2653 = vpop.f32.mrf.mxu0
      %v2654 = vadd.f32 0.0, %v2653
      %v2655 = vpop.f32.mrf.mxu0
      %2656 = vmatprep.mubr.bf16.mxu0 0
      %2657 = vmatmul.mubr.bf16.gmra.mxu0 %v2610
      %v2658 = vpop.f32.mrf.mxu0
      %v2659 = vadd.f32 0.0, %v2658
      %v2660 = vpop.f32.mrf.mxu0
      %v2661 = vpop.f32.mrf.mxu0
      %v2662 = vadd.f32 0.0, %v2661
      %v2663 = vpop.f32.mrf.mxu0
      %2664 = vdwg.mxu0
      %v2669 = vunpack.c.l.b16 %v2539
      %v2670 = vunpack.c.l.b16 %v2540
      %v2671 = vunpack.c.l.b16 %v2541
      %v2672 = vunpack.c.l.b16 %v2542
      %v2673 = vpack.c.b16 %v2670, %v2669
      %v2674 = vpack.c.b16 %v2672, %v2671
      %v2676 = vsel %vm2605, %v2673, 0
      %v2679 = vsel %vm2605, %v2674, 0
      %v2682 = vsel %vm2612, %v2543, 0
      %2684 = vmatprep.subr.bf16.mxu0 0
      %2685 = vmatpush1.bf16.msra.mxu0 0
      %2686 = vmatprep.subr.bf16.mxu0 0
      %2687 = vmatpush1.bf16.msra.mxu0 0
      %2688 = vmatprep.subr.bf16.mxu0 0
      %2689 = vmatpush1.bf16.msra.mxu0 0
      %2690 = vmatprep.subr.bf16.mxu0 0
      %2691 = vmatpush1.bf16.msra.mxu0 0
      %2692 = vmatprep.subr.bf16.mxu0 0
      %2693 = vmatpush1.bf16.msra.mxu0 0
      %2694 = vmatprep.subr.bf16.mxu0 0
      %2695 = vmatpush1.bf16.msra.mxu0 0
      %2696 = vmatprep.subr.bf16.mxu0 0
      %2697 = vmatpush1.bf16.msra.mxu0 0
      %2698 = vmatprep.subr.bf16.mxu0 0
      %2699 = vmatpush1.bf16.msra.mxu0 %v2682
      %2700 = vmatprep.subr.bf16.mxu0 0
      %2701 = vmatpush2.bf16.msra.mxu0 0
      %2702 = vmatprep.subr.bf16.mxu0 0
      %2703 = vmatpush2.bf16.msra.mxu0 0
      %2704 = vmatprep.subr.bf16.mxu0 0
      %2705 = vmatpush2.bf16.msra.mxu0 0
      %2706 = vmatprep.subr.bf16.mxu0 0
      %2707 = vmatpush2.bf16.msra.mxu0 0
      %2708 = vmatprep.subr.bf16.mxu0 0
      %2709 = vmatpush2.bf16.msra.mxu0 0
      %2710 = vmatprep.subr.bf16.mxu0 0
      %2711 = vmatpush2.bf16.msra.mxu0 0
      %2712 = vmatprep.subr.bf16.mxu0 0
      %2713 = vmatpush2.bf16.msra.mxu0 0
      %2714 = vmatprep.subr.bf16.mxu0 0
      %2715 = vmatpush2.bf16.msra.mxu0 0
      %2716 = vmatprep.mubr.bf16.mxu0 0
      %2717 = vmatmul.mubr.bf16.gmra.mxu0 %v2676
      %v2718 = vpop.f32.mrf.mxu0
      %v2719 = vadd.f32 %v2651, %v2718
      %v2720 = vpop.f32.mrf.mxu0
      %v2721 = vpop.f32.mrf.mxu0
      %v2722 = vadd.f32 %v2654, %v2721
      %v2723 = vpop.f32.mrf.mxu0
      %2724 = vmatprep.mubr.bf16.mxu0 0
      %2725 = vmatmul.mubr.bf16.gmra.mxu0 %v2679
      %v2726 = vpop.f32.mrf.mxu0
      %v2727 = vadd.f32 %v2659, %v2726
      %v2728 = vpop.f32.mrf.mxu0
      %v2729 = vpop.f32.mrf.mxu0
      %v2730 = vadd.f32 %v2662, %v2729
      %v2731 = vpop.f32.mrf.mxu0
      %2732 = vdwg.mxu0
      %v2733 = vld [vmem:[%s874] sm:$0xe]
      %v2734 = vld [vmem:[%s874 + $0xc] sm:$0xe]
      %s2735 = scalar_lea.vmem %s2, 4
      %v2736 = vld [vmem:[%s2735] sm:$0x3]
      %vm2741 = vcmask 1042432
      %vm2742 = vcmask 1046532
      %vm2743 = vmor %vm2741, %vm2742
      %v2744 = vrot.slane %v2733, 5
      %v2745 = vrot.slane %v2744, 4
      %v2746 = vrot.slane %v2540, 5
      %v2747 = vsel %vm2743, %v2745, %v2746
      %v2748 = vrot.slane %v2746, 4
      %v2749 = vrot.slane %v2544, 5
      %v2750 = vsel %vm2743, %v2748, %v2749
      %v2751 = vrot.slane %v2734, 5
      %v2752 = vrot.slane %v2751, 4
      %v2753 = vrot.slane %v2542, 5
      %v2754 = vsel %vm2743, %v2752, %v2753
      %v2755 = vrot.slane %v2753, 4
      %v2756 = vrot.slane %v2545, 5
      %v2757 = vsel %vm2743, %v2755, %v2756
      %v2758 = vunpack.c.l.b16 %v2747
      %v2759 = vunpack.c.l.b16 %v2750
      %v2760 = vunpack.c.l.b16 %v2754
      %v2761 = vunpack.c.l.b16 %v2757
      %v2762 = vpack.c.b16 %v2759, %v2758
      %v2763 = vpack.c.b16 %v2761, %v2760
      %v2765 = vsel %vm2605, %v2762, 0
      %v2768 = vsel %vm2605, %v2763, 0
      %v2771 = vsel %vm2612, %v2736, 0
      %2773 = vmatprep.subr.bf16.mxu0 0
      %2774 = vmatpush1.bf16.msra.mxu0 0
      %2775 = vmatprep.subr.bf16.mxu0 0
      %2776 = vmatpush1.bf16.msra.mxu0 0
      %2777 = vmatprep.subr.bf16.mxu0 0
      %2778 = vmatpush1.bf16.msra.mxu0 0
      %2779 = vmatprep.subr.bf16.mxu0 0
      %2780 = vmatpush1.bf16.msra.mxu0 0
      %2781 = vmatprep.subr.bf16.mxu0 0
      %2782 = vmatpush1.bf16.msra.mxu0 0
      %2783 = vmatprep.subr.bf16.mxu0 0
      %2784 = vmatpush1.bf16.msra.mxu0 0
      %2785 = vmatprep.subr.bf16.mxu0 0
      %2786 = vmatpush1.bf16.msra.mxu0 0
      %2787 = vmatprep.subr.bf16.mxu0 0
      %2788 = vmatpush1.bf16.msra.mxu0 %v2771
      %2789 = vmatprep.subr.bf16.mxu0 0
      %2790 = vmatpush2.bf16.msra.mxu0 0
      %2791 = vmatprep.subr.bf16.mxu0 0
      %2792 = vmatpush2.bf16.msra.mxu0 0
      %2793 = vmatprep.subr.bf16.mxu0 0
      %2794 = vmatpush2.bf16.msra.mxu0 0
      %2795 = vmatprep.subr.bf16.mxu0 0
      %2796 = vmatpush2.bf16.msra.mxu0 0
      %2797 = vmatprep.subr.bf16.mxu0 0
      %2798 = vmatpush2.bf16.msra.mxu0 0
      %2799 = vmatprep.subr.bf16.mxu0 0
      %2800 = vmatpush2.bf16.msra.mxu0 0
      %2801 = vmatprep.subr.bf16.mxu0 0
      %2802 = vmatpush2.bf16.msra.mxu0 0
      %2803 = vmatprep.subr.bf16.mxu0 0
      %2804 = vmatpush2.bf16.msra.mxu0 0
      %2805 = vmatprep.mubr.bf16.mxu0 0
      %2806 = vmatmul.mubr.bf16.gmra.mxu0 %v2765
      %v2807 = vpop.f32.mrf.mxu0
      %v2808 = vadd.f32 0.0, %v2807
      %v2809 = vpop.f32.mrf.mxu0
      %v2810 = vpop.f32.mrf.mxu0
      %v2811 = vadd.f32 0.0, %v2810
      %v2812 = vpop.f32.mrf.mxu0
      %2813 = vmatprep.mubr.bf16.mxu0 0
      %2814 = vmatmul.mubr.bf16.gmra.mxu0 %v2768
      %v2815 = vpop.f32.mrf.mxu0
      %v2816 = vadd.f32 0.0, %v2815
      %v2817 = vpop.f32.mrf.mxu0
      %v2818 = vpop.f32.mrf.mxu0
      %v2819 = vadd.f32 0.0, %v2818
      %v2820 = vpop.f32.mrf.mxu0
      %2821 = vdwg.mxu0
      %v2822 = vadd.f32 %v2719, %v2808
      %v2823 = vadd.f32 %v2722, %v2811
      %v2824 = vadd.f32 %v2727, %v2816
      %v2825 = vadd.f32 %v2730, %v2819
      %s2826 = scalar_lea.vmem [#allocation2], 108
      %v2827 = vld [vmem:[%s2826] sm:$0xf]
      %v2828 = vld [vmem:[%s2826 + $0x4] sm:$0xf]
      %v2829 = vld [vmem:[%s2826 + $0xc] sm:$0xf]
      %v2830 = vld [vmem:[%s2826 + $0x10] sm:$0xf]
      %s2831 = scalar_lea.vmem %s2, 6
      %v2832 = vld [vmem:[%s2831] sm:$0x3]
      %v2837 = vunpack.c.l.b16 %v2827
      %v2838 = vunpack.c.l.b16 %v2828
      %v2839 = vunpack.c.l.b16 %v2829
      %v2840 = vunpack.c.l.b16 %v2830
      %v2841 = vpack.c.b16 %v2838, %v2837
      %v2842 = vpack.c.b16 %v2840, %v2839
      %v2844 = vsel %vm2605, %v2841, 0
      %v2847 = vsel %vm2605, %v2842, 0
      %v2850 = vsel %vm2612, %v2832, 0
      %2852 = vmatprep.subr.bf16.mxu0 0
      %2853 = vmatpush1.bf16.msra.mxu0 0
      %2854 = vmatprep.subr.bf16.mxu0 0
      %2855 = vmatpush1.bf16.msra.mxu0 0
      %2856 = vmatprep.subr.bf16.mxu0 0
      %2857 = vmatpush1.bf16.msra.mxu0 0
      %2858 = vmatprep.subr.bf16.mxu0 0
      %2859 = vmatpush1.bf16.msra.mxu0 0
      %2860 = vmatprep.subr.bf16.mxu0 0
      %2861 = vmatpush1.bf16.msra.mxu0 0
      %2862 = vmatprep.subr.bf16.mxu0 0
      %2863 = vmatpush1.bf16.msra.mxu0 0
      %2864 = vmatprep.subr.bf16.mxu0 0
      %2865 = vmatpush1.bf16.msra.mxu0 0
      %2866 = vmatprep.subr.bf16.mxu0 0
      %2867 = vmatpush1.bf16.msra.mxu0 %v2850
      %2868 = vmatprep.subr.bf16.mxu0 0
      %2869 = vmatpush2.bf16.msra.mxu0 0
      %2870 = vmatprep.subr.bf16.mxu0 0
      %2871 = vmatpush2.bf16.msra.mxu0 0
      %2872 = vmatprep.subr.bf16.mxu0 0
      %2873 = vmatpush2.bf16.msra.mxu0 0
      %2874 = vmatprep.subr.bf16.mxu0 0
      %2875 = vmatpush2.bf16.msra.mxu0 0
      %2876 = vmatprep.subr.bf16.mxu0 0
      %2877 = vmatpush2.bf16.msra.mxu0 0
      %2878 = vmatprep.subr.bf16.mxu0 0
      %2879 = vmatpush2.bf16.msra.mxu0 0
      %2880 = vmatprep.subr.bf16.mxu0 0
      %2881 = vmatpush2.bf16.msra.mxu0 0
      %2882 = vmatprep.subr.bf16.mxu0 0
      %2883 = vmatpush2.bf16.msra.mxu0 0
      %2884 = vmatprep.mubr.bf16.mxu0 0
      %2885 = vmatmul.mubr.bf16.gmra.mxu0 %v2844
      %v2886 = vpop.f32.mrf.mxu0
      %v2887 = vadd.f32 0.0, %v2886
      %v2888 = vpop.f32.mrf.mxu0
      %v2889 = vpop.f32.mrf.mxu0
      %v2890 = vadd.f32 0.0, %v2889
      %v2891 = vpop.f32.mrf.mxu0
      %2892 = vmatprep.mubr.bf16.mxu0 0
      %2893 = vmatmul.mubr.bf16.gmra.mxu0 %v2847
      %v2894 = vpop.f32.mrf.mxu0
      %v2895 = vadd.f32 0.0, %v2894
      %v2896 = vpop.f32.mrf.mxu0
      %v2897 = vpop.f32.mrf.mxu0
      %v2898 = vadd.f32 0.0, %v2897
      %v2899 = vpop.f32.mrf.mxu0
      %2900 = vdwg.mxu0
      %v2901 = vadd.f32 %v2822, %v2887
      %v2902 = vadd.f32 %v2823, %v2890
      %v2903 = vadd.f32 %v2824, %v2895
      %v2904 = vadd.f32 %v2825, %v2898
      %v2905 = vld [vmem:[%s2826] sm:$0xf]
      %v2906 = vld [vmem:[%s2826 + $0x4] sm:$0xf]
      %v2907 = vld [vmem:[%s2826 + $0x8] sm:$0x1]
      %v2908 = vld [vmem:[%s2826 + $0xc] sm:$0xf]
      %v2909 = vld [vmem:[%s2826 + $0x10] sm:$0xf]
      %v2910 = vld [vmem:[%s2826 + $0x14] sm:$0x1]
      %s2911 = scalar_lea.vmem %s2, 8
      %v2912 = vld [vmem:[%s2911] sm:$0x3]
      %v2914 = vshrl.u32 %v2905, 16
      %v2916 = vrot.slane %v2914, 4
      %v2917 = vshll.u32 %v2905, 16
      %v2919 = vrot.slane %v2917, 5
      %v2920 = vor.u32 %v2916, %v2919
      %v2921 = vrot.slane %v2920, 4
      %v2923 = vshll.u32 %v2906, 16
      %v2925 = vrot.slane %v2923, 5
      %v2926 = vsel %vm2550, %v2921, %v2925
      %v2927 = vshrl.u32 %v2906, 16
      %v2929 = vrot.slane %v2927, 4
      %v2930 = vor.u32 %v2929, %v2925
      %v2931 = vrot.slane %v2930, 4
      %v2933 = vshll.u32 %v2907, 16
      %v2935 = vrot.slane %v2933, 5
      %v2936 = vsel %vm2550, %v2931, %v2935
      %v2938 = vshrl.u32 %v2908, 16
      %v2940 = vrot.slane %v2938, 4
      %v2941 = vshll.u32 %v2908, 16
      %v2943 = vrot.slane %v2941, 5
      %v2944 = vor.u32 %v2940, %v2943
      %v2945 = vrot.slane %v2944, 4
      %v2947 = vshll.u32 %v2909, 16
      %v2949 = vrot.slane %v2947, 5
      %v2950 = vsel %vm2550, %v2945, %v2949
      %v2951 = vshrl.u32 %v2909, 16
      %v2953 = vrot.slane %v2951, 4
      %v2954 = vor.u32 %v2953, %v2949
      %v2955 = vrot.slane %v2954, 4
      %v2957 = vshll.u32 %v2910, 16
      %v2959 = vrot.slane %v2957, 5
      %v2960 = vsel %vm2550, %v2955, %v2959
      %v2961 = vunpack.c.l.b16 %v2926
      %v2962 = vunpack.c.l.b16 %v2936
      %v2963 = vunpack.c.l.b16 %v2950
      %v2964 = vunpack.c.l.b16 %v2960
      %v2965 = vpack.c.b16 %v2962, %v2961
      %v2966 = vpack.c.b16 %v2964, %v2963
      %v2968 = vsel %vm2605, %v2965, 0
      %v2971 = vsel %vm2605, %v2966, 0
      %v2974 = vsel %vm2612, %v2912, 0
      %2976 = vmatprep.subr.bf16.mxu0 0
      %2977 = vmatpush1.bf16.msra.mxu0 0
      %2978 = vmatprep.subr.bf16.mxu0 0
      %2979 = vmatpush1.bf16.msra.mxu0 0
      %2980 = vmatprep.subr.bf16.mxu0 0
      %2981 = vmatpush1.bf16.msra.mxu0 0
      %2982 = vmatprep.subr.bf16.mxu0 0
      %2983 = vmatpush1.bf16.msra.mxu0 0
      %2984 = vmatprep.subr.bf16.mxu0 0
      %2985 = vmatpush1.bf16.msra.mxu0 0
      %2986 = vmatprep.subr.bf16.mxu0 0
      %2987 = vmatpush1.bf16.msra.mxu0 0
      %2988 = vmatprep.subr.bf16.mxu0 0
      %2989 = vmatpush1.bf16.msra.mxu0 0
      %2990 = vmatprep.subr.bf16.mxu0 0
      %2991 = vmatpush1.bf16.msra.mxu0 %v2974
      %2992 = vmatprep.subr.bf16.mxu0 0
      %2993 = vmatpush2.bf16.msra.mxu0 0
      %2994 = vmatprep.subr.bf16.mxu0 0
      %2995 = vmatpush2.bf16.msra.mxu0 0
      %2996 = vmatprep.subr.bf16.mxu0 0
      %2997 = vmatpush2.bf16.msra.mxu0 0
      %2998 = vmatprep.subr.bf16.mxu0 0
      %2999 = vmatpush2.bf16.msra.mxu0 0
      %3000 = vmatprep.subr.bf16.mxu0 0
      %3001 = vmatpush2.bf16.msra.mxu0 0
      %3002 = vmatprep.subr.bf16.mxu0 0
      %3003 = vmatpush2.bf16.msra.mxu0 0
      %3004 = vmatprep.subr.bf16.mxu0 0
      %3005 = vmatpush2.bf16.msra.mxu0 0
      %3006 = vmatprep.subr.bf16.mxu0 0
      %3007 = vmatpush2.bf16.msra.mxu0 0
      %3008 = vmatprep.mubr.bf16.mxu0 0
      %3009 = vmatmul.mubr.bf16.gmra.mxu0 %v2968
      %v3010 = vpop.f32.mrf.mxu0
      %v3011 = vadd.f32 0.0, %v3010
      %v3012 = vpop.f32.mrf.mxu0
      %v3013 = vpop.f32.mrf.mxu0
      %v3014 = vadd.f32 0.0, %v3013
      %v3015 = vpop.f32.mrf.mxu0
      %3016 = vmatprep.mubr.bf16.mxu0 0
      %3017 = vmatmul.mubr.bf16.gmra.mxu0 %v2971
      %v3018 = vpop.f32.mrf.mxu0
      %v3019 = vadd.f32 0.0, %v3018
      %v3020 = vpop.f32.mrf.mxu0
      %v3021 = vpop.f32.mrf.mxu0
      %v3022 = vadd.f32 0.0, %v3021
      %v3023 = vpop.f32.mrf.mxu0
      %3024 = vdwg.mxu0
      %v3025 = vadd.f32 %v2901, %v3011
      %v3026 = vadd.f32 %v2902, %v3014
      %v3027 = vadd.f32 %v2903, %v3019
      %v3028 = vadd.f32 %v2904, %v3022
      %v3029 = vld [vmem:[%s2826] sm:$0xe]
      %v3030 = vld [vmem:[%s2826 + $0xc] sm:$0xe]
      %s3031 = scalar_lea.vmem %s2, 10
      %v3032 = vld [vmem:[%s3031] sm:$0x3]
      %v3039 = vrot.slane %v3029, 5
      %v3040 = vrot.slane %v3039, 4
      %v3041 = vrot.slane %v2906, 5
      %v3042 = vsel %vm2743, %v3040, %v3041
      %v3043 = vrot.slane %v3041, 4
      %v3044 = vrot.slane %v2907, 5
      %v3045 = vsel %vm2743, %v3043, %v3044
      %v3046 = vrot.slane %v3030, 5
      %v3047 = vrot.slane %v3046, 4
      %v3048 = vrot.slane %v2909, 5
      %v3049 = vsel %vm2743, %v3047, %v3048
      %v3050 = vrot.slane %v3048, 4
      %v3051 = vrot.slane %v2910, 5
      %v3052 = vsel %vm2743, %v3050, %v3051
      %v3053 = vunpack.c.l.b16 %v3042
      %v3054 = vunpack.c.l.b16 %v3045
      %v3055 = vunpack.c.l.b16 %v3049
      %v3056 = vunpack.c.l.b16 %v3052
      %v3057 = vpack.c.b16 %v3054, %v3053
      %v3058 = vpack.c.b16 %v3056, %v3055
      %v3060 = vsel %vm2605, %v3057, 0
      %v3063 = vsel %vm2605, %v3058, 0
      %v3066 = vsel %vm2612, %v3032, 0
      %3068 = vmatprep.subr.bf16.mxu0 0
      %3069 = vmatpush1.bf16.msra.mxu0 0
      %3070 = vmatprep.subr.bf16.mxu0 0
      %3071 = vmatpush1.bf16.msra.mxu0 0
      %3072 = vmatprep.subr.bf16.mxu0 0
      %3073 = vmatpush1.bf16.msra.mxu0 0
      %3074 = vmatprep.subr.bf16.mxu0 0
      %3075 = vmatpush1.bf16.msra.mxu0 0
      %3076 = vmatprep.subr.bf16.mxu0 0
      %3077 = vmatpush1.bf16.msra.mxu0 0
      %3078 = vmatprep.subr.bf16.mxu0 0
      %3079 = vmatpush1.bf16.msra.mxu0 0
      %3080 = vmatprep.subr.bf16.mxu0 0
      %3081 = vmatpush1.bf16.msra.mxu0 0
      %3082 = vmatprep.subr.bf16.mxu0 0
      %3083 = vmatpush1.bf16.msra.mxu0 %v3066
      %3084 = vmatprep.subr.bf16.mxu0 0
      %3085 = vmatpush2.bf16.msra.mxu0 0
      %3086 = vmatprep.subr.bf16.mxu0 0
      %3087 = vmatpush2.bf16.msra.mxu0 0
      %3088 = vmatprep.subr.bf16.mxu0 0
      %3089 = vmatpush2.bf16.msra.mxu0 0
      %3090 = vmatprep.subr.bf16.mxu0 0
      %3091 = vmatpush2.bf16.msra.mxu0 0
      %3092 = vmatprep.subr.bf16.mxu0 0
      %3093 = vmatpush2.bf16.msra.mxu0 0
      %3094 = vmatprep.subr.bf16.mxu0 0
      %3095 = vmatpush2.bf16.msra.mxu0 0
      %3096 = vmatprep.subr.bf16.mxu0 0
      %3097 = vmatpush2.bf16.msra.mxu0 0
      %3098 = vmatprep.subr.bf16.mxu0 0
      %3099 = vmatpush2.bf16.msra.mxu0 0
      %3100 = vmatprep.mubr.bf16.mxu0 0
      %3101 = vmatmul.mubr.bf16.gmra.mxu0 %v3060
      %v3102 = vpop.f32.mrf.mxu0
      %v3103 = vadd.f32 0.0, %v3102
      %v3104 = vpop.f32.mrf.mxu0
      %v3105 = vpop.f32.mrf.mxu0
      %v3106 = vadd.f32 0.0, %v3105
      %v3107 = vpop.f32.mrf.mxu0
      %3108 = vmatprep.mubr.bf16.mxu0 0
      %3109 = vmatmul.mubr.bf16.gmra.mxu0 %v3063
      %v3110 = vpop.f32.mrf.mxu0
      %v3111 = vadd.f32 0.0, %v3110
      %v3112 = vpop.f32.mrf.mxu0
      %v3113 = vpop.f32.mrf.mxu0
      %v3114 = vadd.f32 0.0, %v3113
      %v3115 = vpop.f32.mrf.mxu0
      %3116 = vdwg.mxu0
      %v3117 = vadd.f32 %v3025, %v3103
      %v3118 = vadd.f32 %v3026, %v3106
      %v3119 = vadd.f32 %v3027, %v3111
      %v3120 = vadd.f32 %v3028, %v3114
      %s3121 = scalar_lea.vmem [#allocation2], 120
      %v3122 = vld [vmem:[%s3121] sm:$0xf]
      %v3123 = vld [vmem:[%s3121 + $0x4] sm:$0xf]
      %v3124 = vld [vmem:[%s3121 + $0xc] sm:$0xf]
      %v3125 = vld [vmem:[%s3121 + $0x10] sm:$0xf]
      %s3126 = scalar_lea.vmem %s2, 12
      %v3127 = vld [vmem:[%s3126] sm:$0x3]
      %v3132 = vunpack.c.l.b16 %v3122
      %v3133 = vunpack.c.l.b16 %v3123
      %v3134 = vunpack.c.l.b16 %v3124
      %v3135 = vunpack.c.l.b16 %v3125
      %v3136 = vpack.c.b16 %v3133, %v3132
      %v3137 = vpack.c.b16 %v3135, %v3134
      %v3139 = vsel %vm2605, %v3136, 0
      %v3142 = vsel %vm2605, %v3137, 0
      %v3145 = vsel %vm2612, %v3127, 0
      %3147 = vmatprep.subr.bf16.mxu0 0
      %3148 = vmatpush1.bf16.msra.mxu0 0
      %3149 = vmatprep.subr.bf16.mxu0 0
      %3150 = vmatpush1.bf16.msra.mxu0 0
      %3151 = vmatprep.subr.bf16.mxu0 0
      %3152 = vmatpush1.bf16.msra.mxu0 0
      %3153 = vmatprep.subr.bf16.mxu0 0
      %3154 = vmatpush1.bf16.msra.mxu0 0
      %3155 = vmatprep.subr.bf16.mxu0 0
      %3156 = vmatpush1.bf16.msra.mxu0 0
      %3157 = vmatprep.subr.bf16.mxu0 0
      %3158 = vmatpush1.bf16.msra.mxu0 0
      %3159 = vmatprep.subr.bf16.mxu0 0
      %3160 = vmatpush1.bf16.msra.mxu0 0
      %3161 = vmatprep.subr.bf16.mxu0 0
      %3162 = vmatpush1.bf16.msra.mxu0 %v3145
      %3163 = vmatprep.subr.bf16.mxu0 0
      %3164 = vmatpush2.bf16.msra.mxu0 0
      %3165 = vmatprep.subr.bf16.mxu0 0
      %3166 = vmatpush2.bf16.msra.mxu0 0
      %3167 = vmatprep.subr.bf16.mxu0 0
      %3168 = vmatpush2.bf16.msra.mxu0 0
      %3169 = vmatprep.subr.bf16.mxu0 0
      %3170 = vmatpush2.bf16.msra.mxu0 0
      %3171 = vmatprep.subr.bf16.mxu0 0
      %3172 = vmatpush2.bf16.msra.mxu0 0
      %3173 = vmatprep.subr.bf16.mxu0 0
      %3174 = vmatpush2.bf16.msra.mxu0 0
      %3175 = vmatprep.subr.bf16.mxu0 0
      %3176 = vmatpush2.bf16.msra.mxu0 0
      %3177 = vmatprep.subr.bf16.mxu0 0
      %3178 = vmatpush2.bf16.msra.mxu0 0
      %3179 = vmatprep.mubr.bf16.mxu0 0
      %3180 = vmatmul.mubr.bf16.gmra.mxu0 %v3139
      %v3181 = vpop.f32.mrf.mxu0
      %v3182 = vadd.f32 0.0, %v3181
      %v3183 = vpop.f32.mrf.mxu0
      %v3184 = vpop.f32.mrf.mxu0
      %v3185 = vadd.f32 0.0, %v3184
      %v3186 = vpop.f32.mrf.mxu0
      %3187 = vmatprep.mubr.bf16.mxu0 0
      %3188 = vmatmul.mubr.bf16.gmra.mxu0 %v3142
      %v3189 = vpop.f32.mrf.mxu0
      %v3190 = vadd.f32 0.0, %v3189
      %v3191 = vpop.f32.mrf.mxu0
      %v3192 = vpop.f32.mrf.mxu0
      %v3193 = vadd.f32 0.0, %v3192
      %v3194 = vpop.f32.mrf.mxu0
      %3195 = vdwg.mxu0
      %v3196 = vadd.f32 %v3117, %v3182
      %v3197 = vadd.f32 %v3118, %v3185
      %v3198 = vadd.f32 %v3119, %v3190
      %v3199 = vadd.f32 %v3120, %v3193
      %v3200 = vld [vmem:[%s3121] sm:$0xf]
      %v3201 = vld [vmem:[%s3121 + $0x4] sm:$0xf]
      %v3202 = vld [vmem:[%s3121 + $0x8] sm:$0x1]
      %v3203 = vld [vmem:[%s3121 + $0xc] sm:$0xf]
      %v3204 = vld [vmem:[%s3121 + $0x10] sm:$0xf]
      %v3205 = vld [vmem:[%s3121 + $0x14] sm:$0x1]
      %s3206 = scalar_lea.vmem %s2, 14
      %v3207 = vld [vmem:[%s3206] sm:$0x3]
      %v3209 = vshrl.u32 %v3200, 16
      %v3211 = vrot.slane %v3209, 4
      %v3212 = vshll.u32 %v3200, 16
      %v3214 = vrot.slane %v3212, 5
      %v3215 = vor.u32 %v3211, %v3214
      %v3216 = vrot.slane %v3215, 4
      %v3218 = vshll.u32 %v3201, 16
      %v3220 = vrot.slane %v3218, 5
      %v3221 = vsel %vm2550, %v3216, %v3220
      %v3222 = vshrl.u32 %v3201, 16
      %v3224 = vrot.slane %v3222, 4
      %v3225 = vor.u32 %v3224, %v3220
      %v3226 = vrot.slane %v3225, 4
      %v3228 = vshll.u32 %v3202, 16
      %v3230 = vrot.slane %v3228, 5
      %v3231 = vsel %vm2550, %v3226, %v3230
      %v3233 = vshrl.u32 %v3203, 16
      %v3235 = vrot.slane %v3233, 4
      %v3236 = vshll.u32 %v3203, 16
      %v3238 = vrot.slane %v3236, 5
      %v3239 = vor.u32 %v3235, %v3238
      %v3240 = vrot.slane %v3239, 4
      %v3242 = vshll.u32 %v3204, 16
      %v3244 = vrot.slane %v3242, 5
      %v3245 = vsel %vm2550, %v3240, %v3244
      %v3246 = vshrl.u32 %v3204, 16
      %v3248 = vrot.slane %v3246, 4
      %v3249 = vor.u32 %v3248, %v3244
      %v3250 = vrot.slane %v3249, 4
      %v3252 = vshll.u32 %v3205, 16
      %v3254 = vrot.slane %v3252, 5
      %v3255 = vsel %vm2550, %v3250, %v3254
      %v3256 = vunpack.c.l.b16 %v3221
      %v3257 = vunpack.c.l.b16 %v3231
      %v3258 = vunpack.c.l.b16 %v3245
      %v3259 = vunpack.c.l.b16 %v3255
      %v3260 = vpack.c.b16 %v3257, %v3256
      %v3261 = vpack.c.b16 %v3259, %v3258
      %v3263 = vsel %vm2605, %v3260, 0
      %v3266 = vsel %vm2605, %v3261, 0
      %v3269 = vsel %vm2612, %v3207, 0
      %3271 = vmatprep.subr.bf16.mxu0 0
      %3272 = vmatpush1.bf16.msra.mxu0 0
      %3273 = vmatprep.subr.bf16.mxu0 0
      %3274 = vmatpush1.bf16.msra.mxu0 0
      %3275 = vmatprep.subr.bf16.mxu0 0
      %3276 = vmatpush1.bf16.msra.mxu0 0
      %3277 = vmatprep.subr.bf16.mxu0 0
      %3278 = vmatpush1.bf16.msra.mxu0 0
      %3279 = vmatprep.subr.bf16.mxu0 0
      %3280 = vmatpush1.bf16.msra.mxu0 0
      %3281 = vmatprep.subr.bf16.mxu0 0
      %3282 = vmatpush1.bf16.msra.mxu0 0
      %3283 = vmatprep.subr.bf16.mxu0 0
      %3284 = vmatpush1.bf16.msra.mxu0 0
      %3285 = vmatprep.subr.bf16.mxu0 0
      %3286 = vmatpush1.bf16.msra.mxu0 %v3269
      %3287 = vmatprep.subr.bf16.mxu0 0
      %3288 = vmatpush2.bf16.msra.mxu0 0
      %3289 = vmatprep.subr.bf16.mxu0 0
      %3290 = vmatpush2.bf16.msra.mxu0 0
      %3291 = vmatprep.subr.bf16.mxu0 0
      %3292 = vmatpush2.bf16.msra.mxu0 0
      %3293 = vmatprep.subr.bf16.mxu0 0
      %3294 = vmatpush2.bf16.msra.mxu0 0
      %3295 = vmatprep.subr.bf16.mxu0 0
      %3296 = vmatpush2.bf16.msra.mxu0 0
      %3297 = vmatprep.subr.bf16.mxu0 0
      %3298 = vmatpush2.bf16.msra.mxu0 0
      %3299 = vmatprep.subr.bf16.mxu0 0
      %3300 = vmatpush2.bf16.msra.mxu0 0
      %3301 = vmatprep.subr.bf16.mxu0 0
      %3302 = vmatpush2.bf16.msra.mxu0 0
      %3303 = vmatprep.mubr.bf16.mxu0 0
      %3304 = vmatmul.mubr.bf16.gmra.mxu0 %v3263
      %v3305 = vpop.f32.mrf.mxu0
      %v3306 = vadd.f32 0.0, %v3305
      %v3307 = vpop.f32.mrf.mxu0
      %v3308 = vpop.f32.mrf.mxu0
      %v3309 = vadd.f32 0.0, %v3308
      %v3310 = vpop.f32.mrf.mxu0
      %3311 = vmatprep.mubr.bf16.mxu0 0
      %3312 = vmatmul.mubr.bf16.gmra.mxu0 %v3266
      %v3313 = vpop.f32.mrf.mxu0
      %v3314 = vadd.f32 0.0, %v3313
      %v3315 = vpop.f32.mrf.mxu0
      %v3316 = vpop.f32.mrf.mxu0
      %v3317 = vadd.f32 0.0, %v3316
      %v3318 = vpop.f32.mrf.mxu0
      %3319 = vdwg.mxu0
      %v3320 = vadd.f32 %v3196, %v3306
      %v3321 = vadd.f32 %v3197, %v3309
      %v3322 = vadd.f32 %v3198, %v3314
      %v3323 = vadd.f32 %v3199, %v3317
      %v3324 = vld [vmem:[%s3121] sm:$0xe]
      %v3325 = vld [vmem:[%s3121 + $0xc] sm:$0xe]
      %s3326 = scalar_lea.vmem %s2, 16
      %v3327 = vld [vmem:[%s3326] sm:$0x3]
      %v3334 = vrot.slane %v3324, 5
      %v3335 = vrot.slane %v3334, 4
      %v3336 = vrot.slane %v3201, 5
      %v3337 = vsel %vm2743, %v3335, %v3336
      %v3338 = vrot.slane %v3336, 4
      %v3339 = vrot.slane %v3202, 5
      %v3340 = vsel %vm2743, %v3338, %v3339
      %v3341 = vrot.slane %v3325, 5
      %v3342 = vrot.slane %v3341, 4
      %v3343 = vrot.slane %v3204, 5
      %v3344 = vsel %vm2743, %v3342, %v3343
      %v3345 = vrot.slane %v3343, 4
      %v3346 = vrot.slane %v3205, 5
      %v3347 = vsel %vm2743, %v3345, %v3346
      %v3348 = vunpack.c.l.b16 %v3337
      %v3349 = vunpack.c.l.b16 %v3340
      %v3350 = vunpack.c.l.b16 %v3344
      %v3351 = vunpack.c.l.b16 %v3347
      %v3352 = vpack.c.b16 %v3349, %v3348
      %v3353 = vpack.c.b16 %v3351, %v3350
      %v3355 = vsel %vm2605, %v3352, 0
      %v3358 = vsel %vm2605, %v3353, 0
      %v3361 = vsel %vm2612, %v3327, 0
      %3363 = vmatprep.subr.bf16.mxu0 0
      %3364 = vmatpush1.bf16.msra.mxu0 0
      %3365 = vmatprep.subr.bf16.mxu0 0
      %3366 = vmatpush1.bf16.msra.mxu0 0
      %3367 = vmatprep.subr.bf16.mxu0 0
      %3368 = vmatpush1.bf16.msra.mxu0 0
      %3369 = vmatprep.subr.bf16.mxu0 0
      %3370 = vmatpush1.bf16.msra.mxu0 0
      %3371 = vmatprep.subr.bf16.mxu0 0
      %3372 = vmatpush1.bf16.msra.mxu0 0
      %3373 = vmatprep.subr.bf16.mxu0 0
      %3374 = vmatpush1.bf16.msra.mxu0 0
      %3375 = vmatprep.subr.bf16.mxu0 0
      %3376 = vmatpush1.bf16.msra.mxu0 0
      %3377 = vmatprep.subr.bf16.mxu0 0
      %3378 = vmatpush1.bf16.msra.mxu0 %v3361
      %3379 = vmatprep.subr.bf16.mxu0 0
      %3380 = vmatpush2.bf16.msra.mxu0 0
      %3381 = vmatprep.subr.bf16.mxu0 0
      %3382 = vmatpush2.bf16.msra.mxu0 0
      %3383 = vmatprep.subr.bf16.mxu0 0
      %3384 = vmatpush2.bf16.msra.mxu0 0
      %3385 = vmatprep.subr.bf16.mxu0 0
      %3386 = vmatpush2.bf16.msra.mxu0 0
      %3387 = vmatprep.subr.bf16.mxu0 0
      %3388 = vmatpush2.bf16.msra.mxu0 0
      %3389 = vmatprep.subr.bf16.mxu0 0
      %3390 = vmatpush2.bf16.msra.mxu0 0
      %3391 = vmatprep.subr.bf16.mxu0 0
      %3392 = vmatpush2.bf16.msra.mxu0 0
      %3393 = vmatprep.subr.bf16.mxu0 0
      %3394 = vmatpush2.bf16.msra.mxu0 0
      %3395 = vmatprep.mubr.bf16.mxu0 0
      %3396 = vmatmul.mubr.bf16.gmra.mxu0 %v3355
      %v3397 = vpop.f32.mrf.mxu0
      %v3398 = vadd.f32 0.0, %v3397
      %v3399 = vpop.f32.mrf.mxu0
      %v3400 = vpop.f32.mrf.mxu0
      %v3401 = vadd.f32 0.0, %v3400
      %v3402 = vpop.f32.mrf.mxu0
      %3403 = vmatprep.mubr.bf16.mxu0 0
      %3404 = vmatmul.mubr.bf16.gmra.mxu0 %v3358
      %v3405 = vpop.f32.mrf.mxu0
      %v3406 = vadd.f32 0.0, %v3405
      %v3407 = vpop.f32.mrf.mxu0
      %v3408 = vpop.f32.mrf.mxu0
      %v3409 = vadd.f32 0.0, %v3408
      %v3410 = vpop.f32.mrf.mxu0
      %3411 = vdwg.mxu0
      %v3412 = vadd.f32 %v3320, %v3398
      %v3413 = vadd.f32 %v3321, %v3401
      %v3414 = vadd.f32 %v3322, %v3406
      %v3415 = vadd.f32 %v3323, %v3409
      %v3416 = vld [vmem:[%s3] sm:$0x1]
      %v3418 = vlaneseq
      %v3419 = vshrl.u32 %v3418, 7
      %v3420 = vsub.s32 0, %v3419
      %v3421 = vrot.slane %v3416, %v3420
      %v3423 = vadd.f32 %v3412, %v3421
      %v3424 = vadd.f32 %v3413, %v3421
      %v3425 = vadd.f32 %v3414, %v3421
      %v3426 = vadd.f32 %v3415, %v3421
      %v3427 = vmax.f32 %v3423, 0.0
      %v3428 = vmax.f32 %v3424, 0.0
      %v3429 = vmax.f32 %v3425, 0.0
      %v3430 = vmax.f32 %v3426, 0.0
      %v3431 = vpack.c.bf16 %v3428, %v3427
      %v3432 = vpack.c.bf16 %v3430, %v3429
      %v3435 = vunpack.c.l.b16 %v3431
      %v3436 = vunpack.c.h.b16 %v3431
      %v3437 = vunpack.c.l.b16 %v3432
      %v3438 = vunpack.c.h.b16 %v3432
      %v3439 = vpack.c.b16 %v3435, %v3435
      %v3440 = vpack.c.b16 %v3436, %v3436
      %v3441 = vpack.c.b16 %v3437, %v3437
      %v3442 = vpack.c.b16 %v3438, %v3438
      %v3444 = vshrl.u32 %v3439, 16
      %v3446 = vrot.slane %v3444, 7
      %v3447 = vshll.u32 %v3439, 16
      %v3449 = vor.u32 %v3446, %v3447
      %v3450 = vrot.slane %v3446, 4
      %v3452 = vshrl.u32 %v3440, 16
      %v3454 = vrot.slane %v3452, 7
      %v3455 = vshll.u32 %v3440, 16
      %v3457 = vor.u32 %v3454, %v3455
      %v3458 = vsel %vm534, %v3450, %v3457
      %v3459 = vrot.slane %v3454, 4
      %v3461 = vshrl.u32 %v3441, 16
      %v3463 = vrot.slane %v3461, 7
      %v3464 = vshll.u32 %v3441, 16
      %v3466 = vor.u32 %v3463, %v3464
      %v3467 = vrot.slane %v3463, 4
      %v3469 = vshrl.u32 %v3442, 16
      %v3471 = vrot.slane %v3469, 7
      %v3472 = vshll.u32 %v3442, 16
      %v3474 = vor.u32 %v3471, %v3472
      %v3475 = vsel %vm534, %v3467, %v3474
      %v3476 = vrot.slane %v3471, 4
      %s3483 = scalar_lea.vmem [#allocation3], 96
      %v3484 = vld [vmem:[%s3483] sm:$0xf]
      %v3485 = vsel %vm696, %v3449, %v3484
      %3486 = vst [vmem:[%s3483] sm:$0xf] %v3485
      %3487 = vst.msk [vmem:[%s3483 + $0x4] sm:$0xf] %vm700, %v3458
      %v3488 = vld [vmem:[%s3483 + $0x8] sm:$0x1]
      %v3489 = vsel %vm378, %v3459, %v3488
      %3490 = vst [vmem:[%s3483 + $0x8] sm:$0x1] %v3489
      %v3491 = vld [vmem:[%s3483 + $0xc] sm:$0xf]
      %v3492 = vsel %vm696, %v3466, %v3491
      %3493 = vst [vmem:[%s3483 + $0xc] sm:$0xf] %v3492
      %3494 = vst.msk [vmem:[%s3483 + $0x10] sm:$0xf] %vm700, %v3475
      %v3495 = vld [vmem:[%s3483 + $0x14] sm:$0x1]
      %v3496 = vsel %vm378, %v3476, %v3495
      %3497 = vst [vmem:[%s3483 + $0x14] sm:$0x1] %v3496
      %p3498 = scmp.eq.s32.totalorder %s375, 0
      // Predicated region
      $region52: #{tpu_custom_call.1} parent=43 // pred_check
        %p3499 = pneg %p3498
      $region53: #{tpu_custom_call.1} parent=43 // pred_check_branch
        %3501 = sbr.rel (%p3499) target = $region55
      $region54: #{tpu_custom_call.1} parent=43 // pred_region
        %3502 = vst.msk [vmem:[#allocation3] sm:$0xf] %vm700, 0
        %3503 = vst.msk [vmem:[#allocation3 + $0x4] sm:$0xf] %vm700, 0
        %vm3504 = vcmask 24576
        %3505 = vst.msk [vmem:[#allocation3 + $0x8] sm:$0x1] %vm3504, 0
      $region55: #{tpu_custom_call.1} parent=43 // pred_fallthru
        _
      %s3506 = ssub.s32 17, %s375
      %p3507 = scmp.lt.s32.totalorder %s3506, 10
      // Predicated region
      $region56: #{tpu_custom_call.1} parent=43 // pred_check
        %p3508 = pneg %p3507
      $region57: #{tpu_custom_call.1} parent=43 // pred_check_branch
        %3510 = sbr.rel (%p3508) target = $region59
      $region58: #{tpu_custom_call.1} parent=43 // pred_region
        %s3511 = smul.u32 %s3506, 3
        %s3512 = smul.addr %s3511, 4
        %s3513 = scalar_lea.vmem [#allocation3], %s3512
        %3514 = vst.msk [vmem:[%s3513] sm:$0xf] %vm700, 0
        %3515 = vst.msk [vmem:[%s3513 + $0x4] sm:$0xf] %vm700, 0
        %vm3516 = vcmask 24576
        %3517 = vst.msk [vmem:[%s3513 + $0x8] sm:$0x1] %vm3516, 0
      $region59: #{tpu_custom_call.1} parent=43 // pred_fallthru
        _
      loop: start=0, step=1, limit=2
      $region60: #{tpu_custom_call.1} parent=43 // loop_pre_header
        _
      $region61: #{tpu_custom_call.1} parent=43 // loop_header
        %s3519 = sphi 0, %s3523
        %p3520 = scmp.ge.s32.totalorder %s3519, 2
      $region62: #{tpu_custom_call.1} parent=43 // loop_header_branch
        %3522 = sbr.rel (%p3520) target = $region66
      $region63: #{tpu_custom_call.1} parent=43 // loop_body
        %s3524 = smul.u32 %s3519, 4
        %s3525 = smul.u32 %s3524, 3
        %s3526 = smul.addr %s3525, 4
        %s3527 = scalar_lea.vmem [#allocation3], %s3526
        %v3528 = vld [vmem:[%s3527] sm:$0xf]
        %v3529 = vld [vmem:[%s3527 + $0x4] sm:$0xf]
        %v3530 = vld [vmem:[%s3527 + $0xc] sm:$0xf]
        %v3531 = vld [vmem:[%s3527 + $0x10] sm:$0xf]
        %v3532 = vld [vmem:[%s3527 + $0x18] sm:$0xf]
        %v3533 = vld [vmem:[%s3527 + $0x1c] sm:$0xf]
        %v3534 = vld [vmem:[%s3527 + $0x24] sm:$0xf]
        %v3535 = vld [vmem:[%s3527 + $0x28] sm:$0xf]
        %v3536 = vld [vmem:[%s4] sm:$0x3]
        %v3537 = vld [vmem:[%s3527 + $0x8] sm:$0x1]
        %v3538 = vld [vmem:[%s3527 + $0x14] sm:$0x1]
        %v3539 = vld [vmem:[%s3527 + $0x20] sm:$0x1]
        %v3540 = vld [vmem:[%s3527 + $0x2c] sm:$0x1]
        %s3541 = scalar_lea.vmem %s4, 2
        %v3542 = vld [vmem:[%s3541] sm:$0x3]
        %v3544 = vshrl.u32 %v3528, 16
        %v3546 = vrot.slane %v3544, 4
        %v3547 = vshll.u32 %v3528, 16
        %v3549 = vrot.slane %v3547, 5
        %v3550 = vor.u32 %v3546, %v3549
        %v3551 = vrot.slane %v3550, 4
        %v3553 = vshll.u32 %v3529, 16
        %v3555 = vrot.slane %v3553, 5
        %v3556 = vsel %vm2550, %v3551, %v3555
        %v3557 = vshrl.u32 %v3529, 16
        %v3559 = vrot.slane %v3557, 4
        %v3560 = vor.u32 %v3559, %v3555
        %v3561 = vrot.slane %v3560, 4
        %v3563 = vshll.u32 %v3537, 16
        %v3565 = vrot.slane %v3563, 5
        %v3566 = vsel %vm2550, %v3561, %v3565
        %v3568 = vshrl.u32 %v3530, 16
        %v3570 = vrot.slane %v3568, 4
        %v3571 = vshll.u32 %v3530, 16
        %v3573 = vrot.slane %v3571, 5
        %v3574 = vor.u32 %v3570, %v3573
        %v3575 = vrot.slane %v3574, 4
        %v3577 = vshll.u32 %v3531, 16
        %v3579 = vrot.slane %v3577, 5
        %v3580 = vsel %vm2550, %v3575, %v3579
        %v3581 = vshrl.u32 %v3531, 16
        %v3583 = vrot.slane %v3581, 4
        %v3584 = vor.u32 %v3583, %v3579
        %v3585 = vrot.slane %v3584, 4
        %v3587 = vshll.u32 %v3538, 16
        %v3589 = vrot.slane %v3587, 5
        %v3590 = vsel %vm2550, %v3585, %v3589
        %v3592 = vshrl.u32 %v3532, 16
        %v3594 = vrot.slane %v3592, 4
        %v3595 = vshll.u32 %v3532, 16
        %v3597 = vrot.slane %v3595, 5
        %v3598 = vor.u32 %v3594, %v3597
        %v3599 = vrot.slane %v3598, 4
        %v3601 = vshll.u32 %v3533, 16
        %v3603 = vrot.slane %v3601, 5
        %v3604 = vsel %vm2550, %v3599, %v3603
        %v3605 = vshrl.u32 %v3533, 16
        %v3607 = vrot.slane %v3605, 4
        %v3608 = vor.u32 %v3607, %v3603
        %v3609 = vrot.slane %v3608, 4
        %v3611 = vshll.u32 %v3539, 16
        %v3613 = vrot.slane %v3611, 5
        %v3614 = vsel %vm2550, %v3609, %v3613
        %v3616 = vshrl.u32 %v3534, 16
        %v3618 = vrot.slane %v3616, 4
        %v3619 = vshll.u32 %v3534, 16
        %v3621 = vrot.slane %v3619, 5
        %v3622 = vor.u32 %v3618, %v3621
        %v3623 = vrot.slane %v3622, 4
        %v3625 = vshll.u32 %v3535, 16
        %v3627 = vrot.slane %v3625, 5
        %v3628 = vsel %vm2550, %v3623, %v3627
        %v3629 = vshrl.u32 %v3535, 16
        %v3631 = vrot.slane %v3629, 4
        %v3632 = vor.u32 %v3631, %v3627
        %v3633 = vrot.slane %v3632, 4
        %v3635 = vshll.u32 %v3540, 16
        %v3637 = vrot.slane %v3635, 5
        %v3638 = vsel %vm2550, %v3633, %v3637
        %v3639 = vunpack.c.l.b16 %v3556
        %v3640 = vunpack.c.l.b16 %v3566
        %v3641 = vunpack.c.l.b16 %v3580
        %v3642 = vunpack.c.l.b16 %v3590
        %v3643 = vunpack.c.l.b16 %v3604
        %v3644 = vunpack.c.l.b16 %v3614
        %v3645 = vunpack.c.l.b16 %v3628
        %v3646 = vunpack.c.l.b16 %v3638
        %v3647 = vpack.c.b16 %v3640, %v3639
        %v3648 = vpack.c.b16 %v3642, %v3641
        %v3649 = vpack.c.b16 %v3644, %v3643
        %v3650 = vpack.c.b16 %v3646, %v3645
        %v3652 = vsel %vm2605, %v3647, 0
        %v3655 = vsel %vm2605, %v3648, 0
        %v3658 = vsel %vm2605, %v3649, 0
        %v3661 = vsel %vm2605, %v3650, 0
        %v3664 = vsel %vm2612, %v3542, 0
        %3666 = vmatprep.subr.bf16.mxu0 0
        %3667 = vmatpush1.bf16.msra.mxu0 0
        %3668 = vmatprep.subr.bf16.mxu0 0
        %3669 = vmatpush1.bf16.msra.mxu0 0
        %3670 = vmatprep.subr.bf16.mxu0 0
        %3671 = vmatpush1.bf16.msra.mxu0 0
        %3672 = vmatprep.subr.bf16.mxu0 0
        %3673 = vmatpush1.bf16.msra.mxu0 0
        %3674 = vmatprep.subr.bf16.mxu0 0
        %3675 = vmatpush1.bf16.msra.mxu0 0
        %3676 = vmatprep.subr.bf16.mxu0 0
        %3677 = vmatpush1.bf16.msra.mxu0 0
        %3678 = vmatprep.subr.bf16.mxu0 0
        %3679 = vmatpush1.bf16.msra.mxu0 0
        %3680 = vmatprep.subr.bf16.mxu0 0
        %3681 = vmatpush1.bf16.msra.mxu0 %v3664
        %3682 = vmatprep.subr.bf16.mxu0 0
        %3683 = vmatpush2.bf16.msra.mxu0 0
        %3684 = vmatprep.subr.bf16.mxu0 0
        %3685 = vmatpush2.bf16.msra.mxu0 0
        %3686 = vmatprep.subr.bf16.mxu0 0
        %3687 = vmatpush2.bf16.msra.mxu0 0
        %3688 = vmatprep.subr.bf16.mxu0 0
        %3689 = vmatpush2.bf16.msra.mxu0 0
        %3690 = vmatprep.subr.bf16.mxu0 0
        %3691 = vmatpush2.bf16.msra.mxu0 0
        %3692 = vmatprep.subr.bf16.mxu0 0
        %3693 = vmatpush2.bf16.msra.mxu0 0
        %3694 = vmatprep.subr.bf16.mxu0 0
        %3695 = vmatpush2.bf16.msra.mxu0 0
        %3696 = vmatprep.subr.bf16.mxu0 0
        %3697 = vmatpush2.bf16.msra.mxu0 0
        %3698 = vmatprep.mubr.bf16.mxu0 0
        %3699 = vmatmul.mubr.bf16.gmra.mxu0 %v3652
        %v3700 = vpop.f32.mrf.mxu0
        %v3701 = vadd.f32 0.0, %v3700
        %v3702 = vpop.f32.mrf.mxu0
        %v3703 = vpop.f32.mrf.mxu0
        %v3704 = vadd.f32 0.0, %v3703
        %v3705 = vpop.f32.mrf.mxu0
        %3706 = vmatprep.mubr.bf16.mxu0 0
        %3707 = vmatmul.mubr.bf16.gmra.mxu0 %v3655
        %v3708 = vpop.f32.mrf.mxu0
        %v3709 = vadd.f32 0.0, %v3708
        %v3710 = vpop.f32.mrf.mxu0
        %v3711 = vpop.f32.mrf.mxu0
        %v3712 = vadd.f32 0.0, %v3711
        %v3713 = vpop.f32.mrf.mxu0
        %3714 = vmatprep.mubr.bf16.mxu0 0
        %3715 = vmatmul.mubr.bf16.gmra.mxu0 %v3658
        %v3716 = vpop.f32.mrf.mxu0
        %v3717 = vadd.f32 0.0, %v3716
        %v3718 = vpop.f32.mrf.mxu0
        %v3719 = vpop.f32.mrf.mxu0
        %v3720 = vadd.f32 0.0, %v3719
        %v3721 = vpop.f32.mrf.mxu0
        %3722 = vmatprep.mubr.bf16.mxu0 0
        %3723 = vmatmul.mubr.bf16.gmra.mxu0 %v3661
        %v3724 = vpop.f32.mrf.mxu0
        %v3725 = vadd.f32 0.0, %v3724
        %v3726 = vpop.f32.mrf.mxu0
        %v3727 = vpop.f32.mrf.mxu0
        %v3728 = vadd.f32 0.0, %v3727
        %v3729 = vpop.f32.mrf.mxu0
        %3730 = vdwg.mxu0
        %v3739 = vunpack.c.l.b16 %v3528
        %v3740 = vunpack.c.l.b16 %v3529
        %v3741 = vunpack.c.l.b16 %v3530
        %v3742 = vunpack.c.l.b16 %v3531
        %v3743 = vunpack.c.l.b16 %v3532
        %v3744 = vunpack.c.l.b16 %v3533
        %v3745 = vunpack.c.l.b16 %v3534
        %v3746 = vunpack.c.l.b16 %v3535
        %v3747 = vpack.c.b16 %v3740, %v3739
        %v3748 = vpack.c.b16 %v3742, %v3741
        %v3749 = vpack.c.b16 %v3744, %v3743
        %v3750 = vpack.c.b16 %v3746, %v3745
        %v3752 = vsel %vm2605, %v3747, 0
        %v3755 = vsel %vm2605, %v3748, 0
        %v3758 = vsel %vm2605, %v3749, 0
        %v3761 = vsel %vm2605, %v3750, 0
        %v3764 = vsel %vm2612, %v3536, 0
        %3766 = vmatprep.subr.bf16.mxu0 0
        %3767 = vmatpush1.bf16.msra.mxu0 0
        %3768 = vmatprep.subr.bf16.mxu0 0
        %3769 = vmatpush1.bf16.msra.mxu0 0
        %3770 = vmatprep.subr.bf16.mxu0 0
        %3771 = vmatpush1.bf16.msra.mxu0 0
        %3772 = vmatprep.subr.bf16.mxu0 0
        %3773 = vmatpush1.bf16.msra.mxu0 0
        %3774 = vmatprep.subr.bf16.mxu0 0
        %3775 = vmatpush1.bf16.msra.mxu0 0
        %3776 = vmatprep.subr.bf16.mxu0 0
        %3777 = vmatpush1.bf16.msra.mxu0 0
        %3778 = vmatprep.subr.bf16.mxu0 0
        %3779 = vmatpush1.bf16.msra.mxu0 0
        %3780 = vmatprep.subr.bf16.mxu0 0
        %3781 = vmatpush1.bf16.msra.mxu0 %v3764
        %3782 = vmatprep.subr.bf16.mxu0 0
        %3783 = vmatpush2.bf16.msra.mxu0 0
        %3784 = vmatprep.subr.bf16.mxu0 0
        %3785 = vmatpush2.bf16.msra.mxu0 0
        %3786 = vmatprep.subr.bf16.mxu0 0
        %3787 = vmatpush2.bf16.msra.mxu0 0
        %3788 = vmatprep.subr.bf16.mxu0 0
        %3789 = vmatpush2.bf16.msra.mxu0 0
        %3790 = vmatprep.subr.bf16.mxu0 0
        %3791 = vmatpush2.bf16.msra.mxu0 0
        %3792 = vmatprep.subr.bf16.mxu0 0
        %3793 = vmatpush2.bf16.msra.mxu0 0
        %3794 = vmatprep.subr.bf16.mxu0 0
        %3795 = vmatpush2.bf16.msra.mxu0 0
        %3796 = vmatprep.subr.bf16.mxu0 0
        %3797 = vmatpush2.bf16.msra.mxu0 0
        %3798 = vmatprep.mubr.bf16.mxu0 0
        %3799 = vmatmul.mubr.bf16.gmra.mxu0 %v3752
        %v3800 = vpop.f32.mrf.mxu0
        %v3801 = vadd.f32 %v3701, %v3800
        %v3802 = vpop.f32.mrf.mxu0
        %v3803 = vpop.f32.mrf.mxu0
        %v3804 = vadd.f32 %v3704, %v3803
        %v3805 = vpop.f32.mrf.mxu0
        %3806 = vmatprep.mubr.bf16.mxu0 0
        %3807 = vmatmul.mubr.bf16.gmra.mxu0 %v3755
        %v3808 = vpop.f32.mrf.mxu0
        %v3809 = vadd.f32 %v3709, %v3808
        %v3810 = vpop.f32.mrf.mxu0
        %v3811 = vpop.f32.mrf.mxu0
        %v3812 = vadd.f32 %v3712, %v3811
        %v3813 = vpop.f32.mrf.mxu0
        %3814 = vmatprep.mubr.bf16.mxu0 0
        %3815 = vmatmul.mubr.bf16.gmra.mxu0 %v3758
        %v3816 = vpop.f32.mrf.mxu0
        %v3817 = vadd.f32 %v3717, %v3816
        %v3818 = vpop.f32.mrf.mxu0
        %v3819 = vpop.f32.mrf.mxu0
        %v3820 = vadd.f32 %v3720, %v3819
        %v3821 = vpop.f32.mrf.mxu0
        %3822 = vmatprep.mubr.bf16.mxu0 0
        %3823 = vmatmul.mubr.bf16.gmra.mxu0 %v3761
        %v3824 = vpop.f32.mrf.mxu0
        %v3825 = vadd.f32 %v3725, %v3824
        %v3826 = vpop.f32.mrf.mxu0
        %v3827 = vpop.f32.mrf.mxu0
        %v3828 = vadd.f32 %v3728, %v3827
        %v3829 = vpop.f32.mrf.mxu0
        %3830 = vdwg.mxu0
        %v3831 = vld [vmem:[%s3527] sm:$0xe]
        %v3832 = vld [vmem:[%s3527 + $0xc] sm:$0xe]
        %v3833 = vld [vmem:[%s3527 + $0x18] sm:$0xe]
        %v3834 = vld [vmem:[%s3527 + $0x24] sm:$0xe]
        %s3835 = scalar_lea.vmem %s4, 4
        %v3836 = vld [vmem:[%s3835] sm:$0x3]
        %v3845 = vrot.slane %v3831, 5
        %v3846 = vrot.slane %v3845, 4
        %v3847 = vrot.slane %v3529, 5
        %v3848 = vsel %vm2743, %v3846, %v3847
        %v3849 = vrot.slane %v3847, 4
        %v3850 = vrot.slane %v3537, 5
        %v3851 = vsel %vm2743, %v3849, %v3850
        %v3852 = vrot.slane %v3832, 5
        %v3853 = vrot.slane %v3852, 4
        %v3854 = vrot.slane %v3531, 5
        %v3855 = vsel %vm2743, %v3853, %v3854
        %v3856 = vrot.slane %v3854, 4
        %v3857 = vrot.slane %v3538, 5
        %v3858 = vsel %vm2743, %v3856, %v3857
        %v3859 = vrot.slane %v3833, 5
        %v3860 = vrot.slane %v3859, 4
        %v3861 = vrot.slane %v3533, 5
        %v3862 = vsel %vm2743, %v3860, %v3861
        %v3863 = vrot.slane %v3861, 4
        %v3864 = vrot.slane %v3539, 5
        %v3865 = vsel %vm2743, %v3863, %v3864
        %v3866 = vrot.slane %v3834, 5
        %v3867 = vrot.slane %v3866, 4
        %v3868 = vrot.slane %v3535, 5
        %v3869 = vsel %vm2743, %v3867, %v3868
        %v3870 = vrot.slane %v3868, 4
        %v3871 = vrot.slane %v3540, 5
        %v3872 = vsel %vm2743, %v3870, %v3871
        %v3873 = vunpack.c.l.b16 %v3848
        %v3874 = vunpack.c.l.b16 %v3851
        %v3875 = vunpack.c.l.b16 %v3855
        %v3876 = vunpack.c.l.b16 %v3858
        %v3877 = vunpack.c.l.b16 %v3862
        %v3878 = vunpack.c.l.b16 %v3865
        %v3879 = vunpack.c.l.b16 %v3869
        %v3880 = vunpack.c.l.b16 %v3872
        %v3881 = vpack.c.b16 %v3874, %v3873
        %v3882 = vpack.c.b16 %v3876, %v3875
        %v3883 = vpack.c.b16 %v3878, %v3877
        %v3884 = vpack.c.b16 %v3880, %v3879
        %v3886 = vsel %vm2605, %v3881, 0
        %v3889 = vsel %vm2605, %v3882, 0
        %v3892 = vsel %vm2605, %v3883, 0
        %v3895 = vsel %vm2605, %v3884, 0
        %v3898 = vsel %vm2612, %v3836, 0
        %3900 = vmatprep.subr.bf16.mxu0 0
        %3901 = vmatpush1.bf16.msra.mxu0 0
        %3902 = vmatprep.subr.bf16.mxu0 0
        %3903 = vmatpush1.bf16.msra.mxu0 0
        %3904 = vmatprep.subr.bf16.mxu0 0
        %3905 = vmatpush1.bf16.msra.mxu0 0
        %3906 = vmatprep.subr.bf16.mxu0 0
        %3907 = vmatpush1.bf16.msra.mxu0 0
        %3908 = vmatprep.subr.bf16.mxu0 0
        %3909 = vmatpush1.bf16.msra.mxu0 0
        %3910 = vmatprep.subr.bf16.mxu0 0
        %3911 = vmatpush1.bf16.msra.mxu0 0
        %3912 = vmatprep.subr.bf16.mxu0 0
        %3913 = vmatpush1.bf16.msra.mxu0 0
        %3914 = vmatprep.subr.bf16.mxu0 0
        %3915 = vmatpush1.bf16.msra.mxu0 %v3898
        %3916 = vmatprep.subr.bf16.mxu0 0
        %3917 = vmatpush2.bf16.msra.mxu0 0
        %3918 = vmatprep.subr.bf16.mxu0 0
        %3919 = vmatpush2.bf16.msra.mxu0 0
        %3920 = vmatprep.subr.bf16.mxu0 0
        %3921 = vmatpush2.bf16.msra.mxu0 0
        %3922 = vmatprep.subr.bf16.mxu0 0
        %3923 = vmatpush2.bf16.msra.mxu0 0
        %3924 = vmatprep.subr.bf16.mxu0 0
        %3925 = vmatpush2.bf16.msra.mxu0 0
        %3926 = vmatprep.subr.bf16.mxu0 0
        %3927 = vmatpush2.bf16.msra.mxu0 0
        %3928 = vmatprep.subr.bf16.mxu0 0
        %3929 = vmatpush2.bf16.msra.mxu0 0
        %3930 = vmatprep.subr.bf16.mxu0 0
        %3931 = vmatpush2.bf16.msra.mxu0 0
        %3932 = vmatprep.mubr.bf16.mxu0 0
        %3933 = vmatmul.mubr.bf16.gmra.mxu0 %v3886
        %v3934 = vpop.f32.mrf.mxu0
        %v3935 = vadd.f32 0.0, %v3934
        %v3936 = vpop.f32.mrf.mxu0
        %v3937 = vpop.f32.mrf.mxu0
        %v3938 = vadd.f32 0.0, %v3937
        %v3939 = vpop.f32.mrf.mxu0
        %3940 = vmatprep.mubr.bf16.mxu0 0
        %3941 = vmatmul.mubr.bf16.gmra.mxu0 %v3889
        %v3942 = vpop.f32.mrf.mxu0
        %v3943 = vadd.f32 0.0, %v3942
        %v3944 = vpop.f32.mrf.mxu0
        %v3945 = vpop.f32.mrf.mxu0
        %v3946 = vadd.f32 0.0, %v3945
        %v3947 = vpop.f32.mrf.mxu0
        %3948 = vmatprep.mubr.bf16.mxu0 0
        %3949 = vmatmul.mubr.bf16.gmra.mxu0 %v3892
        %v3950 = vpop.f32.mrf.mxu0
        %v3951 = vadd.f32 0.0, %v3950
        %v3952 = vpop.f32.mrf.mxu0
        %v3953 = vpop.f32.mrf.mxu0
        %v3954 = vadd.f32 0.0, %v3953
        %v3955 = vpop.f32.mrf.mxu0
        %3956 = vmatprep.mubr.bf16.mxu0 0
        %3957 = vmatmul.mubr.bf16.gmra.mxu0 %v3895
        %v3958 = vpop.f32.mrf.mxu0
        %v3959 = vadd.f32 0.0, %v3958
        %v3960 = vpop.f32.mrf.mxu0
        %v3961 = vpop.f32.mrf.mxu0
        %v3962 = vadd.f32 0.0, %v3961
        %v3963 = vpop.f32.mrf.mxu0
        %3964 = vdwg.mxu0
        %v3965 = vadd.f32 %v3801, %v3935
        %v3966 = vadd.f32 %v3804, %v3938
        %v3967 = vadd.f32 %v3809, %v3943
        %v3968 = vadd.f32 %v3812, %v3946
        %v3969 = vadd.f32 %v3817, %v3951
        %v3970 = vadd.f32 %v3820, %v3954
        %v3971 = vadd.f32 %v3825, %v3959
        %v3972 = vadd.f32 %v3828, %v3962
        %s3973 = sadd.s32 %s3524, 1
        %s3974 = smul.u32 %s3973, 3
        %s3975 = smul.addr %s3974, 4
        %s3976 = scalar_lea.vmem [#allocation3], %s3975
        %v3977 = vld [vmem:[%s3976] sm:$0xf]
        %v3978 = vld [vmem:[%s3976 + $0x4] sm:$0xf]
        %v3979 = vld [vmem:[%s3976 + $0xc] sm:$0xf]
        %v3980 = vld [vmem:[%s3976 + $0x10] sm:$0xf]
        %v3981 = vld [vmem:[%s3976 + $0x18] sm:$0xf]
        %v3982 = vld [vmem:[%s3976 + $0x1c] sm:$0xf]
        %v3983 = vld [vmem:[%s3976 + $0x24] sm:$0xf]
        %v3984 = vld [vmem:[%s3976 + $0x28] sm:$0xf]
        %s3985 = scalar_lea.vmem %s4, 6
        %v3986 = vld [vmem:[%s3985] sm:$0x3]
        %v3995 = vunpack.c.l.b16 %v3977
        %v3996 = vunpack.c.l.b16 %v3978
        %v3997 = vunpack.c.l.b16 %v3979
        %v3998 = vunpack.c.l.b16 %v3980
        %v3999 = vunpack.c.l.b16 %v3981
        %v4000 = vunpack.c.l.b16 %v3982
        %v4001 = vunpack.c.l.b16 %v3983
        %v4002 = vunpack.c.l.b16 %v3984
        %v4003 = vpack.c.b16 %v3996, %v3995
        %v4004 = vpack.c.b16 %v3998, %v3997
        %v4005 = vpack.c.b16 %v4000, %v3999
        %v4006 = vpack.c.b16 %v4002, %v4001
        %v4008 = vsel %vm2605, %v4003, 0
        %v4011 = vsel %vm2605, %v4004, 0
        %v4014 = vsel %vm2605, %v4005, 0
        %v4017 = vsel %vm2605, %v4006, 0
        %v4020 = vsel %vm2612, %v3986, 0
        %4022 = vmatprep.subr.bf16.mxu0 0
        %4023 = vmatpush1.bf16.msra.mxu0 0
        %4024 = vmatprep.subr.bf16.mxu0 0
        %4025 = vmatpush1.bf16.msra.mxu0 0
        %4026 = vmatprep.subr.bf16.mxu0 0
        %4027 = vmatpush1.bf16.msra.mxu0 0
        %4028 = vmatprep.subr.bf16.mxu0 0
        %4029 = vmatpush1.bf16.msra.mxu0 0
        %4030 = vmatprep.subr.bf16.mxu0 0
        %4031 = vmatpush1.bf16.msra.mxu0 0
        %4032 = vmatprep.subr.bf16.mxu0 0
        %4033 = vmatpush1.bf16.msra.mxu0 0
        %4034 = vmatprep.subr.bf16.mxu0 0
        %4035 = vmatpush1.bf16.msra.mxu0 0
        %4036 = vmatprep.subr.bf16.mxu0 0
        %4037 = vmatpush1.bf16.msra.mxu0 %v4020
        %4038 = vmatprep.subr.bf16.mxu0 0
        %4039 = vmatpush2.bf16.msra.mxu0 0
        %4040 = vmatprep.subr.bf16.mxu0 0
        %4041 = vmatpush2.bf16.msra.mxu0 0
        %4042 = vmatprep.subr.bf16.mxu0 0
        %4043 = vmatpush2.bf16.msra.mxu0 0
        %4044 = vmatprep.subr.bf16.mxu0 0
        %4045 = vmatpush2.bf16.msra.mxu0 0
        %4046 = vmatprep.subr.bf16.mxu0 0
        %4047 = vmatpush2.bf16.msra.mxu0 0
        %4048 = vmatprep.subr.bf16.mxu0 0
        %4049 = vmatpush2.bf16.msra.mxu0 0
        %4050 = vmatprep.subr.bf16.mxu0 0
        %4051 = vmatpush2.bf16.msra.mxu0 0
        %4052 = vmatprep.subr.bf16.mxu0 0
        %4053 = vmatpush2.bf16.msra.mxu0 0
        %4054 = vmatprep.mubr.bf16.mxu0 0
        %4055 = vmatmul.mubr.bf16.gmra.mxu0 %v4008
        %v4056 = vpop.f32.mrf.mxu0
        %v4057 = vadd.f32 0.0, %v4056
        %v4058 = vpop.f32.mrf.mxu0
        %v4059 = vpop.f32.mrf.mxu0
        %v4060 = vadd.f32 0.0, %v4059
        %v4061 = vpop.f32.mrf.mxu0
        %4062 = vmatprep.mubr.bf16.mxu0 0
        %4063 = vmatmul.mubr.bf16.gmra.mxu0 %v4011
        %v4064 = vpop.f32.mrf.mxu0
        %v4065 = vadd.f32 0.0, %v4064
        %v4066 = vpop.f32.mrf.mxu0
        %v4067 = vpop.f32.mrf.mxu0
        %v4068 = vadd.f32 0.0, %v4067
        %v4069 = vpop.f32.mrf.mxu0
        %4070 = vmatprep.mubr.bf16.mxu0 0
        %4071 = vmatmul.mubr.bf16.gmra.mxu0 %v4014
        %v4072 = vpop.f32.mrf.mxu0
        %v4073 = vadd.f32 0.0, %v4072
        %v4074 = vpop.f32.mrf.mxu0
        %v4075 = vpop.f32.mrf.mxu0
        %v4076 = vadd.f32 0.0, %v4075
        %v4077 = vpop.f32.mrf.mxu0
        %4078 = vmatprep.mubr.bf16.mxu0 0
        %4079 = vmatmul.mubr.bf16.gmra.mxu0 %v4017
        %v4080 = vpop.f32.mrf.mxu0
        %v4081 = vadd.f32 0.0, %v4080
        %v4082 = vpop.f32.mrf.mxu0
        %v4083 = vpop.f32.mrf.mxu0
        %v4084 = vadd.f32 0.0, %v4083
        %v4085 = vpop.f32.mrf.mxu0
        %4086 = vdwg.mxu0
        %v4087 = vadd.f32 %v3965, %v4057
        %v4088 = vadd.f32 %v3966, %v4060
        %v4089 = vadd.f32 %v3967, %v4065
        %v4090 = vadd.f32 %v3968, %v4068
        %v4091 = vadd.f32 %v3969, %v4073
        %v4092 = vadd.f32 %v3970, %v4076
        %v4093 = vadd.f32 %v3971, %v4081
        %v4094 = vadd.f32 %v3972, %v4084
        %v4095 = vld [vmem:[%s3976] sm:$0xf]
        %v4096 = vld [vmem:[%s3976 + $0x4] sm:$0xf]
        %v4097 = vld [vmem:[%s3976 + $0x8] sm:$0x1]
        %v4098 = vld [vmem:[%s3976 + $0xc] sm:$0xf]
        %v4099 = vld [vmem:[%s3976 + $0x10] sm:$0xf]
        %v4100 = vld [vmem:[%s3976 + $0x14] sm:$0x1]
        %v4101 = vld [vmem:[%s3976 + $0x18] sm:$0xf]
        %v4102 = vld [vmem:[%s3976 + $0x1c] sm:$0xf]
        %v4103 = vld [vmem:[%s3976 + $0x20] sm:$0x1]
        %v4104 = vld [vmem:[%s3976 + $0x24] sm:$0xf]
        %v4105 = vld [vmem:[%s3976 + $0x28] sm:$0xf]
        %v4106 = vld [vmem:[%s3976 + $0x2c] sm:$0x1]
        %s4107 = scalar_lea.vmem %s4, 8
        %v4108 = vld [vmem:[%s4107] sm:$0x3]
        %v4110 = vshrl.u32 %v4095, 16
        %v4112 = vrot.slane %v4110, 4
        %v4113 = vshll.u32 %v4095, 16
        %v4115 = vrot.slane %v4113, 5
        %v4116 = vor.u32 %v4112, %v4115
        %v4117 = vrot.slane %v4116, 4
        %v4119 = vshll.u32 %v4096, 16
        %v4121 = vrot.slane %v4119, 5
        %v4122 = vsel %vm2550, %v4117, %v4121
        %v4123 = vshrl.u32 %v4096, 16
        %v4125 = vrot.slane %v4123, 4
        %v4126 = vor.u32 %v4125, %v4121
        %v4127 = vrot.slane %v4126, 4
        %v4129 = vshll.u32 %v4097, 16
        %v4131 = vrot.slane %v4129, 5
        %v4132 = vsel %vm2550, %v4127, %v4131
        %v4134 = vshrl.u32 %v4098, 16
        %v4136 = vrot.slane %v4134, 4
        %v4137 = vshll.u32 %v4098, 16
        %v4139 = vrot.slane %v4137, 5
        %v4140 = vor.u32 %v4136, %v4139
        %v4141 = vrot.slane %v4140, 4
        %v4143 = vshll.u32 %v4099, 16
        %v4145 = vrot.slane %v4143, 5
        %v4146 = vsel %vm2550, %v4141, %v4145
        %v4147 = vshrl.u32 %v4099, 16
        %v4149 = vrot.slane %v4147, 4
        %v4150 = vor.u32 %v4149, %v4145
        %v4151 = vrot.slane %v4150, 4
        %v4153 = vshll.u32 %v4100, 16
        %v4155 = vrot.slane %v4153, 5
        %v4156 = vsel %vm2550, %v4151, %v4155
        %v4158 = vshrl.u32 %v4101, 16
        %v4160 = vrot.slane %v4158, 4
        %v4161 = vshll.u32 %v4101, 16
        %v4163 = vrot.slane %v4161, 5
        %v4164 = vor.u32 %v4160, %v4163
        %v4165 = vrot.slane %v4164, 4
        %v4167 = vshll.u32 %v4102, 16
        %v4169 = vrot.slane %v4167, 5
        %v4170 = vsel %vm2550, %v4165, %v4169
        %v4171 = vshrl.u32 %v4102, 16
        %v4173 = vrot.slane %v4171, 4
        %v4174 = vor.u32 %v4173, %v4169
        %v4175 = vrot.slane %v4174, 4
        %v4177 = vshll.u32 %v4103, 16
        %v4179 = vrot.slane %v4177, 5
        %v4180 = vsel %vm2550, %v4175, %v4179
        %v4182 = vshrl.u32 %v4104, 16
        %v4184 = vrot.slane %v4182, 4
        %v4185 = vshll.u32 %v4104, 16
        %v4187 = vrot.slane %v4185, 5
        %v4188 = vor.u32 %v4184, %v4187
        %v4189 = vrot.slane %v4188, 4
        %v4191 = vshll.u32 %v4105, 16
        %v4193 = vrot.slane %v4191, 5
        %v4194 = vsel %vm2550, %v4189, %v4193
        %v4195 = vshrl.u32 %v4105, 16
        %v4197 = vrot.slane %v4195, 4
        %v4198 = vor.u32 %v4197, %v4193
        %v4199 = vrot.slane %v4198, 4
        %v4201 = vshll.u32 %v4106, 16
        %v4203 = vrot.slane %v4201, 5
        %v4204 = vsel %vm2550, %v4199, %v4203
        %v4205 = vunpack.c.l.b16 %v4122
        %v4206 = vunpack.c.l.b16 %v4132
        %v4207 = vunpack.c.l.b16 %v4146
        %v4208 = vunpack.c.l.b16 %v4156
        %v4209 = vunpack.c.l.b16 %v4170
        %v4210 = vunpack.c.l.b16 %v4180
        %v4211 = vunpack.c.l.b16 %v4194
        %v4212 = vunpack.c.l.b16 %v4204
        %v4213 = vpack.c.b16 %v4206, %v4205
        %v4214 = vpack.c.b16 %v4208, %v4207
        %v4215 = vpack.c.b16 %v4210, %v4209
        %v4216 = vpack.c.b16 %v4212, %v4211
        %v4218 = vsel %vm2605, %v4213, 0
        %v4221 = vsel %vm2605, %v4214, 0
        %v4224 = vsel %vm2605, %v4215, 0
        %v4227 = vsel %vm2605, %v4216, 0
        %v4230 = vsel %vm2612, %v4108, 0
        %4232 = vmatprep.subr.bf16.mxu0 0
        %4233 = vmatpush1.bf16.msra.mxu0 0
        %4234 = vmatprep.subr.bf16.mxu0 0
        %4235 = vmatpush1.bf16.msra.mxu0 0
        %4236 = vmatprep.subr.bf16.mxu0 0
        %4237 = vmatpush1.bf16.msra.mxu0 0
        %4238 = vmatprep.subr.bf16.mxu0 0
        %4239 = vmatpush1.bf16.msra.mxu0 0
        %4240 = vmatprep.subr.bf16.mxu0 0
        %4241 = vmatpush1.bf16.msra.mxu0 0
        %4242 = vmatprep.subr.bf16.mxu0 0
        %4243 = vmatpush1.bf16.msra.mxu0 0
        %4244 = vmatprep.subr.bf16.mxu0 0
        %4245 = vmatpush1.bf16.msra.mxu0 0
        %4246 = vmatprep.subr.bf16.mxu0 0
        %4247 = vmatpush1.bf16.msra.mxu0 %v4230
        %4248 = vmatprep.subr.bf16.mxu0 0
        %4249 = vmatpush2.bf16.msra.mxu0 0
        %4250 = vmatprep.subr.bf16.mxu0 0
        %4251 = vmatpush2.bf16.msra.mxu0 0
        %4252 = vmatprep.subr.bf16.mxu0 0
        %4253 = vmatpush2.bf16.msra.mxu0 0
        %4254 = vmatprep.subr.bf16.mxu0 0
        %4255 = vmatpush2.bf16.msra.mxu0 0
        %4256 = vmatprep.subr.bf16.mxu0 0
        %4257 = vmatpush2.bf16.msra.mxu0 0
        %4258 = vmatprep.subr.bf16.mxu0 0
        %4259 = vmatpush2.bf16.msra.mxu0 0
        %4260 = vmatprep.subr.bf16.mxu0 0
        %4261 = vmatpush2.bf16.msra.mxu0 0
        %4262 = vmatprep.subr.bf16.mxu0 0
        %4263 = vmatpush2.bf16.msra.mxu0 0
        %4264 = vmatprep.mubr.bf16.mxu0 0
        %4265 = vmatmul.mubr.bf16.gmra.mxu0 %v4218
        %v4266 = vpop.f32.mrf.mxu0
        %v4267 = vadd.f32 0.0, %v4266
        %v4268 = vpop.f32.mrf.mxu0
        %v4269 = vpop.f32.mrf.mxu0
        %v4270 = vadd.f32 0.0, %v4269
        %v4271 = vpop.f32.mrf.mxu0
        %4272 = vmatprep.mubr.bf16.mxu0 0
        %4273 = vmatmul.mubr.bf16.gmra.mxu0 %v4221
        %v4274 = vpop.f32.mrf.mxu0
        %v4275 = vadd.f32 0.0, %v4274
        %v4276 = vpop.f32.mrf.mxu0
        %v4277 = vpop.f32.mrf.mxu0
        %v4278 = vadd.f32 0.0, %v4277
        %v4279 = vpop.f32.mrf.mxu0
        %4280 = vmatprep.mubr.bf16.mxu0 0
        %4281 = vmatmul.mubr.bf16.gmra.mxu0 %v4224
        %v4282 = vpop.f32.mrf.mxu0
        %v4283 = vadd.f32 0.0, %v4282
        %v4284 = vpop.f32.mrf.mxu0
        %v4285 = vpop.f32.mrf.mxu0
        %v4286 = vadd.f32 0.0, %v4285
        %v4287 = vpop.f32.mrf.mxu0
        %4288 = vmatprep.mubr.bf16.mxu0 0
        %4289 = vmatmul.mubr.bf16.gmra.mxu0 %v4227
        %v4290 = vpop.f32.mrf.mxu0
        %v4291 = vadd.f32 0.0, %v4290
        %v4292 = vpop.f32.mrf.mxu0
        %v4293 = vpop.f32.mrf.mxu0
        %v4294 = vadd.f32 0.0, %v4293
        %v4295 = vpop.f32.mrf.mxu0
        %4296 = vdwg.mxu0
        %v4297 = vadd.f32 %v4087, %v4267
        %v4298 = vadd.f32 %v4088, %v4270
        %v4299 = vadd.f32 %v4089, %v4275
        %v4300 = vadd.f32 %v4090, %v4278
        %v4301 = vadd.f32 %v4091, %v4283
        %v4302 = vadd.f32 %v4092, %v4286
        %v4303 = vadd.f32 %v4093, %v4291
        %v4304 = vadd.f32 %v4094, %v4294
        %v4305 = vld [vmem:[%s3976] sm:$0xe]
        %v4306 = vld [vmem:[%s3976 + $0xc] sm:$0xe]
        %v4307 = vld [vmem:[%s3976 + $0x18] sm:$0xe]
        %v4308 = vld [vmem:[%s3976 + $0x24] sm:$0xe]
        %s4309 = scalar_lea.vmem %s4, 10
        %v4310 = vld [vmem:[%s4309] sm:$0x3]
        %v4323 = vrot.slane %v4305, 5
        %v4324 = vrot.slane %v4323, 4
        %v4325 = vrot.slane %v4096, 5
        %v4326 = vsel %vm2743, %v4324, %v4325
        %v4327 = vrot.slane %v4325, 4
        %v4328 = vrot.slane %v4097, 5
        %v4329 = vsel %vm2743, %v4327, %v4328
        %v4330 = vrot.slane %v4306, 5
        %v4331 = vrot.slane %v4330, 4
        %v4332 = vrot.slane %v4099, 5
        %v4333 = vsel %vm2743, %v4331, %v4332
        %v4334 = vrot.slane %v4332, 4
        %v4335 = vrot.slane %v4100, 5
        %v4336 = vsel %vm2743, %v4334, %v4335
        %v4337 = vrot.slane %v4307, 5
        %v4338 = vrot.slane %v4337, 4
        %v4339 = vrot.slane %v4102, 5
        %v4340 = vsel %vm2743, %v4338, %v4339
        %v4341 = vrot.slane %v4339, 4
        %v4342 = vrot.slane %v4103, 5
        %v4343 = vsel %vm2743, %v4341, %v4342
        %v4344 = vrot.slane %v4308, 5
        %v4345 = vrot.slane %v4344, 4
        %v4346 = vrot.slane %v4105, 5
        %v4347 = vsel %vm2743, %v4345, %v4346
        %v4348 = vrot.slane %v4346, 4
        %v4349 = vrot.slane %v4106, 5
        %v4350 = vsel %vm2743, %v4348, %v4349
        %v4351 = vunpack.c.l.b16 %v4326
        %v4352 = vunpack.c.l.b16 %v4329
        %v4353 = vunpack.c.l.b16 %v4333
        %v4354 = vunpack.c.l.b16 %v4336
        %v4355 = vunpack.c.l.b16 %v4340
        %v4356 = vunpack.c.l.b16 %v4343
        %v4357 = vunpack.c.l.b16 %v4347
        %v4358 = vunpack.c.l.b16 %v4350
        %v4359 = vpack.c.b16 %v4352, %v4351
        %v4360 = vpack.c.b16 %v4354, %v4353
        %v4361 = vpack.c.b16 %v4356, %v4355
        %v4362 = vpack.c.b16 %v4358, %v4357
        %v4364 = vsel %vm2605, %v4359, 0
        %v4367 = vsel %vm2605, %v4360, 0
        %v4370 = vsel %vm2605, %v4361, 0
        %v4373 = vsel %vm2605, %v4362, 0
        %v4376 = vsel %vm2612, %v4310, 0
        %4378 = vmatprep.subr.bf16.mxu0 0
        %4379 = vmatpush1.bf16.msra.mxu0 0
        %4380 = vmatprep.subr.bf16.mxu0 0
        %4381 = vmatpush1.bf16.msra.mxu0 0
        %4382 = vmatprep.subr.bf16.mxu0 0
        %4383 = vmatpush1.bf16.msra.mxu0 0
        %4384 = vmatprep.subr.bf16.mxu0 0
        %4385 = vmatpush1.bf16.msra.mxu0 0
        %4386 = vmatprep.subr.bf16.mxu0 0
        %4387 = vmatpush1.bf16.msra.mxu0 0
        %4388 = vmatprep.subr.bf16.mxu0 0
        %4389 = vmatpush1.bf16.msra.mxu0 0
        %4390 = vmatprep.subr.bf16.mxu0 0
        %4391 = vmatpush1.bf16.msra.mxu0 0
        %4392 = vmatprep.subr.bf16.mxu0 0
        %4393 = vmatpush1.bf16.msra.mxu0 %v4376
        %4394 = vmatprep.subr.bf16.mxu0 0
        %4395 = vmatpush2.bf16.msra.mxu0 0
        %4396 = vmatprep.subr.bf16.mxu0 0
        %4397 = vmatpush2.bf16.msra.mxu0 0
        %4398 = vmatprep.subr.bf16.mxu0 0
        %4399 = vmatpush2.bf16.msra.mxu0 0
        %4400 = vmatprep.subr.bf16.mxu0 0
        %4401 = vmatpush2.bf16.msra.mxu0 0
        %4402 = vmatprep.subr.bf16.mxu0 0
        %4403 = vmatpush2.bf16.msra.mxu0 0
        %4404 = vmatprep.subr.bf16.mxu0 0
        %4405 = vmatpush2.bf16.msra.mxu0 0
        %4406 = vmatprep.subr.bf16.mxu0 0
        %4407 = vmatpush2.bf16.msra.mxu0 0
        %4408 = vmatprep.subr.bf16.mxu0 0
        %4409 = vmatpush2.bf16.msra.mxu0 0
        %4410 = vmatprep.mubr.bf16.mxu0 0
        %4411 = vmatmul.mubr.bf16.gmra.mxu0 %v4364
        %v4412 = vpop.f32.mrf.mxu0
        %v4413 = vadd.f32 0.0, %v4412
        %v4414 = vpop.f32.mrf.mxu0
        %v4415 = vpop.f32.mrf.mxu0
        %v4416 = vadd.f32 0.0, %v4415
        %v4417 = vpop.f32.mrf.mxu0
        %4418 = vmatprep.mubr.bf16.mxu0 0
        %4419 = vmatmul.mubr.bf16.gmra.mxu0 %v4367
        %v4420 = vpop.f32.mrf.mxu0
        %v4421 = vadd.f32 0.0, %v4420
        %v4422 = vpop.f32.mrf.mxu0
        %v4423 = vpop.f32.mrf.mxu0
        %v4424 = vadd.f32 0.0, %v4423
        %v4425 = vpop.f32.mrf.mxu0
        %4426 = vmatprep.mubr.bf16.mxu0 0
        %4427 = vmatmul.mubr.bf16.gmra.mxu0 %v4370
        %v4428 = vpop.f32.mrf.mxu0
        %v4429 = vadd.f32 0.0, %v4428
        %v4430 = vpop.f32.mrf.mxu0
        %v4431 = vpop.f32.mrf.mxu0
        %v4432 = vadd.f32 0.0, %v4431
        %v4433 = vpop.f32.mrf.mxu0
        %4434 = vmatprep.mubr.bf16.mxu0 0
        %4435 = vmatmul.mubr.bf16.gmra.mxu0 %v4373
        %v4436 = vpop.f32.mrf.mxu0
        %v4437 = vadd.f32 0.0, %v4436
        %v4438 = vpop.f32.mrf.mxu0
        %v4439 = vpop.f32.mrf.mxu0
        %v4440 = vadd.f32 0.0, %v4439
        %v4441 = vpop.f32.mrf.mxu0
        %4442 = vdwg.mxu0
        %v4443 = vadd.f32 %v4297, %v4413
        %v4444 = vadd.f32 %v4298, %v4416
        %v4445 = vadd.f32 %v4299, %v4421
        %v4446 = vadd.f32 %v4300, %v4424
        %v4447 = vadd.f32 %v4301, %v4429
        %v4448 = vadd.f32 %v4302, %v4432
        %v4449 = vadd.f32 %v4303, %v4437
        %v4450 = vadd.f32 %v4304, %v4440
        %s4451 = sadd.s32 %s3524, 2
        %s4452 = smul.u32 %s4451, 3
        %s4453 = smul.addr %s4452, 4
        %s4454 = scalar_lea.vmem [#allocation3], %s4453
        %v4455 = vld [vmem:[%s4454] sm:$0xf]
        %v4456 = vld [vmem:[%s4454 + $0x4] sm:$0xf]
        %v4457 = vld [vmem:[%s4454 + $0xc] sm:$0xf]
        %v4458 = vld [vmem:[%s4454 + $0x10] sm:$0xf]
        %v4459 = vld [vmem:[%s4454 + $0x18] sm:$0xf]
        %v4460 = vld [vmem:[%s4454 + $0x1c] sm:$0xf]
        %v4461 = vld [vmem:[%s4454 + $0x24] sm:$0xf]
        %v4462 = vld [vmem:[%s4454 + $0x28] sm:$0xf]
        %s4463 = scalar_lea.vmem %s4, 12
        %v4464 = vld [vmem:[%s4463] sm:$0x3]
        %v4473 = vunpack.c.l.b16 %v4455
        %v4474 = vunpack.c.l.b16 %v4456
        %v4475 = vunpack.c.l.b16 %v4457
        %v4476 = vunpack.c.l.b16 %v4458
        %v4477 = vunpack.c.l.b16 %v4459
        %v4478 = vunpack.c.l.b16 %v4460
        %v4479 = vunpack.c.l.b16 %v4461
        %v4480 = vunpack.c.l.b16 %v4462
        %v4481 = vpack.c.b16 %v4474, %v4473
        %v4482 = vpack.c.b16 %v4476, %v4475
        %v4483 = vpack.c.b16 %v4478, %v4477
        %v4484 = vpack.c.b16 %v4480, %v4479
        %v4486 = vsel %vm2605, %v4481, 0
        %v4489 = vsel %vm2605, %v4482, 0
        %v4492 = vsel %vm2605, %v4483, 0
        %v4495 = vsel %vm2605, %v4484, 0
        %v4498 = vsel %vm2612, %v4464, 0
        %4500 = vmatprep.subr.bf16.mxu0 0
        %4501 = vmatpush1.bf16.msra.mxu0 0
        %4502 = vmatprep.subr.bf16.mxu0 0
        %4503 = vmatpush1.bf16.msra.mxu0 0
        %4504 = vmatprep.subr.bf16.mxu0 0
        %4505 = vmatpush1.bf16.msra.mxu0 0
        %4506 = vmatprep.subr.bf16.mxu0 0
        %4507 = vmatpush1.bf16.msra.mxu0 0
        %4508 = vmatprep.subr.bf16.mxu0 0
        %4509 = vmatpush1.bf16.msra.mxu0 0
        %4510 = vmatprep.subr.bf16.mxu0 0
        %4511 = vmatpush1.bf16.msra.mxu0 0
        %4512 = vmatprep.subr.bf16.mxu0 0
        %4513 = vmatpush1.bf16.msra.mxu0 0
        %4514 = vmatprep.subr.bf16.mxu0 0
        %4515 = vmatpush1.bf16.msra.mxu0 %v4498
        %4516 = vmatprep.subr.bf16.mxu0 0
        %4517 = vmatpush2.bf16.msra.mxu0 0
        %4518 = vmatprep.subr.bf16.mxu0 0
        %4519 = vmatpush2.bf16.msra.mxu0 0
        %4520 = vmatprep.subr.bf16.mxu0 0
        %4521 = vmatpush2.bf16.msra.mxu0 0
        %4522 = vmatprep.subr.bf16.mxu0 0
        %4523 = vmatpush2.bf16.msra.mxu0 0
        %4524 = vmatprep.subr.bf16.mxu0 0
        %4525 = vmatpush2.bf16.msra.mxu0 0
        %4526 = vmatprep.subr.bf16.mxu0 0
        %4527 = vmatpush2.bf16.msra.mxu0 0
        %4528 = vmatprep.subr.bf16.mxu0 0
        %4529 = vmatpush2.bf16.msra.mxu0 0
        %4530 = vmatprep.subr.bf16.mxu0 0
        %4531 = vmatpush2.bf16.msra.mxu0 0
        %4532 = vmatprep.mubr.bf16.mxu0 0
        %4533 = vmatmul.mubr.bf16.gmra.mxu0 %v4486
        %v4534 = vpop.f32.mrf.mxu0
        %v4535 = vadd.f32 0.0, %v4534
        %v4536 = vpop.f32.mrf.mxu0
        %v4537 = vpop.f32.mrf.mxu0
        %v4538 = vadd.f32 0.0, %v4537
        %v4539 = vpop.f32.mrf.mxu0
        %4540 = vmatprep.mubr.bf16.mxu0 0
        %4541 = vmatmul.mubr.bf16.gmra.mxu0 %v4489
        %v4542 = vpop.f32.mrf.mxu0
        %v4543 = vadd.f32 0.0, %v4542
        %v4544 = vpop.f32.mrf.mxu0
        %v4545 = vpop.f32.mrf.mxu0
        %v4546 = vadd.f32 0.0, %v4545
        %v4547 = vpop.f32.mrf.mxu0
        %4548 = vmatprep.mubr.bf16.mxu0 0
        %4549 = vmatmul.mubr.bf16.gmra.mxu0 %v4492
        %v4550 = vpop.f32.mrf.mxu0
        %v4551 = vadd.f32 0.0, %v4550
        %v4552 = vpop.f32.mrf.mxu0
        %v4553 = vpop.f32.mrf.mxu0
        %v4554 = vadd.f32 0.0, %v4553
        %v4555 = vpop.f32.mrf.mxu0
        %4556 = vmatprep.mubr.bf16.mxu0 0
        %4557 = vmatmul.mubr.bf16.gmra.mxu0 %v4495
        %v4558 = vpop.f32.mrf.mxu0
        %v4559 = vadd.f32 0.0, %v4558
        %v4560 = vpop.f32.mrf.mxu0
        %v4561 = vpop.f32.mrf.mxu0
        %v4562 = vadd.f32 0.0, %v4561
        %v4563 = vpop.f32.mrf.mxu0
        %4564 = vdwg.mxu0
        %v4565 = vadd.f32 %v4443, %v4535
        %v4566 = vadd.f32 %v4444, %v4538
        %v4567 = vadd.f32 %v4445, %v4543
        %v4568 = vadd.f32 %v4446, %v4546
        %v4569 = vadd.f32 %v4447, %v4551
        %v4570 = vadd.f32 %v4448, %v4554
        %v4571 = vadd.f32 %v4449, %v4559
        %v4572 = vadd.f32 %v4450, %v4562
        %v4573 = vld [vmem:[%s4454] sm:$0xf]
        %v4574 = vld [vmem:[%s4454 + $0x4] sm:$0xf]
        %v4575 = vld [vmem:[%s4454 + $0x8] sm:$0x1]
        %v4576 = vld [vmem:[%s4454 + $0xc] sm:$0xf]
        %v4577 = vld [vmem:[%s4454 + $0x10] sm:$0xf]
        %v4578 = vld [vmem:[%s4454 + $0x14] sm:$0x1]
        %v4579 = vld [vmem:[%s4454 + $0x18] sm:$0xf]
        %v4580 = vld [vmem:[%s4454 + $0x1c] sm:$0xf]
        %v4581 = vld [vmem:[%s4454 + $0x20] sm:$0x1]
        %v4582 = vld [vmem:[%s4454 + $0x24] sm:$0xf]
        %v4583 = vld [vmem:[%s4454 + $0x28] sm:$0xf]
        %v4584 = vld [vmem:[%s4454 + $0x2c] sm:$0x1]
        %s4585 = scalar_lea.vmem %s4, 14
        %v4586 = vld [vmem:[%s4585] sm:$0x3]
        %v4588 = vshrl.u32 %v4573, 16
        %v4590 = vrot.slane %v4588, 4
        %v4591 = vshll.u32 %v4573, 16
        %v4593 = vrot.slane %v4591, 5
        %v4594 = vor.u32 %v4590, %v4593
        %v4595 = vrot.slane %v4594, 4
        %v4597 = vshll.u32 %v4574, 16
        %v4599 = vrot.slane %v4597, 5
        %v4600 = vsel %vm2550, %v4595, %v4599
        %v4601 = vshrl.u32 %v4574, 16
        %v4603 = vrot.slane %v4601, 4
        %v4604 = vor.u32 %v4603, %v4599
        %v4605 = vrot.slane %v4604, 4
        %v4607 = vshll.u32 %v4575, 16
        %v4609 = vrot.slane %v4607, 5
        %v4610 = vsel %vm2550, %v4605, %v4609
        %v4612 = vshrl.u32 %v4576, 16
        %v4614 = vrot.slane %v4612, 4
        %v4615 = vshll.u32 %v4576, 16
        %v4617 = vrot.slane %v4615, 5
        %v4618 = vor.u32 %v4614, %v4617
        %v4619 = vrot.slane %v4618, 4
        %v4621 = vshll.u32 %v4577, 16
        %v4623 = vrot.slane %v4621, 5
        %v4624 = vsel %vm2550, %v4619, %v4623
        %v4625 = vshrl.u32 %v4577, 16
        %v4627 = vrot.slane %v4625, 4
        %v4628 = vor.u32 %v4627, %v4623
        %v4629 = vrot.slane %v4628, 4
        %v4631 = vshll.u32 %v4578, 16
        %v4633 = vrot.slane %v4631, 5
        %v4634 = vsel %vm2550, %v4629, %v4633
        %v4636 = vshrl.u32 %v4579, 16
        %v4638 = vrot.slane %v4636, 4
        %v4639 = vshll.u32 %v4579, 16
        %v4641 = vrot.slane %v4639, 5
        %v4642 = vor.u32 %v4638, %v4641
        %v4643 = vrot.slane %v4642, 4
        %v4645 = vshll.u32 %v4580, 16
        %v4647 = vrot.slane %v4645, 5
        %v4648 = vsel %vm2550, %v4643, %v4647
        %v4649 = vshrl.u32 %v4580, 16
        %v4651 = vrot.slane %v4649, 4
        %v4652 = vor.u32 %v4651, %v4647
        %v4653 = vrot.slane %v4652, 4
        %v4655 = vshll.u32 %v4581, 16
        %v4657 = vrot.slane %v4655, 5
        %v4658 = vsel %vm2550, %v4653, %v4657
        %v4660 = vshrl.u32 %v4582, 16
        %v4662 = vrot.slane %v4660, 4
        %v4663 = vshll.u32 %v4582, 16
        %v4665 = vrot.slane %v4663, 5
        %v4666 = vor.u32 %v4662, %v4665
        %v4667 = vrot.slane %v4666, 4
        %v4669 = vshll.u32 %v4583, 16
        %v4671 = vrot.slane %v4669, 5
        %v4672 = vsel %vm2550, %v4667, %v4671
        %v4673 = vshrl.u32 %v4583, 16
        %v4675 = vrot.slane %v4673, 4
        %v4676 = vor.u32 %v4675, %v4671
        %v4677 = vrot.slane %v4676, 4
        %v4679 = vshll.u32 %v4584, 16
        %v4681 = vrot.slane %v4679, 5
        %v4682 = vsel %vm2550, %v4677, %v4681
        %v4683 = vunpack.c.l.b16 %v4600
        %v4684 = vunpack.c.l.b16 %v4610
        %v4685 = vunpack.c.l.b16 %v4624
        %v4686 = vunpack.c.l.b16 %v4634
        %v4687 = vunpack.c.l.b16 %v4648
        %v4688 = vunpack.c.l.b16 %v4658
        %v4689 = vunpack.c.l.b16 %v4672
        %v4690 = vunpack.c.l.b16 %v4682
        %v4691 = vpack.c.b16 %v4684, %v4683
        %v4692 = vpack.c.b16 %v4686, %v4685
        %v4693 = vpack.c.b16 %v4688, %v4687
        %v4694 = vpack.c.b16 %v4690, %v4689
        %v4696 = vsel %vm2605, %v4691, 0
        %v4699 = vsel %vm2605, %v4692, 0
        %v4702 = vsel %vm2605, %v4693, 0
        %v4705 = vsel %vm2605, %v4694, 0
        %v4708 = vsel %vm2612, %v4586, 0
        %4710 = vmatprep.subr.bf16.mxu0 0
        %4711 = vmatpush1.bf16.msra.mxu0 0
        %4712 = vmatprep.subr.bf16.mxu0 0
        %4713 = vmatpush1.bf16.msra.mxu0 0
        %4714 = vmatprep.subr.bf16.mxu0 0
        %4715 = vmatpush1.bf16.msra.mxu0 0
        %4716 = vmatprep.subr.bf16.mxu0 0
        %4717 = vmatpush1.bf16.msra.mxu0 0
        %4718 = vmatprep.subr.bf16.mxu0 0
        %4719 = vmatpush1.bf16.msra.mxu0 0
        %4720 = vmatprep.subr.bf16.mxu0 0
        %4721 = vmatpush1.bf16.msra.mxu0 0
        %4722 = vmatprep.subr.bf16.mxu0 0
        %4723 = vmatpush1.bf16.msra.mxu0 0
        %4724 = vmatprep.subr.bf16.mxu0 0
        %4725 = vmatpush1.bf16.msra.mxu0 %v4708
        %4726 = vmatprep.subr.bf16.mxu0 0
        %4727 = vmatpush2.bf16.msra.mxu0 0
        %4728 = vmatprep.subr.bf16.mxu0 0
        %4729 = vmatpush2.bf16.msra.mxu0 0
        %4730 = vmatprep.subr.bf16.mxu0 0
        %4731 = vmatpush2.bf16.msra.mxu0 0
        %4732 = vmatprep.subr.bf16.mxu0 0
        %4733 = vmatpush2.bf16.msra.mxu0 0
        %4734 = vmatprep.subr.bf16.mxu0 0
        %4735 = vmatpush2.bf16.msra.mxu0 0
        %4736 = vmatprep.subr.bf16.mxu0 0
        %4737 = vmatpush2.bf16.msra.mxu0 0
        %4738 = vmatprep.subr.bf16.mxu0 0
        %4739 = vmatpush2.bf16.msra.mxu0 0
        %4740 = vmatprep.subr.bf16.mxu0 0
        %4741 = vmatpush2.bf16.msra.mxu0 0
        %4742 = vmatprep.mubr.bf16.mxu0 0
        %4743 = vmatmul.mubr.bf16.gmra.mxu0 %v4696
        %v4744 = vpop.f32.mrf.mxu0
        %v4745 = vadd.f32 0.0, %v4744
        %v4746 = vpop.f32.mrf.mxu0
        %v4747 = vpop.f32.mrf.mxu0
        %v4748 = vadd.f32 0.0, %v4747
        %v4749 = vpop.f32.mrf.mxu0
        %4750 = vmatprep.mubr.bf16.mxu0 0
        %4751 = vmatmul.mubr.bf16.gmra.mxu0 %v4699
        %v4752 = vpop.f32.mrf.mxu0
        %v4753 = vadd.f32 0.0, %v4752
        %v4754 = vpop.f32.mrf.mxu0
        %v4755 = vpop.f32.mrf.mxu0
        %v4756 = vadd.f32 0.0, %v4755
        %v4757 = vpop.f32.mrf.mxu0
        %4758 = vmatprep.mubr.bf16.mxu0 0
        %4759 = vmatmul.mubr.bf16.gmra.mxu0 %v4702
        %v4760 = vpop.f32.mrf.mxu0
        %v4761 = vadd.f32 0.0, %v4760
        %v4762 = vpop.f32.mrf.mxu0
        %v4763 = vpop.f32.mrf.mxu0
        %v4764 = vadd.f32 0.0, %v4763
        %v4765 = vpop.f32.mrf.mxu0
        %4766 = vmatprep.mubr.bf16.mxu0 0
        %4767 = vmatmul.mubr.bf16.gmra.mxu0 %v4705
        %v4768 = vpop.f32.mrf.mxu0
        %v4769 = vadd.f32 0.0, %v4768
        %v4770 = vpop.f32.mrf.mxu0
        %v4771 = vpop.f32.mrf.mxu0
        %v4772 = vadd.f32 0.0, %v4771
        %v4773 = vpop.f32.mrf.mxu0
        %4774 = vdwg.mxu0
        %v4775 = vadd.f32 %v4565, %v4745
        %v4776 = vadd.f32 %v4566, %v4748
        %v4777 = vadd.f32 %v4567, %v4753
        %v4778 = vadd.f32 %v4568, %v4756
        %v4779 = vadd.f32 %v4569, %v4761
        %v4780 = vadd.f32 %v4570, %v4764
        %v4781 = vadd.f32 %v4571, %v4769
        %v4782 = vadd.f32 %v4572, %v4772
        %v4783 = vld [vmem:[%s4454] sm:$0xe]
        %v4784 = vld [vmem:[%s4454 + $0xc] sm:$0xe]
        %v4785 = vld [vmem:[%s4454 + $0x18] sm:$0xe]
        %v4786 = vld [vmem:[%s4454 + $0x24] sm:$0xe]
        %s4787 = scalar_lea.vmem %s4, 16
        %v4788 = vld [vmem:[%s4787] sm:$0x3]
        %v4801 = vrot.slane %v4783, 5
        %v4802 = vrot.slane %v4801, 4
        %v4803 = vrot.slane %v4574, 5
        %v4804 = vsel %vm2743, %v4802, %v4803
        %v4805 = vrot.slane %v4803, 4
        %v4806 = vrot.slane %v4575, 5
        %v4807 = vsel %vm2743, %v4805, %v4806
        %v4808 = vrot.slane %v4784, 5
        %v4809 = vrot.slane %v4808, 4
        %v4810 = vrot.slane %v4577, 5
        %v4811 = vsel %vm2743, %v4809, %v4810
        %v4812 = vrot.slane %v4810, 4
        %v4813 = vrot.slane %v4578, 5
        %v4814 = vsel %vm2743, %v4812, %v4813
        %v4815 = vrot.slane %v4785, 5
        %v4816 = vrot.slane %v4815, 4
        %v4817 = vrot.slane %v4580, 5
        %v4818 = vsel %vm2743, %v4816, %v4817
        %v4819 = vrot.slane %v4817, 4
        %v4820 = vrot.slane %v4581, 5
        %v4821 = vsel %vm2743, %v4819, %v4820
        %v4822 = vrot.slane %v4786, 5
        %v4823 = vrot.slane %v4822, 4
        %v4824 = vrot.slane %v4583, 5
        %v4825 = vsel %vm2743, %v4823, %v4824
        %v4826 = vrot.slane %v4824, 4
        %v4827 = vrot.slane %v4584, 5
        %v4828 = vsel %vm2743, %v4826, %v4827
        %v4829 = vunpack.c.l.b16 %v4804
        %v4830 = vunpack.c.l.b16 %v4807
        %v4831 = vunpack.c.l.b16 %v4811
        %v4832 = vunpack.c.l.b16 %v4814
        %v4833 = vunpack.c.l.b16 %v4818
        %v4834 = vunpack.c.l.b16 %v4821
        %v4835 = vunpack.c.l.b16 %v4825
        %v4836 = vunpack.c.l.b16 %v4828
        %v4837 = vpack.c.b16 %v4830, %v4829
        %v4838 = vpack.c.b16 %v4832, %v4831
        %v4839 = vpack.c.b16 %v4834, %v4833
        %v4840 = vpack.c.b16 %v4836, %v4835
        %v4842 = vsel %vm2605, %v4837, 0
        %v4845 = vsel %vm2605, %v4838, 0
        %v4848 = vsel %vm2605, %v4839, 0
        %v4851 = vsel %vm2605, %v4840, 0
        %v4854 = vsel %vm2612, %v4788, 0
        %4856 = vmatprep.subr.bf16.mxu0 0
        %4857 = vmatpush1.bf16.msra.mxu0 0
        %4858 = vmatprep.subr.bf16.mxu0 0
        %4859 = vmatpush1.bf16.msra.mxu0 0
        %4860 = vmatprep.subr.bf16.mxu0 0
        %4861 = vmatpush1.bf16.msra.mxu0 0
        %4862 = vmatprep.subr.bf16.mxu0 0
        %4863 = vmatpush1.bf16.msra.mxu0 0
        %4864 = vmatprep.subr.bf16.mxu0 0
        %4865 = vmatpush1.bf16.msra.mxu0 0
        %4866 = vmatprep.subr.bf16.mxu0 0
        %4867 = vmatpush1.bf16.msra.mxu0 0
        %4868 = vmatprep.subr.bf16.mxu0 0
        %4869 = vmatpush1.bf16.msra.mxu0 0
        %4870 = vmatprep.subr.bf16.mxu0 0
        %4871 = vmatpush1.bf16.msra.mxu0 %v4854
        %4872 = vmatprep.subr.bf16.mxu0 0
        %4873 = vmatpush2.bf16.msra.mxu0 0
        %4874 = vmatprep.subr.bf16.mxu0 0
        %4875 = vmatpush2.bf16.msra.mxu0 0
        %4876 = vmatprep.subr.bf16.mxu0 0
        %4877 = vmatpush2.bf16.msra.mxu0 0
        %4878 = vmatprep.subr.bf16.mxu0 0
        %4879 = vmatpush2.bf16.msra.mxu0 0
        %4880 = vmatprep.subr.bf16.mxu0 0
        %4881 = vmatpush2.bf16.msra.mxu0 0
        %4882 = vmatprep.subr.bf16.mxu0 0
        %4883 = vmatpush2.bf16.msra.mxu0 0
        %4884 = vmatprep.subr.bf16.mxu0 0
        %4885 = vmatpush2.bf16.msra.mxu0 0
        %4886 = vmatprep.subr.bf16.mxu0 0
        %4887 = vmatpush2.bf16.msra.mxu0 0
        %4888 = vmatprep.mubr.bf16.mxu0 0
        %4889 = vmatmul.mubr.bf16.gmra.mxu0 %v4842
        %v4890 = vpop.f32.mrf.mxu0
        %v4891 = vadd.f32 0.0, %v4890
        %v4892 = vpop.f32.mrf.mxu0
        %v4893 = vpop.f32.mrf.mxu0
        %v4894 = vadd.f32 0.0, %v4893
        %v4895 = vpop.f32.mrf.mxu0
        %4896 = vmatprep.mubr.bf16.mxu0 0
        %4897 = vmatmul.mubr.bf16.gmra.mxu0 %v4845
        %v4898 = vpop.f32.mrf.mxu0
        %v4899 = vadd.f32 0.0, %v4898
        %v4900 = vpop.f32.mrf.mxu0
        %v4901 = vpop.f32.mrf.mxu0
        %v4902 = vadd.f32 0.0, %v4901
        %v4903 = vpop.f32.mrf.mxu0
        %4904 = vmatprep.mubr.bf16.mxu0 0
        %4905 = vmatmul.mubr.bf16.gmra.mxu0 %v4848
        %v4906 = vpop.f32.mrf.mxu0
        %v4907 = vadd.f32 0.0, %v4906
        %v4908 = vpop.f32.mrf.mxu0
        %v4909 = vpop.f32.mrf.mxu0
        %v4910 = vadd.f32 0.0, %v4909
        %v4911 = vpop.f32.mrf.mxu0
        %4912 = vmatprep.mubr.bf16.mxu0 0
        %4913 = vmatmul.mubr.bf16.gmra.mxu0 %v4851
        %v4914 = vpop.f32.mrf.mxu0
        %v4915 = vadd.f32 0.0, %v4914
        %v4916 = vpop.f32.mrf.mxu0
        %v4917 = vpop.f32.mrf.mxu0
        %v4918 = vadd.f32 0.0, %v4917
        %v4919 = vpop.f32.mrf.mxu0
        %4920 = vdwg.mxu0
        %v4921 = vadd.f32 %v4775, %v4891
        %v4922 = vadd.f32 %v4776, %v4894
        %v4923 = vadd.f32 %v4777, %v4899
        %v4924 = vadd.f32 %v4778, %v4902
        %v4925 = vadd.f32 %v4779, %v4907
        %v4926 = vadd.f32 %v4780, %v4910
        %v4927 = vadd.f32 %v4781, %v4915
        %v4928 = vadd.f32 %v4782, %v4918
        %v4929 = vld [vmem:[%s5] sm:$0x1]
        %v4931 = vlaneseq
        %v4932 = vshrl.u32 %v4931, 7
        %v4933 = vsub.s32 0, %v4932
        %v4934 = vrot.slane %v4929, %v4933
        %v4936 = vadd.f32 %v4921, %v4934
        %v4937 = vadd.f32 %v4922, %v4934
        %v4938 = vadd.f32 %v4923, %v4934
        %v4939 = vadd.f32 %v4924, %v4934
        %v4940 = vadd.f32 %v4925, %v4934
        %v4941 = vadd.f32 %v4926, %v4934
        %v4942 = vadd.f32 %v4927, %v4934
        %v4943 = vadd.f32 %v4928, %v4934
        %p4944 = scmp.lt.s32.totalorder %s3519, 1
        // Predicated region
        $region67: #{tpu_custom_call.1} parent=63 // pred_check
          %p4945 = pneg %p4944
        $region68: #{tpu_custom_call.1} parent=63 // pred_check_branch
          %4947 = sbr.rel (%p4945) target = $region70
        $region69: #{tpu_custom_call.1} parent=63 // pred_region
          %s4948 = smul.u32 %s4451, 16
          %s4949 = scalar_lea.vmem %s341, %s4948
          %v4950 = vld [vmem:[%s4949] sm:$0xff]
          %v4951 = vld [vmem:[%s4949 + $0x8] sm:$0xff]
          %v4952 = vld [vmem:[%s4949 + $0x10] sm:$0xff]
          %v4953 = vld [vmem:[%s4949 + $0x18] sm:$0xff]
          %v4954 = vld [vmem:[%s4949 + $0x20] sm:$0xff]
          %v4955 = vld [vmem:[%s4949 + $0x28] sm:$0xff]
          %v4956 = vld [vmem:[%s4949 + $0x30] sm:$0xff]
          %v4957 = vld [vmem:[%s4949 + $0x38] sm:$0xff]
          %v4958 = vadd.f32 %v4936, %v4950
          %v4959 = vadd.f32 %v4937, %v4951
          %v4960 = vadd.f32 %v4938, %v4952
          %v4961 = vadd.f32 %v4939, %v4953
          %v4962 = vadd.f32 %v4940, %v4954
          %v4963 = vadd.f32 %v4941, %v4955
          %v4964 = vadd.f32 %v4942, %v4956
          %v4965 = vadd.f32 %v4943, %v4957
          %s4966 = smul.u32 %s3524, 16
          %s4967 = scalar_lea.vmem %s372, %s4966
          %4968 = vst.msk [vmem:[%s4967] sm:$0xff] %vm2605, %v4958
          %4969 = vst.msk [vmem:[%s4967 + $0x8] sm:$0xff] %vm2605, %v4959
          %4970 = vst.msk [vmem:[%s4967 + $0x10] sm:$0xff] %vm2605, %v4960
          %4971 = vst.msk [vmem:[%s4967 + $0x18] sm:$0xff] %vm2605, %v4961
          %4972 = vst.msk [vmem:[%s4967 + $0x20] sm:$0xff] %vm2605, %v4962
          %4973 = vst.msk [vmem:[%s4967 + $0x28] sm:$0xff] %vm2605, %v4963
          %4974 = vst.msk [vmem:[%s4967 + $0x30] sm:$0xff] %vm2605, %v4964
          %4975 = vst.msk [vmem:[%s4967 + $0x38] sm:$0xff] %vm2605, %v4965
        $region70: #{tpu_custom_call.1} parent=63 // pred_fallthru
          _
        %p4976 = scmp.ge.s32.totalorder %s3519, 1
        // Predicated region
        $region71: #{tpu_custom_call.1} parent=63 // pred_check
          %p4977 = pneg %p4976
        $region72: #{tpu_custom_call.1} parent=63 // pred_check_branch
          %4979 = sbr.rel (%p4977) target = $region74
        $region73: #{tpu_custom_call.1} parent=63 // pred_region
          %s4980 = smul.u32 %s4451, 16
          %s4981 = scalar_lea.vmem %s341, %s4980
          %v4982 = vld [vmem:[%s4981] sm:$0xff]
          %v4983 = vld [vmem:[%s4981 + $0x8] sm:$0xff]
          %v4984 = vld [vmem:[%s4981 + $0x10] sm:$0xff]
          %v4985 = vld [vmem:[%s4981 + $0x18] sm:$0xff]
          %v4986 = vadd.f32 %v4936, %v4982
          %v4987 = vadd.f32 %v4937, %v4983
          %v4988 = vadd.f32 %v4938, %v4984
          %v4989 = vadd.f32 %v4939, %v4985
          %s4990 = smul.u32 %s3524, 16
          %s4991 = scalar_lea.vmem %s372, %s4990
          %4992 = vst.msk [vmem:[%s4991] sm:$0xff] %vm2605, %v4986
          %4993 = vst.msk [vmem:[%s4991 + $0x8] sm:$0xff] %vm2605, %v4987
          %4994 = vst.msk [vmem:[%s4991 + $0x10] sm:$0xff] %vm2605, %v4988
          %4995 = vst.msk [vmem:[%s4991 + $0x18] sm:$0xff] %vm2605, %v4989
          %v4996 = vld [vmem:[%s359] sm:$0xff]
          %v4997 = vld [vmem:[%s359 + $0x8] sm:$0xff]
          %v4998 = vld [vmem:[%s359 + $0x10] sm:$0xff]
          %v4999 = vld [vmem:[%s359 + $0x18] sm:$0xff]
          %v5000 = vadd.f32 %v4940, %v4996
          %v5001 = vadd.f32 %v4941, %v4997
          %v5002 = vadd.f32 %v4942, %v4998
          %v5003 = vadd.f32 %v4943, %v4999
          %s5004 = scalar_lea.vmem %s372, %s4980
          %5005 = vst.msk [vmem:[%s5004] sm:$0xff] %vm2605, %v5000
          %5006 = vst.msk [vmem:[%s5004 + $0x8] sm:$0xff] %vm2605, %v5001
          %5007 = vst.msk [vmem:[%s5004 + $0x10] sm:$0xff] %vm2605, %v5002
          %5008 = vst.msk [vmem:[%s5004 + $0x18] sm:$0xff] %vm2605, %v5003
        $region74: #{tpu_custom_call.1} parent=63 // pred_fallthru
          _
      $region64: #{tpu_custom_call.1} parent=43 // loop_footer
        %s3523 = sadd.s32 1, %s3519
      $region65: #{tpu_custom_call.1} parent=43 // loop_footer_branch
        %3518 = sbr.rel target = $region61
      $region66: #{tpu_custom_call.1} parent=43 // loop_exit
        _
      %s5009 = smul.u32 8, %s22
      %p5010 = scmp.lt.s32.totalorder %s21, 1
      %s5011 = scalar_select %p5010, %s21, 1
      %p5012 = scmp.lt.s32.totalorder %s5009, 15
      %s5013 = scalar_select %p5012, %s5009, 15
      %s5014 = smul.addr %s5013, 2
      %s5015 = smul.addr %s5011, 32
      %s5016 = sadd.s32 %s5014, %s5015
      %s5017 = smul.addr %s5016, 8
      %s5018 = scalar_lea.vmem %s6, %s5017
      // Predicated region
      $region75: #{tpu_custom_call.1} parent=43 // pred_check
        %p5019 = pneg %p193
      $region76: #{tpu_custom_call.1} parent=43 // pred_check_branch
        %5021 = sbr.rel (%p5019) target = $region78
      $region77: #{tpu_custom_call.1} parent=43 // pred_region
        %s5022 = smul.u32 8, %s22
      $region78: #{tpu_custom_call.1} parent=43 // pred_fallthru
        _
    $region44: #{tpu_custom_call.1} parent=5 // pred_fallthru
      _
    %p5023 = scmp.le.s32.totalorder 2, %s12
    // Predicated region
    $region79: #{tpu_custom_call.1} parent=5 // pred_check
      %p5024 = pneg %p5023
    $region80: #{tpu_custom_call.1} parent=5 // pred_check_branch
      %5026 = sbr.rel (%p5024) target = $region82
    $region81: #{tpu_custom_call.1} parent=5 // pred_region
      %s5027 = ssub.s32 %s12, 2
      // Predicated region
      $region83: #{tpu_custom_call.1} parent=81 // pred_check
        %p5028 = pneg %p199
      $region84: #{tpu_custom_call.1} parent=81 // pred_check_branch
        %5030 = sbr.rel (%p5028) target = $region86
      $region85: #{tpu_custom_call.1} parent=81 // pred_region
        %s5031 = smul.u32 8, %s24
        %p5032 = scmp.lt.s32.totalorder %s23, 1
        %s5033 = scalar_select %p5032, %s23, 1
        %p5034 = scmp.lt.s32.totalorder %s5031, 15
        %s5035 = scalar_select %p5034, %s5031, 15
        %s5036 = smul.addr %s5035, 2
        %s5037 = smul.addr %s5033, 32
        %s5038 = sadd.s32 %s5036, %s5037
        %s5039 = smul.addr %s5038, 8
        %s5040 = scalar_lea.vmem %s6, %s5039
      $region86: #{tpu_custom_call.1} parent=81 // pred_fallthru
        _
    $region82: #{tpu_custom_call.1} parent=5 // pred_fallthru
      _
  $region6: #{tpu_custom_call.1} parent=0 // loop_footer
    %s16 = sadd.s32 1, %s12
  $region7: #{tpu_custom_call.1} parent=0 // loop_footer_branch
    %11 = sbr.rel target = $region3
  $region8: #{tpu_custom_call.1} parent=0 // loop_exit
    _

</llo_original>
